<compile_context>
chip_gen: v7x
topology: tpu7x:2x2x1
jax: 0.10.0
libtpu: 0.0.40
codegen_flags: <defaults>
</compile_context>

<pallas_src>
import functools
import math

import jax
import jax.numpy as jnp
from jax.experimental import pallas as pl
from jax.experimental.pallas import tpu as pltpu


def mha_kernel(q_ref, k_ref, v_ref, wq_ref, bq_ref, gamma_ref, beta_ref,
               out_ref, *, heads, dk, eps, compute_dtype):
    """One (batch, query-row-tile) grid step.

    q_ref:    (1, TQ, D)     raw queries (also the residual `temp`)
    k_ref:    (1, H, S, dk)  projected keys, pre-split into heads
    v_ref:    (1, H, S, dk)  projected values, pre-split into heads
    wq_ref:   (D, D)         Wq^T with 1/sqrt(dk) folded in (compute dtype)
    bq_ref:   (1, D)         bq with 1/sqrt(dk) folded in (f32)
    gamma_ref/beta_ref: (1, D) LayerNorm affine (f32)
    out_ref:  (1, TQ, D)
    """
    x_q = q_ref[0]                                   # (TQ, D)  input dtype
    kh = k_ref[0]                                    # (H, S, dk) compute dtype
    vh = v_ref[0]                                    # (H, S, dk) compute dtype
    tq, d = x_q.shape

    # Fused Q projection (attention scale already folded into Wq / bq).
    qp = jnp.dot(x_q.astype(compute_dtype), wq_ref[...],
                 preferred_element_type=jnp.float32) + bq_ref[...]      # (TQ, D) f32

    # Head split of the (small) q tile only: (TQ, D) -> (H, TQ, dk).
    qh = jnp.swapaxes(qp.reshape(tq, heads, dk), 0, 1).astype(compute_dtype)

    # Scores for all heads with one leading-batch einsum, f32 accumulation.
    scores = jnp.einsum('hqd,hkd->hqk', qh, kh,
                        preferred_element_type=jnp.float32)             # (H, TQ, S)

    # Numerically stable softmax numerator; normalization is deferred.
    scores = scores - jnp.max(scores, axis=-1, keepdims=True)
    e = jnp.exp(scores)                                                 # (H, TQ, S)
    denom = jnp.sum(e, axis=-1, keepdims=True)                          # (H, TQ, 1)

    # P @ V with un-normalized probabilities, then exact deferred normalization
    # over the (H, TQ, 1) row sums (no approx reciprocal, no (H,TQ,S) rescale).
    ctx = jnp.einsum('hqk,hkd->hqd', e.astype(compute_dtype), vh,
                     preferred_element_type=jnp.float32)                # (H, TQ, dk)
    ctx = ctx / denom

    # Merge heads back to a lane-dense (TQ, D) == torch.cat over heads.
    x = jnp.swapaxes(ctx, 0, 1).reshape(tq, d)

    # Residual + LayerNorm over the last dim (f32 math).
    y = x + x_q.astype(jnp.float32)
    mean = jnp.mean(y, axis=-1, keepdims=True)
    var = jnp.mean(jnp.square(y - mean), axis=-1, keepdims=True)
    y = (y - mean) * jax.lax.rsqrt(var + eps)
    out = y * gamma_ref[...] + beta_ref[...]

    out_ref[0] = out.astype(out_ref.dtype)


def _round_up(x, m):
    return ((x + m - 1) // m) * m


def multi_head_attention(q, k, v, params, heads, *, block_q=None,
                         compute_dtype=None,
                         vmem_limit_bytes=48 * 1024 * 1024):
    """Pallas TPU forward pass of MultiHeadAttention (mask=None).

    params: wq_t/wk_t/wv_t are the (D_in, D_out) = W^T matrices of the three
    nn.Linear layers, bq/bk/bv their biases as (1, D), gamma/beta the LayerNorm
    affine as (1, D).
    """
    B, S, D = q.shape
    assert D % heads == 0, 'dim of model should be divisible by head'
    dk = D // heads
    scale = 1.0 / math.sqrt(dk)

    # MXU operand dtype. Default: follow the input dtype (bf16 inputs -> bf16
    # MXU path). Pass jnp.bfloat16 explicitly for max throughput with f32
    # inputs (bf16 operands, f32 accumulation) at bf16-level accuracy.
    if compute_dtype is None:
        compute_dtype = q.dtype

    # K/V projections hoisted out of the kernel: computed ONCE as plain XLA
    # GEMMs instead of once per query-row tile inside the kernel.
    kp = k @ params["wk_t"] + params["bk"]
    vp = v @ params["wv_t"] + params["bv"]

    # (B, S, D) -> (B, H, S, dk): one-time XLA transpose so the kernel's
    # attention einsums use leading batch dims with no in-kernel relayout of
    # the (large) K/V operands. NOTE: for dk < 128 this pads the lane dim in
    # VMEM; a lane-dense (B, S, D) feed + in-kernel split is the alternative.
    kh = kp.reshape(B, S, heads, dk).transpose(0, 2, 1, 3).astype(compute_dtype)
    vh = vp.reshape(B, S, heads, dk).transpose(0, 2, 1, 3).astype(compute_dtype)

    # Fold the 1/sqrt(dk) attention scale into the (fused) Q projection.
    wq = (params["wq_t"] * scale).astype(compute_dtype)
    bq = (params["bq"] * scale).astype(jnp.float32)
    gamma = params["gamma"].astype(jnp.float32)
    beta = params["beta"].astype(jnp.float32)

    # Query-row tiling: target 256 rows (fits v7x's 64 MiB VMEM with f32
    # (H, 256, S) scores for typical S; raise toward 512-1024 on v5e/v6e).
    # Ragged S is handled by padding the query axis (keys/values unpadded, so
    # the softmax is unaffected); padded rows are sliced off afterwards.
    if block_q is None:
        block_q = 256
    block_q = _round_up(min(block_q, _round_up(S, 8)), 8)
    s_pad = _round_up(S, block_q)
    q_in = q if s_pad == S else jnp.pad(q, ((0, 0), (0, s_pad - S), (0, 0)))

    grid = (B, s_pad // block_q)
    kernel = functools.partial(mha_kernel, heads=heads, dk=dk, eps=1e-5,
                               compute_dtype=compute_dtype)

    q_spec = pl.BlockSpec((1, block_q, D), lambda b, i: (b, i, 0))
    kv_spec = pl.BlockSpec((1, heads, S, dk), lambda b, i: (b, 0, 0, 0))
    w_spec = pl.BlockSpec((D, D), lambda b, i: (0, 0))
    vec_spec = pl.BlockSpec((1, D), lambda b, i: (0, 0))

    out = pl.pallas_call(
        kernel,
        out_shape=jax.ShapeDtypeStruct((B, s_pad, D), q.dtype),
        grid=grid,
        in_specs=[q_spec, kv_spec, kv_spec, w_spec, vec_spec, vec_spec, vec_spec],
        out_specs=q_spec,
        compiler_params=pltpu.CompilerParams(
            # Both axes are independent -> shard across the 2 TensorCores on v7x.
            dimension_semantics=("parallel", "parallel"),
            # Leave headroom below v7x's 64 MiB/TC physical VMEM; raise toward
            # ~100 MiB on v5e/v6e (128 MiB) when using bigger q tiles.
            vmem_limit_bytes=vmem_limit_bytes),
    )(q_in, kh, vh, wq, bq, gamma, beta)

    return out if s_pad == S else out[:, :S, :]


def reference_mha(q, k, v, params, heads):
    """Pure-JAX reference mirroring the PyTorch module (mask=None)."""
    B, S, D = q.shape
    dk = D // heads
    qp = q @ params["wq_t"] + params["bq"]
    kp = k @ params["wk_t"] + params["bk"]
    vp = v @ params["wv_t"] + params["bv"]

    def split(x):  # (B,S,D) -> (B,H,S,dk)
        return x.reshape(B, S, heads, dk).transpose(0, 2, 1, 3)

    qh, kh, vh = split(qp), split(kp), split(vp)
    att = jnp.einsum("bhsd,bhtd->bhst", qh, kh) / math.sqrt(dk)
    att = jax.nn.softmax(att, axis=-1)
    x = jnp.einsum("bhst,bhtd->bhsd", att, vh)          # (B,H,S,dk)
    x = x.transpose(0, 2, 1, 3).reshape(B, S, D)        # == torch.cat over heads
    y = x + q
    mean = jnp.mean(y, axis=-1, keepdims=True)
    var = jnp.mean((y - mean) ** 2, axis=-1, keepdims=True)
    y = (y - mean) / jnp.sqrt(var + 1e-5)
    return y * params["gamma"] + params["beta"]


if __name__ == "__main__":
    # Pin f32 matmul precision: TPU's default truncates f32 matmul operands to
    # bf16, which made the previous (full-precision) kernel and the
    # default-precision XLA reference disagree beyond 1e-3. With "highest",
    # the reference, the hoisted K/V projections and the kernel's f32 MXU dots
    # all use full f32 precision and agree tightly.
    jax.config.update("jax_default_matmul_precision", "highest")

    B, S, D, H = 2, 8, 32, 4

    key = jax.random.PRNGKey(0)
    keys = jax.random.split(key, 9)

    # PyTorch Linear weight (D,D) stored pre-transposed so x @ W^T + b == x @ wT + b.
    params = {
        "wq_t": jax.random.normal(keys[0], (D, D), jnp.float32) / math.sqrt(D),
        "wk_t": jax.random.normal(keys[1], (D, D), jnp.float32) / math.sqrt(D),
        "wv_t": jax.random.normal(keys[2], (D, D), jnp.float32) / math.sqrt(D),
        "bq": jax.random.normal(keys[3], (1, D), jnp.float32) * 0.01,
        "bk": jax.random.normal(keys[4], (1, D), jnp.float32) * 0.01,
        "bv": jax.random.normal(keys[5], (1, D), jnp.float32) * 0.01,
        "gamma": jnp.ones((1, D), jnp.float32),
        "beta": jnp.zeros((1, D), jnp.float32),
    }

    q = jax.random.normal(keys[6], (B, S, D), jnp.float32)
    k = jax.random.normal(keys[7], (B, S, D), jnp.float32)
    v = jax.random.normal(keys[8], (B, S, D), jnp.float32)

    mha = jax.jit(lambda q, k, v, p: multi_head_attention(q, k, v, p, heads=H))
    out = jax.block_until_ready(mha(q, k, v, params))

    ref = jax.block_until_ready(reference_mha(q, k, v, params, heads=H))

    assert out.shape == (B, S, D)
    assert out.dtype == q.dtype
    # Exact softmax normalization + full-precision f32 matmuls on both sides:
    # the tolerance only needs to absorb MXU f32 pass decomposition and
    # transcendental (exp / rsqrt) ulp differences.
    max_err = jnp.max(jnp.abs(out - ref))
    assert jnp.allclose(out, ref, atol=2e-3, rtol=2e-3), (
        f"mismatch vs reference, max abs err = {max_err}")

    print("KERNEL_OK")
</pallas_src>

<mosaic_0001>
module attributes {stable_mosaic.version = 11 : i64} {
  func.func @mha_kernel(%arg0: i32, %arg1: i32, %arg2: memref<1x8x32xf32, #tpu.memory_space<vmem>>, %arg3: memref<1x4x8x8xf32, #tpu.memory_space<vmem>>, %arg4: memref<1x4x8x8xf32, #tpu.memory_space<vmem>>, %arg5: memref<32x32xf32, #tpu.memory_space<vmem>>, %arg6: memref<1x32xf32, #tpu.memory_space<vmem>>, %arg7: memref<1x32xf32, #tpu.memory_space<vmem>>, %arg8: memref<1x32xf32, #tpu.memory_space<vmem>>, %arg9: memref<1x8x32xf32, #tpu.memory_space<vmem>>) attributes {dimension_semantics = [#tpu.dimension_semantics<parallel>, #tpu.dimension_semantics<parallel>], iteration_bounds = array<i64: 2, 1>, scalar_prefetch = 0 : i64, scratch_operands = 0 : i64, tpu.core_type = #tpu.core_type<tc>, window_params = [{transform_indices = @transform_0, window_bounds = array<i64: 1, 8, 32>}, {transform_indices = @transform_1, window_bounds = array<i64: 1, 4, 8, 8>}, {transform_indices = @transform_2, window_bounds = array<i64: 1, 4, 8, 8>}, {pipeline_mode = #tpu.pipeline_mode<synchronous>, transform_indices = @transform_3, window_bounds = array<i64: 32, 32>}, {pipeline_mode = #tpu.pipeline_mode<synchronous>, transform_indices = @transform_4, window_bounds = array<i64: 1, 32>}, {pipeline_mode = #tpu.pipeline_mode<synchronous>, transform_indices = @transform_5, window_bounds = array<i64: 1, 32>}, {pipeline_mode = #tpu.pipeline_mode<synchronous>, transform_indices = @transform_6, window_bounds = array<i64: 1, 32>}, {transform_indices = @transform_7, window_bounds = array<i64: 1, 8, 32>}]} {
    %c0 = arith.constant 0 : index
    %c0_0 = arith.constant 0 : index
    %c0_1 = arith.constant 0 : index
    %0 = vector.load %arg2[%c0, %c0_0, %c0_1] : memref<1x8x32xf32, #tpu.memory_space<vmem>>, vector<1x8x32xf32>
    %1 = vector.shape_cast %0 : vector<1x8x32xf32> to vector<8x32xf32>
    %c0_2 = arith.constant 0 : index
    %c0_3 = arith.constant 0 : index
    %c0_4 = arith.constant 0 : index
    %c0_5 = arith.constant 0 : index
    %2 = vector.load %arg3[%c0_2, %c0_3, %c0_4, %c0_5] : memref<1x4x8x8xf32, #tpu.memory_space<vmem>>, vector<1x4x8x8xf32>
    %3 = vector.shape_cast %2 : vector<1x4x8x8xf32> to vector<4x8x8xf32>
    %c0_6 = arith.constant 0 : index
    %c0_7 = arith.constant 0 : index
    %c0_8 = arith.constant 0 : index
    %c0_9 = arith.constant 0 : index
    %4 = vector.load %arg4[%c0_6, %c0_7, %c0_8, %c0_9] : memref<1x4x8x8xf32, #tpu.memory_space<vmem>>, vector<1x4x8x8xf32>
    %5 = vector.shape_cast %4 : vector<1x4x8x8xf32> to vector<4x8x8xf32>
    %c0_10 = arith.constant 0 : index
    %c0_11 = arith.constant 0 : index
    %6 = vector.load %arg5[%c0_10, %c0_11] : memref<32x32xf32, #tpu.memory_space<vmem>>, vector<32x32xf32>
    %cst = arith.constant dense<0.000000e+00> : vector<8x32xf32>
    %7 = tpu.matmul %1, %6, %cst {dimension_numbers = #tpu.dot_dimension_numbers<[1], [0], [0], [1], [0, 0, 1, 1], [], []>, precision = #tpu.contract_precision<fp32>} : vector<8x32xf32>, vector<32x32xf32>, vector<8x32xf32> -> vector<8x32xf32>
    %c0_12 = arith.constant 0 : index
    %c0_13 = arith.constant 0 : index
    %8 = vector.load %arg6[%c0_12, %c0_13] : memref<1x32xf32, #tpu.memory_space<vmem>>, vector<1x32xf32>
    %9 = vector.broadcast %8 : vector<1x32xf32> to vector<8x32xf32>
    %10 = arith.addf %7, %9 : vector<8x32xf32>
    %11 = vector.shape_cast %10 : vector<8x32xf32> to vector<8x4x8xf32>
    %12 = tpu.transpose %11, [1, 0, 2] : vector<8x4x8xf32> -> vector<4x8x8xf32>
    "tpu.trace_start"() <{level = 10 : i32, message = "hqd,hkd->hqk"}> : () -> ()
    %cst_14 = arith.constant dense<0.000000e+00> : vector<4x8x8xf32>
    %13 = tpu.matmul %12, %3, %cst_14 {dimension_numbers = #tpu.dot_dimension_numbers<[2], [2], [1], [1], [0, 0, 0, 1, 1, 1], [0], [0]>, precision = #tpu.contract_precision<fp32>} : vector<4x8x8xf32>, vector<4x8x8xf32>, vector<4x8x8xf32> -> vector<4x8x8xf32>
    "tpu.trace_stop"() : () -> ()
    %cst_15 = arith.constant dense<0xFF800000> : vector<4x8xf32>
    %14 = vector.multi_reduction <maximumf>, %13, %cst_15 [2] : vector<4x8x8xf32> to vector<4x8xf32>
    %15 = vector.shape_cast %14 : vector<4x8xf32> to vector<4x8x1xf32>
    %16 = vector.broadcast %15 : vector<4x8x1xf32> to vector<4x8x8xf32>
    %17 = arith.subf %13, %16 : vector<4x8x8xf32>
    %18 = math.exp %17 : vector<4x8x8xf32>
    %cst_16 = arith.constant dense<0.000000e+00> : vector<4x8xf32>
    %19 = vector.multi_reduction <add>, %18, %cst_16 [2] : vector<4x8x8xf32> to vector<4x8xf32>
    %20 = vector.shape_cast %19 : vector<4x8xf32> to vector<4x8x1xf32>
    "tpu.trace_start"() <{level = 10 : i32, message = "hqk,hkd->hqd"}> : () -> ()
    %cst_17 = arith.constant dense<0.000000e+00> : vector<4x8x8xf32>
    %21 = tpu.matmul %18, %5, %cst_17 {dimension_numbers = #tpu.dot_dimension_numbers<[2], [1], [1], [2], [0, 0, 0, 1, 1, 2], [0], [0]>, precision = #tpu.contract_precision<fp32>} : vector<4x8x8xf32>, vector<4x8x8xf32>, vector<4x8x8xf32> -> vector<4x8x8xf32>
    "tpu.trace_stop"() : () -> ()
    %22 = vector.broadcast %20 : vector<4x8x1xf32> to vector<4x8x8xf32>
    %23 = arith.divf %21, %22 : vector<4x8x8xf32>
    %24 = tpu.transpose %23, [1, 0, 2] : vector<4x8x8xf32> -> vector<8x4x8xf32>
    %25 = vector.shape_cast %24 : vector<8x4x8xf32> to vector<8x32xf32>
    %26 = arith.addf %25, %1 : vector<8x32xf32>
    %cst_18 = arith.constant dense<0.000000e+00> : vector<8xf32>
    %27 = vector.multi_reduction <add>, %26, %cst_18 [1] : vector<8x32xf32> to vector<8xf32>
    %28 = vector.shape_cast %27 : vector<8xf32> to vector<8x1xf32>
    %cst_19 = arith.constant 3.200000e+01 : f32
    %29 = vector.broadcast %cst_19 : f32 to vector<8x1xf32>
    %30 = arith.divf %28, %29 : vector<8x1xf32>
    %31 = vector.broadcast %30 : vector<8x1xf32> to vector<8x32xf32>
    %32 = arith.subf %26, %31 : vector<8x32xf32>
    %33 = arith.mulf %32, %32 : vector<8x32xf32>
    %cst_20 = arith.constant dense<0.000000e+00> : vector<8xf32>
    %34 = vector.multi_reduction <add>, %33, %cst_20 [1] : vector<8x32xf32> to vector<8xf32>
    %35 = vector.shape_cast %34 : vector<8xf32> to vector<8x1xf32>
    %cst_21 = arith.constant 3.200000e+01 : f32
    %36 = vector.broadcast %cst_21 : f32 to vector<8x1xf32>
    %37 = arith.divf %35, %36 : vector<8x1xf32>
    %38 = vector.broadcast %30 : vector<8x1xf32> to vector<8x32xf32>
    %39 = arith.subf %26, %38 : vector<8x32xf32>
    %cst_22 = arith.constant 9.99999974E-6 : f32
    %40 = vector.broadcast %cst_22 : f32 to vector<8x1xf32>
    %41 = arith.addf %37, %40 : vector<8x1xf32>
    %42 = math.rsqrt %41 : vector<8x1xf32>
    %43 = vector.broadcast %42 : vector<8x1xf32> to vector<8x32xf32>
    %44 = arith.mulf %39, %43 : vector<8x32xf32>
    %c0_23 = arith.constant 0 : index
    %c0_24 = arith.constant 0 : index
    %45 = vector.load %arg7[%c0_23, %c0_24] : memref<1x32xf32, #tpu.memory_space<vmem>>, vector<1x32xf32>
    %46 = vector.broadcast %45 : vector<1x32xf32> to vector<8x32xf32>
    %47 = arith.mulf %44, %46 : vector<8x32xf32>
    %c0_25 = arith.constant 0 : index
    %c0_26 = arith.constant 0 : index
    %48 = vector.load %arg8[%c0_25, %c0_26] : memref<1x32xf32, #tpu.memory_space<vmem>>, vector<1x32xf32>
    %49 = vector.broadcast %48 : vector<1x32xf32> to vector<8x32xf32>
    %50 = arith.addf %47, %49 : vector<8x32xf32>
    %c0_27 = arith.constant 0 : index
    %c0_28 = arith.constant 0 : index
    %c0_29 = arith.constant 0 : index
    %51 = vector.load %arg9[%c0_27, %c0_28, %c0_29] : memref<1x8x32xf32, #tpu.memory_space<vmem>>, vector<1x8x32xf32>
    %52 = vector.shape_cast %51 : vector<1x8x32xf32> to vector<8x32xf32>
    %53 = vector.shape_cast %50 : vector<8x32xf32> to vector<1x8x32xf32>
    tpu.vector_store %arg9[%c0_27, %c0_28, %c0_29], %53 {strides = array<i32>} : memref<1x8x32xf32, #tpu.memory_space<vmem>>, vector<1x8x32xf32>,
    return
  }
  func.func @transform_0(%arg0: i32, %arg1: i32) -> (i32, i32, i32) {
    %c0_i32 = arith.constant 0 : i32
    %c0_i32_0 = arith.constant 0 : i32
    return %arg0, %arg1, %c0_i32 : i32, i32, i32
  }
  func.func @transform_1(%arg0: i32, %arg1: i32) -> (i32, i32, i32, i32) {
    %c0_i32 = arith.constant 0 : i32
    %c0_i32_0 = arith.constant 0 : i32
    %c0_i32_1 = arith.constant 0 : i32
    %c0_i32_2 = arith.constant 0 : i32
    return %arg0, %c0_i32, %c0_i32_0, %c0_i32_1 : i32, i32, i32, i32
  }
  func.func @transform_2(%arg0: i32, %arg1: i32) -> (i32, i32, i32, i32) {
    %c0_i32 = arith.constant 0 : i32
    %c0_i32_0 = arith.constant 0 : i32
    %c0_i32_1 = arith.constant 0 : i32
    %c0_i32_2 = arith.constant 0 : i32
    return %arg0, %c0_i32, %c0_i32_0, %c0_i32_1 : i32, i32, i32, i32
  }
  func.func @transform_3(%arg0: i32, %arg1: i32) -> (i32, i32) {
    %c0_i32 = arith.constant 0 : i32
    %c0_i32_0 = arith.constant 0 : i32
    %c0_i32_1 = arith.constant 0 : i32
    return %c0_i32, %c0_i32_0 : i32, i32
  }
  func.func @transform_4(%arg0: i32, %arg1: i32) -> (i32, i32) {
    %c0_i32 = arith.constant 0 : i32
    %c0_i32_0 = arith.constant 0 : i32
    %c0_i32_1 = arith.constant 0 : i32
    return %c0_i32, %c0_i32_0 : i32, i32
  }
  func.func @transform_5(%arg0: i32, %arg1: i32) -> (i32, i32) {
    %c0_i32 = arith.constant 0 : i32
    %c0_i32_0 = arith.constant 0 : i32
    %c0_i32_1 = arith.constant 0 : i32
    return %c0_i32, %c0_i32_0 : i32, i32
  }
  func.func @transform_6(%arg0: i32, %arg1: i32) -> (i32, i32) {
    %c0_i32 = arith.constant 0 : i32
    %c0_i32_0 = arith.constant 0 : i32
    %c0_i32_1 = arith.constant 0 : i32
    return %c0_i32, %c0_i32_0 : i32, i32
  }
  func.func @transform_7(%arg0: i32, %arg1: i32) -> (i32, i32, i32) {
    %c0_i32 = arith.constant 0 : i32
    %c0_i32_0 = arith.constant 0 : i32
    return %arg0, %arg1, %c0_i32 : i32, i32, i32
  }
}

</mosaic_0001>

<llo_original>
// kernel: _lambda_.1
$region0: #{_lambda_.1}
  #allocation0 [shape = 'u32[]', space=smem, size = 0x4, offset = 0x4, fixed_abs, tag = 'smem constant byte address 0x4 - core index']
  #allocation1 [shape = 'u32[144,128]{1,0:T(1,128)}', space=vmem, size = 0x12000, scoped, tag = 'internal scratch']
  %s0 = inlined_call_operand.vmem [shape: f32[2,8,32], index: 0, kind: input, shape index: {}]
  %s1 = inlined_call_operand.vmem [shape: f32[2,4,8,8], index: 1, kind: input, shape index: {}]
  %s2 = inlined_call_operand.vmem [shape: f32[2,4,8,8], index: 2, kind: input, shape index: {}]
  %s3 = inlined_call_operand.vmem [shape: f32[32,32], index: 3, kind: input, shape index: {}]
  %s4 = inlined_call_operand.vmem [shape: f32[1,32], index: 4, kind: input, shape index: {}]
  %s5 = inlined_call_operand.vmem [shape: f32[1,32], index: 5, kind: input, shape index: {}]
  %s6 = inlined_call_operand.vmem [shape: f32[1,32], index: 6, kind: input, shape index: {}]
  %s7 = inlined_call_operand.hbm [shape: f32[2,8,32], index: 7, kind: output, shape index: {}]
  %s8 = sld [smem:[#allocation0]]
  $region61: #{_lambda_.1} parent=0
    _
  %s10 = ssub.s32 1, %s8
  %s11 = scalar_select 0, %s10, %s8
  $region1: #{_lambda_.1} parent=0
    #allocation2 [shape = 'u8[8192]{0}', space=vmem, size = 0x2000, scoped, tag = 'output window, operand 0']
    #allocation3 [shape = 's32[2]{0}', space=sflag, size = 0x8, scoped, tag = 'scoped memory for _lambda_.1']
    %12 = vsyncpa [#allocation3], 0
    %s13 = scalar_lea.sflag [#allocation3], 1
    %14 = vsyncpa %s13, 0
    loop: start=0, step=1, limit=4
    $region2: #{_lambda_.1} parent=1 // loop_pre_header
      _
    $region3: #{_lambda_.1} parent=1 // loop_header
      %s16 = sphi 0, %s20
      %p17 = scmp.ge.s32.totalorder %s16, 4
      %s23 = sphi 0, %s35
      %s24 = sphi 0, %s31
      %s25 = sphi 0, %s23
      %s26 = sphi 0, %s24
      %s27 = sphi 0, %s25
      %s28 = sphi 0, %s26
      %s40 = sphi 0, %s42
      %s43 = sphi 0, %s40
      %s44 = sphi 0, %s43
      %s60 = sphi 0, %s44
      %s66 = sphi 0, %s68
      %s69 = sphi 0, %s66
      %s70 = sphi 0, %s69
      %s86 = sphi 0, %s70
      %s92 = sphi 0, %s94
      %s95 = sphi 0, %s92
      %s96 = sphi 0, %s95
      %s112 = sphi 0, %s96
      %s116 = sphi 0, %s116
      %s118 = sphi 0, %s116
      %s119 = sphi 0, %s118
      %s133 = sphi 0, %s119
      %s137 = sphi 0, %s137
      %s139 = sphi 0, %s137
      %s140 = sphi 0, %s139
      %s154 = sphi 0, %s140
      %s158 = sphi 0, %s158
      %s160 = sphi 0, %s158
      %s161 = sphi 0, %s160
      %s175 = sphi 0, %s161
      %s179 = sphi 0, %s179
      %s181 = sphi 0, %s179
      %s182 = sphi 0, %s181
      %s196 = sphi 0, %s182
      %s204 = sphi 0, %s206
      %s207 = sphi 0, %s204
      %s208 = sphi 0, %s207
      %s224 = sphi 0, %s208
    $region4: #{_lambda_.1} parent=1 // loop_header_branch
      %19 = sbr.rel (%p17) target = $region8
    $region5: #{_lambda_.1} parent=1 // loop_body
      %s21 = ssub.s32 %s16, 1
      %s22 = ssub.s32 %s16, 2
      %s29 = sadd.s32 1, %s24
      %p30 = scmp.ge.s32.totalorder %s29, 1
      %s31 = scalar_select %p30, 0, %s29
      %s32 = sadd.s32 1, %s23
      %s33 = scalar_select %p30, %s32, %s23
      %p34 = scmp.ge.s32.totalorder %s33, 2
      %s35 = scalar_select %p34, 0, %s33
      %s36 = ssub.s32 %s23, %s35
      %s37 = ssub.s32 %s24, %s31
      %s38 = sor.u32 %s36, %s37
      %p39 = scmp.eq.s32.totalorder %s38, 0
      %s41 = sadd.s32 %s40, 1
      %s42 = scalar_select %p39, %s40, %s41
      %p45 = pneg %p39
      %p46 = scmp.eq.s32.totalorder %s16, 1
      %p47 = por %p45, %p46
      %p48 = scmp.ne.s32.totalorder %s40, %s43
      %p49 = scmp.eq.s32.totalorder %s16, 0
      %p50 = por %p48, %p49
      %p51 = scmp.ne.s32.totalorder %s40, %s43
      %p52 = scmp.eq.s32.totalorder %s21, 1
      %p53 = por %p51, %p52
      %p54 = scmp.ne.s32.totalorder %s43, %s44
      %p55 = scmp.eq.s32.totalorder %s21, 0
      %p56 = por %p54, %p55
      %p57 = scmp.ne.s32.totalorder %s43, %s44
      %p58 = scmp.eq.s32.totalorder %s22, 1
      %p59 = por %p57, %p58
      %p61 = scmp.ne.s32.totalorder %s44, %s60
      %p62 = scmp.eq.s32.totalorder %s22, 0
      %p63 = por %p61, %p62
      %s64 = ssub.s32 %s23, %s35
      %p65 = scmp.eq.s32.totalorder %s64, 0
      %s67 = sadd.s32 %s66, 1
      %s68 = scalar_select %p65, %s66, %s67
      %p71 = pneg %p65
      %p72 = scmp.eq.s32.totalorder %s16, 1
      %p73 = por %p71, %p72
      %p74 = scmp.ne.s32.totalorder %s66, %s69
      %p75 = scmp.eq.s32.totalorder %s16, 0
      %p76 = por %p74, %p75
      %p77 = scmp.ne.s32.totalorder %s66, %s69
      %p78 = scmp.eq.s32.totalorder %s21, 1
      %p79 = por %p77, %p78
      %p80 = scmp.ne.s32.totalorder %s69, %s70
      %p81 = scmp.eq.s32.totalorder %s21, 0
      %p82 = por %p80, %p81
      %p83 = scmp.ne.s32.totalorder %s69, %s70
      %p84 = scmp.eq.s32.totalorder %s22, 1
      %p85 = por %p83, %p84
      %p87 = scmp.ne.s32.totalorder %s70, %s86
      %p88 = scmp.eq.s32.totalorder %s22, 0
      %p89 = por %p87, %p88
      %s90 = ssub.s32 %s23, %s35
      %p91 = scmp.eq.s32.totalorder %s90, 0
      %s93 = sadd.s32 %s92, 1
      %s94 = scalar_select %p91, %s92, %s93
      %p97 = pneg %p91
      %p98 = scmp.eq.s32.totalorder %s16, 1
      %p99 = por %p97, %p98
      %p100 = scmp.ne.s32.totalorder %s92, %s95
      %p101 = scmp.eq.s32.totalorder %s16, 0
      %p102 = por %p100, %p101
      %p103 = scmp.ne.s32.totalorder %s92, %s95
      %p104 = scmp.eq.s32.totalorder %s21, 1
      %p105 = por %p103, %p104
      %p106 = scmp.ne.s32.totalorder %s95, %s96
      %p107 = scmp.eq.s32.totalorder %s21, 0
      %p108 = por %p106, %p107
      %p109 = scmp.ne.s32.totalorder %s95, %s96
      %p110 = scmp.eq.s32.totalorder %s22, 1
      %p111 = por %p109, %p110
      %p113 = scmp.ne.s32.totalorder %s96, %s112
      %p114 = scmp.eq.s32.totalorder %s22, 0
      %p115 = por %p113, %p114
      %s117 = sadd.s32 %s116, 1
      %p120 = scmp.eq.s32.totalorder %s16, 1
      %p121 = scmp.ne.s32.totalorder %s116, %s118
      %p122 = scmp.eq.s32.totalorder %s16, 0
      %p123 = por %p121, %p122
      %p124 = scmp.ne.s32.totalorder %s116, %s118
      %p125 = scmp.eq.s32.totalorder %s21, 1
      %p126 = por %p124, %p125
      %p127 = scmp.ne.s32.totalorder %s118, %s119
      %p128 = scmp.eq.s32.totalorder %s21, 0
      %p129 = por %p127, %p128
      %p130 = scmp.ne.s32.totalorder %s118, %s119
      %p131 = scmp.eq.s32.totalorder %s22, 1
      %p132 = por %p130, %p131
      %p134 = scmp.ne.s32.totalorder %s119, %s133
      %p135 = scmp.eq.s32.totalorder %s22, 0
      %p136 = por %p134, %p135
      %s138 = sadd.s32 %s137, 1
      %p141 = scmp.eq.s32.totalorder %s16, 1
      %p142 = scmp.ne.s32.totalorder %s137, %s139
      %p143 = scmp.eq.s32.totalorder %s16, 0
      %p144 = por %p142, %p143
      %p145 = scmp.ne.s32.totalorder %s137, %s139
      %p146 = scmp.eq.s32.totalorder %s21, 1
      %p147 = por %p145, %p146
      %p148 = scmp.ne.s32.totalorder %s139, %s140
      %p149 = scmp.eq.s32.totalorder %s21, 0
      %p150 = por %p148, %p149
      %p151 = scmp.ne.s32.totalorder %s139, %s140
      %p152 = scmp.eq.s32.totalorder %s22, 1
      %p153 = por %p151, %p152
      %p155 = scmp.ne.s32.totalorder %s140, %s154
      %p156 = scmp.eq.s32.totalorder %s22, 0
      %p157 = por %p155, %p156
      %s159 = sadd.s32 %s158, 1
      %p162 = scmp.eq.s32.totalorder %s16, 1
      %p163 = scmp.ne.s32.totalorder %s158, %s160
      %p164 = scmp.eq.s32.totalorder %s16, 0
      %p165 = por %p163, %p164
      %p166 = scmp.ne.s32.totalorder %s158, %s160
      %p167 = scmp.eq.s32.totalorder %s21, 1
      %p168 = por %p166, %p167
      %p169 = scmp.ne.s32.totalorder %s160, %s161
      %p170 = scmp.eq.s32.totalorder %s21, 0
      %p171 = por %p169, %p170
      %p172 = scmp.ne.s32.totalorder %s160, %s161
      %p173 = scmp.eq.s32.totalorder %s22, 1
      %p174 = por %p172, %p173
      %p176 = scmp.ne.s32.totalorder %s161, %s175
      %p177 = scmp.eq.s32.totalorder %s22, 0
      %p178 = por %p176, %p177
      %s180 = sadd.s32 %s179, 1
      %p183 = scmp.eq.s32.totalorder %s16, 1
      %p184 = scmp.ne.s32.totalorder %s179, %s181
      %p185 = scmp.eq.s32.totalorder %s16, 0
      %p186 = por %p184, %p185
      %p187 = scmp.ne.s32.totalorder %s179, %s181
      %p188 = scmp.eq.s32.totalorder %s21, 1
      %p189 = por %p187, %p188
      %p190 = scmp.ne.s32.totalorder %s181, %s182
      %p191 = scmp.eq.s32.totalorder %s21, 0
      %p192 = por %p190, %p191
      %p193 = scmp.ne.s32.totalorder %s181, %s182
      %p194 = scmp.eq.s32.totalorder %s22, 1
      %p195 = por %p193, %p194
      %p197 = scmp.ne.s32.totalorder %s182, %s196
      %p198 = scmp.eq.s32.totalorder %s22, 0
      %p199 = por %p197, %p198
      %s200 = ssub.s32 %s23, %s35
      %s201 = ssub.s32 %s24, %s31
      %s202 = sor.u32 %s200, %s201
      %p203 = scmp.eq.s32.totalorder %s202, 0
      %s205 = sadd.s32 %s204, 1
      %s206 = scalar_select %p203, %s204, %s205
      %p209 = pneg %p203
      %p210 = scmp.eq.s32.totalorder %s16, 1
      %p211 = por %p209, %p210
      %p212 = scmp.ne.s32.totalorder %s204, %s207
      %p213 = scmp.eq.s32.totalorder %s16, 0
      %p214 = por %p212, %p213
      %p215 = scmp.ne.s32.totalorder %s204, %s207
      %p216 = scmp.eq.s32.totalorder %s21, 1
      %p217 = por %p215, %p216
      %p218 = scmp.ne.s32.totalorder %s207, %s208
      %p219 = scmp.eq.s32.totalorder %s21, 0
      %p220 = por %p218, %p219
      %p221 = scmp.ne.s32.totalorder %s207, %s208
      %p222 = scmp.eq.s32.totalorder %s22, 1
      %p223 = por %p221, %p222
      %p225 = scmp.ne.s32.totalorder %s208, %s224
      %p226 = scmp.eq.s32.totalorder %s22, 0
      %p227 = por %p225, %p226
      %p228 = scmp.le.s32.totalorder 1, %s16
      %p229 = scmp.lt.s32.totalorder %s16, 3
      %p230 = pnand %p228, %p229
      %p231 = pneg %p230
      // Predicated region
      $region9: #{_lambda_.1} parent=5 // pred_check
        _
      $region10: #{_lambda_.1} parent=5 // pred_check_branch
        %233 = sbr.rel (%p230) target = $region12
      $region11: #{_lambda_.1} parent=5 // pred_region
        %s234 = ssub.s32 %s16, 1
        // Predicated region
        $region13: #{_lambda_.1} parent=11 // pred_check
          %p235 = pneg %p129
        $region14: #{_lambda_.1} parent=11 // pred_check_branch
          %237 = sbr.rel (%p235) target = $region16
        $region15: #{_lambda_.1} parent=11 // pred_region
          _
        $region16: #{_lambda_.1} parent=11 // pred_fallthru
          _
        // Predicated region
        $region17: #{_lambda_.1} parent=11 // pred_check
          %p238 = pneg %p150
        $region18: #{_lambda_.1} parent=11 // pred_check_branch
          %240 = sbr.rel (%p238) target = $region20
        $region19: #{_lambda_.1} parent=11 // pred_region
          _
        $region20: #{_lambda_.1} parent=11 // pred_fallthru
          _
        // Predicated region
        $region21: #{_lambda_.1} parent=11 // pred_check
          %p241 = pneg %p171
        $region22: #{_lambda_.1} parent=11 // pred_check_branch
          %243 = sbr.rel (%p241) target = $region24
        $region23: #{_lambda_.1} parent=11 // pred_region
          _
        $region24: #{_lambda_.1} parent=11 // pred_fallthru
          _
        // Predicated region
        $region25: #{_lambda_.1} parent=11 // pred_check
          %p244 = pneg %p192
        $region26: #{_lambda_.1} parent=11 // pred_check_branch
          %246 = sbr.rel (%p244) target = $region28
        $region27: #{_lambda_.1} parent=11 // pred_region
          _
        $region28: #{_lambda_.1} parent=11 // pred_fallthru
          _
      $region12: #{_lambda_.1} parent=5 // pred_fallthru
        _
      %p247 = scmp.lt.s32.totalorder %s16, 2
      // Predicated region
      $region29: #{_lambda_.1} parent=5 // pred_check
        %p248 = pneg %p247
      $region30: #{_lambda_.1} parent=5 // pred_check_branch
        %250 = sbr.rel (%p248) target = $region32
      $region31: #{_lambda_.1} parent=5 // pred_region
        // Predicated region
        $region33: #{_lambda_.1} parent=31 // pred_check
          %p251 = pneg %p50
        $region34: #{_lambda_.1} parent=31 // pred_check_branch
          %253 = sbr.rel (%p251) target = $region36
        $region35: #{_lambda_.1} parent=31 // pred_region
          %p254 = scmp.lt.s32.totalorder %s23, 1
          %s255 = scalar_select %p254, %s23, 1
          %p256 = scmp.lt.s32.totalorder %s24, 0
          %s257 = scalar_select %p256, %s24, 0
          %s258 = sadd.s32 %s257, %s255
          %s259 = smul.addr %s258, 8
          %s260 = scalar_lea.vmem %s0, %s259
        $region36: #{_lambda_.1} parent=31 // pred_fallthru
          _
        // Predicated region
        $region37: #{_lambda_.1} parent=31 // pred_check
          %p261 = pneg %p76
        $region38: #{_lambda_.1} parent=31 // pred_check_branch
          %263 = sbr.rel (%p261) target = $region40
        $region39: #{_lambda_.1} parent=31 // pred_region
          %p264 = scmp.lt.s32.totalorder %s23, 1
          %s265 = scalar_select %p264, %s23, 1
          %s266 = smul.addr %s265, 4
          %s267 = smul.addr %s266, 8
          %s268 = scalar_lea.vmem %s1, %s267
        $region40: #{_lambda_.1} parent=31 // pred_fallthru
          _
        // Predicated region
        $region41: #{_lambda_.1} parent=31 // pred_check
          %p269 = pneg %p102
        $region42: #{_lambda_.1} parent=31 // pred_check_branch
          %271 = sbr.rel (%p269) target = $region44
        $region43: #{_lambda_.1} parent=31 // pred_region
          %p272 = scmp.lt.s32.totalorder %s23, 1
          %s273 = scalar_select %p272, %s23, 1
          %s274 = smul.addr %s273, 4
          %s275 = smul.addr %s274, 8
          %s276 = scalar_lea.vmem %s2, %s275
        $region44: #{_lambda_.1} parent=31 // pred_fallthru
          _
      $region32: #{_lambda_.1} parent=5 // pred_fallthru
        _
      %p277 = scmp.le.s32.totalorder 1, %s16
      %p278 = scmp.lt.s32.totalorder %s16, 3
      %p279 = pnand %p277, %p278
      %p280 = pneg %p279
      // Predicated region
      $region45: #{_lambda_.1} parent=5 // pred_check
        _
      $region46: #{_lambda_.1} parent=5 // pred_check_branch
        %282 = sbr.rel (%p279) target = $region48
      $region47: #{_lambda_.1} parent=5 // pred_region
        %s283 = ssub.s32 %s16, 1
        %p284 = scmp.lt.s32.totalorder %s25, 1
        %s285 = scalar_select %p284, %s25, 1
        %p286 = scmp.lt.s32.totalorder %s26, 0
        %s287 = scalar_select %p286, %s26, 0
        %s288 = sadd.s32 %s287, %s285
        %s289 = smul.addr %s288, 8
        %s290 = scalar_lea.vmem %s0, %s289
        %p291 = pneg %p56
        %p292 = pneg %p53
        %p293 = scmp.lt.s32.totalorder %s25, 1
        %s294 = scalar_select %p293, %s25, 1
        %s295 = smul.addr %s294, 4
        %s296 = smul.addr %s295, 8
        %s297 = scalar_lea.vmem %s1, %s296
        %p298 = pneg %p82
        %p299 = pneg %p79
        %p300 = scmp.lt.s32.totalorder %s25, 1
        %s301 = scalar_select %p300, %s25, 1
        %s302 = smul.addr %s301, 4
        %s303 = smul.addr %s302, 8
        %s304 = scalar_lea.vmem %s2, %s303
        %p305 = pneg %p108
        %p306 = pneg %p105
        %p307 = pneg %p129
        %p308 = pneg %p126
        %p309 = pneg %p150
        %p310 = pneg %p147
        %p311 = pneg %p171
        %p312 = pneg %p168
        %p313 = pneg %p192
        %p314 = pneg %p189
        %p315 = pneg %p220
        %p316 = pneg %p217
        %s317 = sand.u32 %s207, 1
        %s318 = scalar_lea.sflag [#allocation3], %s317
        %s319 = sand.u32 %s207, 1
        %s320 = smul.addr %s319, 8
        %s321 = scalar_lea.vmem [#allocation2], %s320
        %p322 = scmp.lt.s32.totalorder %s25, 1
        %s323 = scalar_select %p322, %s25, 1
        %p324 = scmp.lt.s32.totalorder %s26, 0
        %s325 = scalar_select %p324, %s26, 0
        %s326 = sadd.s32 %s325, %s323
        %s327 = smul.addr %s326, 8
        %s328 = scalar_lea.vmem %s0, %s327
        %p329 = scmp.lt.s32.totalorder %s25, 1
        %s330 = scalar_select %p329, %s25, 1
        %s331 = smul.addr %s330, 4
        %s332 = smul.addr %s331, 8
        %s333 = scalar_lea.vmem %s1, %s332
        %p334 = scmp.lt.s32.totalorder %s25, 1
        %s335 = scalar_select %p334, %s25, 1
        %s336 = smul.addr %s335, 4
        %s337 = smul.addr %s336, 8
        %s338 = scalar_lea.vmem %s2, %s337
        %v339 = vld [vmem:[%s328] sm:$0xff]
        %v340 = vld [vmem:[%s333] sm:$0xff]
        %v341 = vld [vmem:[%s333 + $0x8] sm:$0xff]
        %v342 = vld [vmem:[%s333 + $0x10] sm:$0xff]
        %v343 = vld [vmem:[%s333 + $0x18] sm:$0xff]
        %v344 = vld [vmem:[%s338] sm:$0xff]
        %v345 = vld [vmem:[%s338 + $0x8] sm:$0xff]
        %v346 = vld [vmem:[%s338 + $0x10] sm:$0xff]
        %v347 = vld [vmem:[%s338 + $0x18] sm:$0xff]
        %v348 = vld [vmem:[%s3] sm:$0xff]
        %v349 = vld [vmem:[%s3 + $0x8] sm:$0xff]
        %v350 = vld [vmem:[%s3 + $0x10] sm:$0xff]
        %v351 = vld [vmem:[%s3 + $0x18] sm:$0xff]
        %v352 = vld [vmem:[%s4] sm:$0x1]
        %v354 = vlaneseq
        %v355 = vshrl.u32 %v354, 7
        %v356 = vsub.s32 0, %v355
        %v357 = vrot.slane %v352, %v356
        %vm359 = vcmask 261120
        %v361 = vsel %vm359, %v339, 0
        %363 = vmatprep.subr.mxu0 0.0
        %v364 = vand.u32 %v348, 4294901760
        %365 = vmatpush1.msra.mxu0 %v364
        %366 = vmatprep.subr.mxu0 0.0
        %v367 = vand.u32 %v349, 4294901760
        %368 = vmatpush1.msra.mxu0 %v367
        %369 = vmatprep.subr.mxu0 0.0
        %v370 = vand.u32 %v350, 4294901760
        %371 = vmatpush1.msra.mxu0 %v370
        %372 = vmatprep.subr.mxu0 0.0
        %v373 = vand.u32 %v351, 4294901760
        %374 = vmatpush1.msra.mxu0 %v373
        %375 = vmatprep.subr.mxu0 0.0
        %376 = vmatpush1.msra.mxu0 0.0
        %377 = vmatprep.subr.mxu0 0.0
        %378 = vmatpush1.msra.mxu0 0.0
        %379 = vmatprep.subr.mxu0 0.0
        %380 = vmatpush1.msra.mxu0 0.0
        %381 = vmatprep.subr.mxu0 0.0
        %382 = vmatpush1.msra.mxu0 0.0
        %383 = vmatprep.subr.mxu0 0.0
        %384 = vmatpush1.msra.mxu0 0.0
        %385 = vmatprep.subr.mxu0 0.0
        %386 = vmatpush1.msra.mxu0 0.0
        %387 = vmatprep.subr.mxu0 0.0
        %388 = vmatpush1.msra.mxu0 0.0
        %389 = vmatprep.subr.mxu0 0.0
        %390 = vmatpush1.msra.mxu0 0.0
        %391 = vmatprep.subr.mxu0 0.0
        %392 = vmatpush1.msra.mxu0 0.0
        %393 = vmatprep.subr.mxu0 0.0
        %394 = vmatpush1.msra.mxu0 0.0
        %395 = vmatprep.subr.mxu0 0.0
        %396 = vmatpush1.msra.mxu0 0.0
        %397 = vmatprep.subr.mxu0 0.0
        %398 = vmatpush1.msra.mxu0 0.0
        %399 = vmatprep.subr.mxu0 0.0
        %400 = vmatpush1.msra.mxu0 0.0
        %401 = vmatprep.subr.mxu0 0.0
        %402 = vmatpush1.msra.mxu0 0.0
        %403 = vmatprep.subr.mxu0 0.0
        %404 = vmatpush1.msra.mxu0 0.0
        %405 = vmatprep.subr.mxu0 0.0
        %406 = vmatpush1.msra.mxu0 0.0
        %407 = vmatprep.subr.mxu0 0.0
        %408 = vmatpush1.msra.mxu0 0.0
        %409 = vmatprep.subr.mxu0 0.0
        %410 = vmatpush1.msra.mxu0 0.0
        %411 = vmatprep.subr.mxu0 0.0
        %412 = vmatpush1.msra.mxu0 0.0
        %413 = vmatprep.subr.mxu0 0.0
        %414 = vmatpush1.msra.mxu0 0.0
        %415 = vmatprep.subr.mxu0 0.0
        %416 = vmatpush1.msra.mxu0 0.0
        %417 = vmatprep.subr.mxu0 0.0
        %418 = vmatpush1.msra.mxu0 0.0
        %419 = vmatprep.subr.mxu0 0.0
        %420 = vmatpush1.msra.mxu0 0.0
        %421 = vmatprep.subr.mxu0 0.0
        %422 = vmatpush1.msra.mxu0 0.0
        %423 = vmatprep.subr.mxu0 0.0
        %424 = vmatpush1.msra.mxu0 0.0
        %425 = vmatprep.subr.mxu0 0.0
        %426 = vmatpush1.msra.mxu0 0.0
        %427 = vmatprep.subr.mxu0 0.0
        %428 = vmatpush1.msra.mxu0 0.0
        %429 = vmatprep.subr.mxu0 0.0
        %430 = vmatpush1.msra.mxu0 0.0
        %431 = vmatprep.mubr.f32.mxu0 0.0
        %v432 = vand.u32 %v361, 4294901760
        %v433 = vsub.f32 %v361, %v432
        %v434 = vand.u32 %v433, 4294901760
        %v435 = vsub.f32 %v433, %v434
        %v436 = vand.u32 %v435, 4294901760
        %437 = vmatmul.mubr.f32.gmra.mrb[0].mxu0 %v436
        %v438 = vpop.f32.mrb[0].mxu0
        %v439 = vadd.f32 %v357, %v438
        %v440 = vpop.f32.mrb[0].mxu0
        %441 = vdwg.mxu0
        %442 = vmatprep.subr.mxu0 0.0
        %v443 = vand.u32 %v348, 4294901760
        %v444 = vsub.f32 %v348, %v443
        %v445 = vand.u32 %v444, 4294901760
        %v446 = vsub.f32 %v444, %v445
        %v447 = vand.u32 %v446, 4294901760
        %448 = vmatpush1.msra.mxu0 %v447
        %449 = vmatprep.subr.mxu0 0.0
        %v450 = vand.u32 %v349, 4294901760
        %v451 = vsub.f32 %v349, %v450
        %v452 = vand.u32 %v451, 4294901760
        %v453 = vsub.f32 %v451, %v452
        %v454 = vand.u32 %v453, 4294901760
        %455 = vmatpush1.msra.mxu0 %v454
        %456 = vmatprep.subr.mxu0 0.0
        %v457 = vand.u32 %v350, 4294901760
        %v458 = vsub.f32 %v350, %v457
        %v459 = vand.u32 %v458, 4294901760
        %v460 = vsub.f32 %v458, %v459
        %v461 = vand.u32 %v460, 4294901760
        %462 = vmatpush1.msra.mxu0 %v461
        %463 = vmatprep.subr.mxu0 0.0
        %v464 = vand.u32 %v351, 4294901760
        %v465 = vsub.f32 %v351, %v464
        %v466 = vand.u32 %v465, 4294901760
        %v467 = vsub.f32 %v465, %v466
        %v468 = vand.u32 %v467, 4294901760
        %469 = vmatpush1.msra.mxu0 %v468
        %470 = vmatprep.subr.mxu0 0.0
        %471 = vmatpush1.msra.mxu0 0.0
        %472 = vmatprep.subr.mxu0 0.0
        %473 = vmatpush1.msra.mxu0 0.0
        %474 = vmatprep.subr.mxu0 0.0
        %475 = vmatpush1.msra.mxu0 0.0
        %476 = vmatprep.subr.mxu0 0.0
        %477 = vmatpush1.msra.mxu0 0.0
        %478 = vmatprep.subr.mxu0 0.0
        %479 = vmatpush1.msra.mxu0 0.0
        %480 = vmatprep.subr.mxu0 0.0
        %481 = vmatpush1.msra.mxu0 0.0
        %482 = vmatprep.subr.mxu0 0.0
        %483 = vmatpush1.msra.mxu0 0.0
        %484 = vmatprep.subr.mxu0 0.0
        %485 = vmatpush1.msra.mxu0 0.0
        %486 = vmatprep.subr.mxu0 0.0
        %487 = vmatpush1.msra.mxu0 0.0
        %488 = vmatprep.subr.mxu0 0.0
        %489 = vmatpush1.msra.mxu0 0.0
        %490 = vmatprep.subr.mxu0 0.0
        %491 = vmatpush1.msra.mxu0 0.0
        %492 = vmatprep.subr.mxu0 0.0
        %493 = vmatpush1.msra.mxu0 0.0
        %494 = vmatprep.subr.mxu0 0.0
        %495 = vmatpush1.msra.mxu0 0.0
        %496 = vmatprep.subr.mxu0 0.0
        %497 = vmatpush1.msra.mxu0 0.0
        %498 = vmatprep.subr.mxu0 0.0
        %499 = vmatpush1.msra.mxu0 0.0
        %500 = vmatprep.subr.mxu0 0.0
        %501 = vmatpush1.msra.mxu0 0.0
        %502 = vmatprep.subr.mxu0 0.0
        %503 = vmatpush1.msra.mxu0 0.0
        %504 = vmatprep.subr.mxu0 0.0
        %505 = vmatpush1.msra.mxu0 0.0
        %506 = vmatprep.subr.mxu0 0.0
        %507 = vmatpush1.msra.mxu0 0.0
        %508 = vmatprep.subr.mxu0 0.0
        %509 = vmatpush1.msra.mxu0 0.0
        %510 = vmatprep.subr.mxu0 0.0
        %511 = vmatpush1.msra.mxu0 0.0
        %512 = vmatprep.subr.mxu0 0.0
        %513 = vmatpush1.msra.mxu0 0.0
        %514 = vmatprep.subr.mxu0 0.0
        %515 = vmatpush1.msra.mxu0 0.0
        %516 = vmatprep.subr.mxu0 0.0
        %517 = vmatpush1.msra.mxu0 0.0
        %518 = vmatprep.subr.mxu0 0.0
        %519 = vmatpush1.msra.mxu0 0.0
        %520 = vmatprep.subr.mxu0 0.0
        %521 = vmatpush1.msra.mxu0 0.0
        %522 = vmatprep.subr.mxu0 0.0
        %523 = vmatpush1.msra.mxu0 0.0
        %524 = vmatprep.subr.mxu0 0.0
        %525 = vmatpush1.msra.mxu0 0.0
        %526 = vmatprep.mubr.f32.mxu0 0.0
        %v527 = vand.u32 %v361, 4294901760
        %528 = vmatmul.mubr.f32.gmra.mrb[0].mxu0 %v527
        %v529 = vpop.f32.mrb[0].mxu0
        %v530 = vadd.f32 %v439, %v529
        %v531 = vpop.f32.mrb[0].mxu0
        %532 = vdwg.mxu0
        %533 = vmatprep.subr.mxu0 0.0
        %v534 = vand.u32 %v348, 4294901760
        %v535 = vsub.f32 %v348, %v534
        %536 = vmatpush1.msra.mxu0 %v535
        %537 = vmatprep.subr.mxu0 0.0
        %v538 = vand.u32 %v349, 4294901760
        %v539 = vsub.f32 %v349, %v538
        %540 = vmatpush1.msra.mxu0 %v539
        %541 = vmatprep.subr.mxu0 0.0
        %v542 = vand.u32 %v350, 4294901760
        %v543 = vsub.f32 %v350, %v542
        %544 = vmatpush1.msra.mxu0 %v543
        %545 = vmatprep.subr.mxu0 0.0
        %v546 = vand.u32 %v351, 4294901760
        %v547 = vsub.f32 %v351, %v546
        %548 = vmatpush1.msra.mxu0 %v547
        %549 = vmatprep.subr.mxu0 0.0
        %550 = vmatpush1.msra.mxu0 0.0
        %551 = vmatprep.subr.mxu0 0.0
        %552 = vmatpush1.msra.mxu0 0.0
        %553 = vmatprep.subr.mxu0 0.0
        %554 = vmatpush1.msra.mxu0 0.0
        %555 = vmatprep.subr.mxu0 0.0
        %556 = vmatpush1.msra.mxu0 0.0
        %557 = vmatprep.subr.mxu0 0.0
        %558 = vmatpush1.msra.mxu0 0.0
        %559 = vmatprep.subr.mxu0 0.0
        %560 = vmatpush1.msra.mxu0 0.0
        %561 = vmatprep.subr.mxu0 0.0
        %562 = vmatpush1.msra.mxu0 0.0
        %563 = vmatprep.subr.mxu0 0.0
        %564 = vmatpush1.msra.mxu0 0.0
        %565 = vmatprep.subr.mxu0 0.0
        %566 = vmatpush1.msra.mxu0 0.0
        %567 = vmatprep.subr.mxu0 0.0
        %568 = vmatpush1.msra.mxu0 0.0
        %569 = vmatprep.subr.mxu0 0.0
        %570 = vmatpush1.msra.mxu0 0.0
        %571 = vmatprep.subr.mxu0 0.0
        %572 = vmatpush1.msra.mxu0 0.0
        %573 = vmatprep.subr.mxu0 0.0
        %574 = vmatpush1.msra.mxu0 0.0
        %575 = vmatprep.subr.mxu0 0.0
        %576 = vmatpush1.msra.mxu0 0.0
        %577 = vmatprep.subr.mxu0 0.0
        %578 = vmatpush1.msra.mxu0 0.0
        %579 = vmatprep.subr.mxu0 0.0
        %580 = vmatpush1.msra.mxu0 0.0
        %581 = vmatprep.subr.mxu0 0.0
        %582 = vmatpush1.msra.mxu0 0.0
        %583 = vmatprep.subr.mxu0 0.0
        %584 = vmatpush1.msra.mxu0 0.0
        %585 = vmatprep.subr.mxu0 0.0
        %586 = vmatpush1.msra.mxu0 0.0
        %587 = vmatprep.subr.mxu0 0.0
        %588 = vmatpush1.msra.mxu0 0.0
        %589 = vmatprep.subr.mxu0 0.0
        %590 = vmatpush1.msra.mxu0 0.0
        %591 = vmatprep.subr.mxu0 0.0
        %592 = vmatpush1.msra.mxu0 0.0
        %593 = vmatprep.subr.mxu0 0.0
        %594 = vmatpush1.msra.mxu0 0.0
        %595 = vmatprep.subr.mxu0 0.0
        %596 = vmatpush1.msra.mxu0 0.0
        %597 = vmatprep.subr.mxu0 0.0
        %598 = vmatpush1.msra.mxu0 0.0
        %599 = vmatprep.subr.mxu0 0.0
        %600 = vmatpush1.msra.mxu0 0.0
        %601 = vmatprep.subr.mxu0 0.0
        %602 = vmatpush1.msra.mxu0 0.0
        %603 = vmatprep.subr.mxu0 0.0
        %604 = vmatpush1.msra.mxu0 0.0
        %605 = vmatprep.mubr.f32.mxu0 0.0
        %v606 = vand.u32 %v361, 4294901760
        %v607 = vsub.f32 %v361, %v606
        %608 = vmatmul.mubr.f32.gmra.mrb[0].mxu0 %v607
        %v609 = vpop.f32.mrb[0].mxu0
        %v610 = vadd.f32 %v530, %v609
        %v611 = vpop.f32.mrb[0].mxu0
        %612 = vdwg.mxu0
        %613 = vmatprep.subr.mxu0 0.0
        %v614 = vand.u32 %v348, 4294901760
        %615 = vmatpush1.msra.mxu0 %v614
        %616 = vmatprep.subr.mxu0 0.0
        %v617 = vand.u32 %v349, 4294901760
        %618 = vmatpush1.msra.mxu0 %v617
        %619 = vmatprep.subr.mxu0 0.0
        %v620 = vand.u32 %v350, 4294901760
        %621 = vmatpush1.msra.mxu0 %v620
        %622 = vmatprep.subr.mxu0 0.0
        %v623 = vand.u32 %v351, 4294901760
        %624 = vmatpush1.msra.mxu0 %v623
        %625 = vmatprep.subr.mxu0 0.0
        %626 = vmatpush1.msra.mxu0 0.0
        %627 = vmatprep.subr.mxu0 0.0
        %628 = vmatpush1.msra.mxu0 0.0
        %629 = vmatprep.subr.mxu0 0.0
        %630 = vmatpush1.msra.mxu0 0.0
        %631 = vmatprep.subr.mxu0 0.0
        %632 = vmatpush1.msra.mxu0 0.0
        %633 = vmatprep.subr.mxu0 0.0
        %634 = vmatpush1.msra.mxu0 0.0
        %635 = vmatprep.subr.mxu0 0.0
        %636 = vmatpush1.msra.mxu0 0.0
        %637 = vmatprep.subr.mxu0 0.0
        %638 = vmatpush1.msra.mxu0 0.0
        %639 = vmatprep.subr.mxu0 0.0
        %640 = vmatpush1.msra.mxu0 0.0
        %641 = vmatprep.subr.mxu0 0.0
        %642 = vmatpush1.msra.mxu0 0.0
        %643 = vmatprep.subr.mxu0 0.0
        %644 = vmatpush1.msra.mxu0 0.0
        %645 = vmatprep.subr.mxu0 0.0
        %646 = vmatpush1.msra.mxu0 0.0
        %647 = vmatprep.subr.mxu0 0.0
        %648 = vmatpush1.msra.mxu0 0.0
        %649 = vmatprep.subr.mxu0 0.0
        %650 = vmatpush1.msra.mxu0 0.0
        %651 = vmatprep.subr.mxu0 0.0
        %652 = vmatpush1.msra.mxu0 0.0
        %653 = vmatprep.subr.mxu0 0.0
        %654 = vmatpush1.msra.mxu0 0.0
        %655 = vmatprep.subr.mxu0 0.0
        %656 = vmatpush1.msra.mxu0 0.0
        %657 = vmatprep.subr.mxu0 0.0
        %658 = vmatpush1.msra.mxu0 0.0
        %659 = vmatprep.subr.mxu0 0.0
        %660 = vmatpush1.msra.mxu0 0.0
        %661 = vmatprep.subr.mxu0 0.0
        %662 = vmatpush1.msra.mxu0 0.0
        %663 = vmatprep.subr.mxu0 0.0
        %664 = vmatpush1.msra.mxu0 0.0
        %665 = vmatprep.subr.mxu0 0.0
        %666 = vmatpush1.msra.mxu0 0.0
        %667 = vmatprep.subr.mxu0 0.0
        %668 = vmatpush1.msra.mxu0 0.0
        %669 = vmatprep.subr.mxu0 0.0
        %670 = vmatpush1.msra.mxu0 0.0
        %671 = vmatprep.subr.mxu0 0.0
        %672 = vmatpush1.msra.mxu0 0.0
        %673 = vmatprep.subr.mxu0 0.0
        %674 = vmatpush1.msra.mxu0 0.0
        %675 = vmatprep.subr.mxu0 0.0
        %676 = vmatpush1.msra.mxu0 0.0
        %677 = vmatprep.subr.mxu0 0.0
        %678 = vmatpush1.msra.mxu0 0.0
        %679 = vmatprep.subr.mxu0 0.0
        %680 = vmatpush1.msra.mxu0 0.0
        %681 = vmatprep.mubr.f32.mxu0 0.0
        %v682 = vand.u32 %v361, 4294901760
        %v683 = vsub.f32 %v361, %v682
        %v684 = vand.u32 %v683, 4294901760
        %685 = vmatmul.mubr.f32.gmra.mrb[0].mxu0 %v684
        %v686 = vpop.f32.mrb[0].mxu0
        %v687 = vadd.f32 %v610, %v686
        %v688 = vpop.f32.mrb[0].mxu0
        %689 = vdwg.mxu0
        %690 = vmatprep.subr.mxu0 0.0
        %v691 = vand.u32 %v348, 4294901760
        %v692 = vsub.f32 %v348, %v691
        %v693 = vand.u32 %v692, 4294901760
        %694 = vmatpush1.msra.mxu0 %v693
        %695 = vmatprep.subr.mxu0 0.0
        %v696 = vand.u32 %v349, 4294901760
        %v697 = vsub.f32 %v349, %v696
        %v698 = vand.u32 %v697, 4294901760
        %699 = vmatpush1.msra.mxu0 %v698
        %700 = vmatprep.subr.mxu0 0.0
        %v701 = vand.u32 %v350, 4294901760
        %v702 = vsub.f32 %v350, %v701
        %v703 = vand.u32 %v702, 4294901760
        %704 = vmatpush1.msra.mxu0 %v703
        %705 = vmatprep.subr.mxu0 0.0
        %v706 = vand.u32 %v351, 4294901760
        %v707 = vsub.f32 %v351, %v706
        %v708 = vand.u32 %v707, 4294901760
        %709 = vmatpush1.msra.mxu0 %v708
        %710 = vmatprep.subr.mxu0 0.0
        %711 = vmatpush1.msra.mxu0 0.0
        %712 = vmatprep.subr.mxu0 0.0
        %713 = vmatpush1.msra.mxu0 0.0
        %714 = vmatprep.subr.mxu0 0.0
        %715 = vmatpush1.msra.mxu0 0.0
        %716 = vmatprep.subr.mxu0 0.0
        %717 = vmatpush1.msra.mxu0 0.0
        %718 = vmatprep.subr.mxu0 0.0
        %719 = vmatpush1.msra.mxu0 0.0
        %720 = vmatprep.subr.mxu0 0.0
        %721 = vmatpush1.msra.mxu0 0.0
        %722 = vmatprep.subr.mxu0 0.0
        %723 = vmatpush1.msra.mxu0 0.0
        %724 = vmatprep.subr.mxu0 0.0
        %725 = vmatpush1.msra.mxu0 0.0
        %726 = vmatprep.subr.mxu0 0.0
        %727 = vmatpush1.msra.mxu0 0.0
        %728 = vmatprep.subr.mxu0 0.0
        %729 = vmatpush1.msra.mxu0 0.0
        %730 = vmatprep.subr.mxu0 0.0
        %731 = vmatpush1.msra.mxu0 0.0
        %732 = vmatprep.subr.mxu0 0.0
        %733 = vmatpush1.msra.mxu0 0.0
        %734 = vmatprep.subr.mxu0 0.0
        %735 = vmatpush1.msra.mxu0 0.0
        %736 = vmatprep.subr.mxu0 0.0
        %737 = vmatpush1.msra.mxu0 0.0
        %738 = vmatprep.subr.mxu0 0.0
        %739 = vmatpush1.msra.mxu0 0.0
        %740 = vmatprep.subr.mxu0 0.0
        %741 = vmatpush1.msra.mxu0 0.0
        %742 = vmatprep.subr.mxu0 0.0
        %743 = vmatpush1.msra.mxu0 0.0
        %744 = vmatprep.subr.mxu0 0.0
        %745 = vmatpush1.msra.mxu0 0.0
        %746 = vmatprep.subr.mxu0 0.0
        %747 = vmatpush1.msra.mxu0 0.0
        %748 = vmatprep.subr.mxu0 0.0
        %749 = vmatpush1.msra.mxu0 0.0
        %750 = vmatprep.subr.mxu0 0.0
        %751 = vmatpush1.msra.mxu0 0.0
        %752 = vmatprep.subr.mxu0 0.0
        %753 = vmatpush1.msra.mxu0 0.0
        %754 = vmatprep.subr.mxu0 0.0
        %755 = vmatpush1.msra.mxu0 0.0
        %756 = vmatprep.subr.mxu0 0.0
        %757 = vmatpush1.msra.mxu0 0.0
        %758 = vmatprep.subr.mxu0 0.0
        %759 = vmatpush1.msra.mxu0 0.0
        %760 = vmatprep.subr.mxu0 0.0
        %761 = vmatpush1.msra.mxu0 0.0
        %762 = vmatprep.subr.mxu0 0.0
        %763 = vmatpush1.msra.mxu0 0.0
        %764 = vmatprep.subr.mxu0 0.0
        %765 = vmatpush1.msra.mxu0 0.0
        %766 = vmatprep.mubr.f32.mxu0 0.0
        %v767 = vand.u32 %v361, 4294901760
        %768 = vmatmul.mubr.f32.gmra.mrb[0].mxu0 %v767
        %v769 = vpop.f32.mrb[0].mxu0
        %v770 = vadd.f32 %v687, %v769
        %v771 = vpop.f32.mrb[0].mxu0
        %772 = vdwg.mxu0
        %773 = vmatprep.subr.mxu0 0.0
        %v774 = vand.u32 %v348, 4294901760
        %775 = vmatpush1.msra.mxu0 %v774
        %776 = vmatprep.subr.mxu0 0.0
        %v777 = vand.u32 %v349, 4294901760
        %778 = vmatpush1.msra.mxu0 %v777
        %779 = vmatprep.subr.mxu0 0.0
        %v780 = vand.u32 %v350, 4294901760
        %781 = vmatpush1.msra.mxu0 %v780
        %782 = vmatprep.subr.mxu0 0.0
        %v783 = vand.u32 %v351, 4294901760
        %784 = vmatpush1.msra.mxu0 %v783
        %785 = vmatprep.subr.mxu0 0.0
        %786 = vmatpush1.msra.mxu0 0.0
        %787 = vmatprep.subr.mxu0 0.0
        %788 = vmatpush1.msra.mxu0 0.0
        %789 = vmatprep.subr.mxu0 0.0
        %790 = vmatpush1.msra.mxu0 0.0
        %791 = vmatprep.subr.mxu0 0.0
        %792 = vmatpush1.msra.mxu0 0.0
        %793 = vmatprep.subr.mxu0 0.0
        %794 = vmatpush1.msra.mxu0 0.0
        %795 = vmatprep.subr.mxu0 0.0
        %796 = vmatpush1.msra.mxu0 0.0
        %797 = vmatprep.subr.mxu0 0.0
        %798 = vmatpush1.msra.mxu0 0.0
        %799 = vmatprep.subr.mxu0 0.0
        %800 = vmatpush1.msra.mxu0 0.0
        %801 = vmatprep.subr.mxu0 0.0
        %802 = vmatpush1.msra.mxu0 0.0
        %803 = vmatprep.subr.mxu0 0.0
        %804 = vmatpush1.msra.mxu0 0.0
        %805 = vmatprep.subr.mxu0 0.0
        %806 = vmatpush1.msra.mxu0 0.0
        %807 = vmatprep.subr.mxu0 0.0
        %808 = vmatpush1.msra.mxu0 0.0
        %809 = vmatprep.subr.mxu0 0.0
        %810 = vmatpush1.msra.mxu0 0.0
        %811 = vmatprep.subr.mxu0 0.0
        %812 = vmatpush1.msra.mxu0 0.0
        %813 = vmatprep.subr.mxu0 0.0
        %814 = vmatpush1.msra.mxu0 0.0
        %815 = vmatprep.subr.mxu0 0.0
        %816 = vmatpush1.msra.mxu0 0.0
        %817 = vmatprep.subr.mxu0 0.0
        %818 = vmatpush1.msra.mxu0 0.0
        %819 = vmatprep.subr.mxu0 0.0
        %820 = vmatpush1.msra.mxu0 0.0
        %821 = vmatprep.subr.mxu0 0.0
        %822 = vmatpush1.msra.mxu0 0.0
        %823 = vmatprep.subr.mxu0 0.0
        %824 = vmatpush1.msra.mxu0 0.0
        %825 = vmatprep.subr.mxu0 0.0
        %826 = vmatpush1.msra.mxu0 0.0
        %827 = vmatprep.subr.mxu0 0.0
        %828 = vmatpush1.msra.mxu0 0.0
        %829 = vmatprep.subr.mxu0 0.0
        %830 = vmatpush1.msra.mxu0 0.0
        %831 = vmatprep.subr.mxu0 0.0
        %832 = vmatpush1.msra.mxu0 0.0
        %833 = vmatprep.subr.mxu0 0.0
        %834 = vmatpush1.msra.mxu0 0.0
        %835 = vmatprep.subr.mxu0 0.0
        %836 = vmatpush1.msra.mxu0 0.0
        %837 = vmatprep.subr.mxu0 0.0
        %838 = vmatpush1.msra.mxu0 0.0
        %839 = vmatprep.subr.mxu0 0.0
        %840 = vmatpush1.msra.mxu0 0.0
        %841 = vmatprep.mubr.f32.mxu0 0.0
        %v842 = vand.u32 %v361, 4294901760
        %843 = vmatmul.mubr.f32.gmra.mrb[0].mxu0 %v842
        %v844 = vpop.f32.mrb[0].mxu0
        %v845 = vadd.f32 %v770, %v844
        %v846 = vpop.f32.mrb[0].mxu0
        %847 = vdwg.mxu0
        %849 = vrot.lane.b32.xlu0 %v845, 120
        %v850 = vpop.permute.xlu0 %849
        %852 = vrot.lane.b32.xlu0 %v845, 112
        %v853 = vpop.permute.xlu0 %852
        %855 = vrot.lane.b32.xlu0 %v845, 104
        %v856 = vpop.permute.xlu0 %855
        %v858 = vcombine.low %v845, %v853
        %v859 = vcombine.high %v845, %v853
        %v861 = vunpack.c.l.s4 1983009808
        %v862 = vunpack.c.0.s8 %v861
        %v863 = vlaneseq
        %v864 = vshrl.u32 %v863, 7
        %v865 = vsub.s32 %v862, %v864
        %v866 = vrot.slane %v858, %v865
        %v868 = vunpack.c.l.s4 1983009808
        %v869 = vunpack.c.0.s8 %v868
        %v870 = vlaneseq
        %v871 = vshrl.u32 %v870, 7
        %v872 = vsub.s32 %v869, %v871
        %v873 = vrot.slane %v859, %v872
        %v874 = vcombine.low %v850, %v856
        %v875 = vcombine.high %v850, %v856
        %v877 = vunpack.c.l.s4 1983009808
        %v878 = vunpack.c.0.s8 %v877
        %v879 = vlaneseq
        %v880 = vshrl.u32 %v879, 7
        %v881 = vsub.s32 %v878, %v880
        %v882 = vrot.slane %v874, %v881
        %v884 = vunpack.c.l.s4 1983009808
        %v885 = vunpack.c.0.s8 %v884
        %v886 = vlaneseq
        %v887 = vshrl.u32 %v886, 7
        %v888 = vsub.s32 %v885, %v887
        %v889 = vrot.slane %v875, %v888
        %v890 = vcombine.low %v866, %v882
        %v891 = vcombine.high %v866, %v882
        %v893 = vunpack.c.l.s4 1934713408
        %v894 = vunpack.c.0.s8 %v893
        %v895 = vlaneseq
        %v896 = vshrl.u32 %v895, 7
        %v897 = vsub.s32 %v894, %v896
        %v898 = vrot.slane %v890, %v897
        %v900 = vunpack.c.l.s4 1934713408
        %v901 = vunpack.c.0.s8 %v900
        %v902 = vlaneseq
        %v903 = vshrl.u32 %v902, 7
        %v904 = vsub.s32 %v901, %v903
        %v905 = vrot.slane %v891, %v904
        %v906 = vcombine.low %v873, %v889
        %v907 = vcombine.high %v873, %v889
        %v909 = vunpack.c.l.s4 1934713408
        %v910 = vunpack.c.0.s8 %v909
        %v911 = vlaneseq
        %v912 = vshrl.u32 %v911, 7
        %v913 = vsub.s32 %v910, %v912
        %v914 = vrot.slane %v906, %v913
        %v916 = vunpack.c.l.s4 1934713408
        %v917 = vunpack.c.0.s8 %v916
        %v918 = vlaneseq
        %v919 = vshrl.u32 %v918, 7
        %v920 = vsub.s32 %v917, %v919
        %v921 = vrot.slane %v907, %v920
        %v922 = vcombine.high %v898, 0.0
        %v923 = vcombine.high %v905, 0.0
        %v924 = vcombine.high %v914, 0.0
        %v925 = vcombine.high %v921, 0.0
        %v926 = vcombine.low %v898, %v905
        %v928 = vunpack.c.l.s4 1983009808
        %v929 = vunpack.c.0.s8 %v928
        %v930 = vlaneseq
        %v931 = vshrl.u32 %v930, 7
        %v932 = vsub.s32 %v929, %v931
        %v933 = vrot.slane %v926, %v932
        %v934 = vcombine.low %v922, %v923
        %v936 = vunpack.c.l.s4 1983009808
        %v937 = vunpack.c.0.s8 %v936
        %v938 = vlaneseq
        %v939 = vshrl.u32 %v938, 7
        %v940 = vsub.s32 %v937, %v939
        %v941 = vrot.slane %v934, %v940
        %v942 = vcombine.low %v914, %v921
        %v944 = vunpack.c.l.s4 1983009808
        %v945 = vunpack.c.0.s8 %v944
        %v946 = vlaneseq
        %v947 = vshrl.u32 %v946, 7
        %v948 = vsub.s32 %v945, %v947
        %v949 = vrot.slane %v942, %v948
        %v950 = vcombine.low %v924, %v925
        %v952 = vunpack.c.l.s4 1983009808
        %v953 = vunpack.c.0.s8 %v952
        %v954 = vlaneseq
        %v955 = vshrl.u32 %v954, 7
        %v956 = vsub.s32 %v953, %v955
        %v957 = vrot.slane %v950, %v956
        %v958 = vcombine.low %v933, %v941
        %v959 = vcombine.high %v933, %v941
        %v961 = vunpack.c.l.s4 1934713408
        %v962 = vunpack.c.0.s8 %v961
        %v963 = vlaneseq
        %v964 = vshrl.u32 %v963, 7
        %v965 = vsub.s32 %v962, %v964
        %v966 = vrot.slane %v958, %v965
        %v968 = vunpack.c.l.s4 1934713408
        %v969 = vunpack.c.0.s8 %v968
        %v970 = vlaneseq
        %v971 = vshrl.u32 %v970, 7
        %v972 = vsub.s32 %v969, %v971
        %v973 = vrot.slane %v959, %v972
        %v974 = vcombine.low %v949, %v957
        %v975 = vcombine.high %v949, %v957
        %v977 = vunpack.c.l.s4 1934713408
        %v978 = vunpack.c.0.s8 %v977
        %v979 = vlaneseq
        %v980 = vshrl.u32 %v979, 7
        %v981 = vsub.s32 %v978, %v980
        %v982 = vrot.slane %v974, %v981
        %v984 = vunpack.c.l.s4 1934713408
        %v985 = vunpack.c.0.s8 %v984
        %v986 = vlaneseq
        %v987 = vshrl.u32 %v986, 7
        %v988 = vsub.s32 %v985, %v987
        %v989 = vrot.slane %v975, %v988
        %v990 = vcombine.low %v966, %v982
        %v991 = vcombine.high %v966, %v982
        %v992 = vcombine.low %v973, %v989
        %v993 = vcombine.high %v973, %v989
        %vm994 = vcmask 64512
        %v996 = vsel %vm994, %v990, 0
        %v999 = vsel %vm994, %v340, 0
        %1001 = vmatprep.subr.mxu0 0.0
        %v1002 = vand.u32 %v999, 4294901760
        %1003 = vmatpush1.xpose.msra.mxu0 %v1002
        %1004 = vmatprep.subr.mxu0 0.0
        %1005 = vmatpush1.xpose.msra.mxu0 0.0
        %1006 = vmatprep.subr.mxu0 0.0
        %1007 = vmatpush1.xpose.msra.mxu0 0.0
        %1008 = vmatprep.subr.mxu0 0.0
        %1009 = vmatpush1.xpose.msra.mxu0 0.0
        %1010 = vmatprep.subr.mxu0 0.0
        %1011 = vmatpush1.xpose.msra.mxu0 0.0
        %1012 = vmatprep.subr.mxu0 0.0
        %1013 = vmatpush1.xpose.msra.mxu0 0.0
        %1014 = vmatprep.subr.mxu0 0.0
        %1015 = vmatpush1.xpose.msra.mxu0 0.0
        %1016 = vmatprep.subr.mxu0 0.0
        %1017 = vmatpush1.xpose.msra.mxu0 0.0
        %1018 = vmatprep.subr.mxu0 0.0
        %1019 = vmatpush1.xpose.msra.mxu0 0.0
        %1020 = vmatprep.subr.mxu0 0.0
        %1021 = vmatpush1.xpose.msra.mxu0 0.0
        %1022 = vmatprep.subr.mxu0 0.0
        %1023 = vmatpush1.xpose.msra.mxu0 0.0
        %1024 = vmatprep.subr.mxu0 0.0
        %1025 = vmatpush1.xpose.msra.mxu0 0.0
        %1026 = vmatprep.subr.mxu0 0.0
        %1027 = vmatpush1.xpose.msra.mxu0 0.0
        %1028 = vmatprep.subr.mxu0 0.0
        %1029 = vmatpush1.xpose.msra.mxu0 0.0
        %1030 = vmatprep.subr.mxu0 0.0
        %1031 = vmatpush1.xpose.msra.mxu0 0.0
        %1032 = vmatprep.subr.mxu0 0.0
        %1033 = vmatpush1.xpose.msra.mxu0 0.0
        %1034 = vmatprep.subr.mxu0 0.0
        %1035 = vmatpush1.xpose.msra.mxu0 0.0
        %1036 = vmatprep.subr.mxu0 0.0
        %1037 = vmatpush1.xpose.msra.mxu0 0.0
        %1038 = vmatprep.subr.mxu0 0.0
        %1039 = vmatpush1.xpose.msra.mxu0 0.0
        %1040 = vmatprep.subr.mxu0 0.0
        %1041 = vmatpush1.xpose.msra.mxu0 0.0
        %1042 = vmatprep.subr.mxu0 0.0
        %1043 = vmatpush1.xpose.msra.mxu0 0.0
        %1044 = vmatprep.subr.mxu0 0.0
        %1045 = vmatpush1.xpose.msra.mxu0 0.0
        %1046 = vmatprep.subr.mxu0 0.0
        %1047 = vmatpush1.xpose.msra.mxu0 0.0
        %1048 = vmatprep.subr.mxu0 0.0
        %1049 = vmatpush1.xpose.msra.mxu0 0.0
        %1050 = vmatprep.subr.mxu0 0.0
        %1051 = vmatpush1.xpose.msra.mxu0 0.0
        %1052 = vmatprep.subr.mxu0 0.0
        %1053 = vmatpush1.xpose.msra.mxu0 0.0
        %1054 = vmatprep.subr.mxu0 0.0
        %1055 = vmatpush1.xpose.msra.mxu0 0.0
        %1056 = vmatprep.subr.mxu0 0.0
        %1057 = vmatpush1.xpose.msra.mxu0 0.0
        %1058 = vmatprep.subr.mxu0 0.0
        %1059 = vmatpush1.xpose.msra.mxu0 0.0
        %1060 = vmatprep.subr.mxu0 0.0
        %1061 = vmatpush1.xpose.msra.mxu0 0.0
        %1062 = vmatprep.subr.mxu0 0.0
        %1063 = vmatpush1.xpose.msra.mxu0 0.0
        %1064 = vmatprep.subr.mxu0 0.0
        %1065 = vmatpush1.xpose.msra.mxu0 0.0
        %1066 = vmatprep.mubr.f32.mxu0 0.0
        %v1067 = vand.u32 %v996, 4294901760
        %v1068 = vsub.f32 %v996, %v1067
        %v1069 = vand.u32 %v1068, 4294901760
        %v1070 = vsub.f32 %v1068, %v1069
        %v1071 = vand.u32 %v1070, 4294901760
        %1072 = vmatmul.mubr.f32.gmra.mrb[0].mxu0 %v1071
        %v1073 = vpop.f32.mrb[0].mxu0
        %v1074 = vadd.f32 0.0, %v1073
        %v1075 = vpop.f32.mrb[0].mxu0
        %1076 = vdwg.mxu0
        %1077 = vmatprep.subr.mxu0 0.0
        %v1078 = vand.u32 %v999, 4294901760
        %v1079 = vsub.f32 %v999, %v1078
        %v1080 = vand.u32 %v1079, 4294901760
        %v1081 = vsub.f32 %v1079, %v1080
        %v1082 = vand.u32 %v1081, 4294901760
        %1083 = vmatpush1.xpose.msra.mxu0 %v1082
        %1084 = vmatprep.subr.mxu0 0.0
        %1085 = vmatpush1.xpose.msra.mxu0 0.0
        %1086 = vmatprep.subr.mxu0 0.0
        %1087 = vmatpush1.xpose.msra.mxu0 0.0
        %1088 = vmatprep.subr.mxu0 0.0
        %1089 = vmatpush1.xpose.msra.mxu0 0.0
        %1090 = vmatprep.subr.mxu0 0.0
        %1091 = vmatpush1.xpose.msra.mxu0 0.0
        %1092 = vmatprep.subr.mxu0 0.0
        %1093 = vmatpush1.xpose.msra.mxu0 0.0
        %1094 = vmatprep.subr.mxu0 0.0
        %1095 = vmatpush1.xpose.msra.mxu0 0.0
        %1096 = vmatprep.subr.mxu0 0.0
        %1097 = vmatpush1.xpose.msra.mxu0 0.0
        %1098 = vmatprep.subr.mxu0 0.0
        %1099 = vmatpush1.xpose.msra.mxu0 0.0
        %1100 = vmatprep.subr.mxu0 0.0
        %1101 = vmatpush1.xpose.msra.mxu0 0.0
        %1102 = vmatprep.subr.mxu0 0.0
        %1103 = vmatpush1.xpose.msra.mxu0 0.0
        %1104 = vmatprep.subr.mxu0 0.0
        %1105 = vmatpush1.xpose.msra.mxu0 0.0
        %1106 = vmatprep.subr.mxu0 0.0
        %1107 = vmatpush1.xpose.msra.mxu0 0.0
        %1108 = vmatprep.subr.mxu0 0.0
        %1109 = vmatpush1.xpose.msra.mxu0 0.0
        %1110 = vmatprep.subr.mxu0 0.0
        %1111 = vmatpush1.xpose.msra.mxu0 0.0
        %1112 = vmatprep.subr.mxu0 0.0
        %1113 = vmatpush1.xpose.msra.mxu0 0.0
        %1114 = vmatprep.subr.mxu0 0.0
        %1115 = vmatpush1.xpose.msra.mxu0 0.0
        %1116 = vmatprep.subr.mxu0 0.0
        %1117 = vmatpush1.xpose.msra.mxu0 0.0
        %1118 = vmatprep.subr.mxu0 0.0
        %1119 = vmatpush1.xpose.msra.mxu0 0.0
        %1120 = vmatprep.subr.mxu0 0.0
        %1121 = vmatpush1.xpose.msra.mxu0 0.0
        %1122 = vmatprep.subr.mxu0 0.0
        %1123 = vmatpush1.xpose.msra.mxu0 0.0
        %1124 = vmatprep.subr.mxu0 0.0
        %1125 = vmatpush1.xpose.msra.mxu0 0.0
        %1126 = vmatprep.subr.mxu0 0.0
        %1127 = vmatpush1.xpose.msra.mxu0 0.0
        %1128 = vmatprep.subr.mxu0 0.0
        %1129 = vmatpush1.xpose.msra.mxu0 0.0
        %1130 = vmatprep.subr.mxu0 0.0
        %1131 = vmatpush1.xpose.msra.mxu0 0.0
        %1132 = vmatprep.subr.mxu0 0.0
        %1133 = vmatpush1.xpose.msra.mxu0 0.0
        %1134 = vmatprep.subr.mxu0 0.0
        %1135 = vmatpush1.xpose.msra.mxu0 0.0
        %1136 = vmatprep.subr.mxu0 0.0
        %1137 = vmatpush1.xpose.msra.mxu0 0.0
        %1138 = vmatprep.subr.mxu0 0.0
        %1139 = vmatpush1.xpose.msra.mxu0 0.0
        %1140 = vmatprep.subr.mxu0 0.0
        %1141 = vmatpush1.xpose.msra.mxu0 0.0
        %1142 = vmatprep.subr.mxu0 0.0
        %1143 = vmatpush1.xpose.msra.mxu0 0.0
        %1144 = vmatprep.subr.mxu0 0.0
        %1145 = vmatpush1.xpose.msra.mxu0 0.0
        %1146 = vmatprep.mubr.f32.mxu0 0.0
        %v1147 = vand.u32 %v996, 4294901760
        %1148 = vmatmul.mubr.f32.gmra.mrb[0].mxu0 %v1147
        %v1149 = vpop.f32.mrb[0].mxu0
        %v1150 = vadd.f32 %v1074, %v1149
        %v1151 = vpop.f32.mrb[0].mxu0
        %1152 = vdwg.mxu0
        %1153 = vmatprep.subr.mxu0 0.0
        %v1154 = vand.u32 %v999, 4294901760
        %v1155 = vsub.f32 %v999, %v1154
        %1156 = vmatpush1.xpose.msra.mxu0 %v1155
        %1157 = vmatprep.subr.mxu0 0.0
        %1158 = vmatpush1.xpose.msra.mxu0 0.0
        %1159 = vmatprep.subr.mxu0 0.0
        %1160 = vmatpush1.xpose.msra.mxu0 0.0
        %1161 = vmatprep.subr.mxu0 0.0
        %1162 = vmatpush1.xpose.msra.mxu0 0.0
        %1163 = vmatprep.subr.mxu0 0.0
        %1164 = vmatpush1.xpose.msra.mxu0 0.0
        %1165 = vmatprep.subr.mxu0 0.0
        %1166 = vmatpush1.xpose.msra.mxu0 0.0
        %1167 = vmatprep.subr.mxu0 0.0
        %1168 = vmatpush1.xpose.msra.mxu0 0.0
        %1169 = vmatprep.subr.mxu0 0.0
        %1170 = vmatpush1.xpose.msra.mxu0 0.0
        %1171 = vmatprep.subr.mxu0 0.0
        %1172 = vmatpush1.xpose.msra.mxu0 0.0
        %1173 = vmatprep.subr.mxu0 0.0
        %1174 = vmatpush1.xpose.msra.mxu0 0.0
        %1175 = vmatprep.subr.mxu0 0.0
        %1176 = vmatpush1.xpose.msra.mxu0 0.0
        %1177 = vmatprep.subr.mxu0 0.0
        %1178 = vmatpush1.xpose.msra.mxu0 0.0
        %1179 = vmatprep.subr.mxu0 0.0
        %1180 = vmatpush1.xpose.msra.mxu0 0.0
        %1181 = vmatprep.subr.mxu0 0.0
        %1182 = vmatpush1.xpose.msra.mxu0 0.0
        %1183 = vmatprep.subr.mxu0 0.0
        %1184 = vmatpush1.xpose.msra.mxu0 0.0
        %1185 = vmatprep.subr.mxu0 0.0
        %1186 = vmatpush1.xpose.msra.mxu0 0.0
        %1187 = vmatprep.subr.mxu0 0.0
        %1188 = vmatpush1.xpose.msra.mxu0 0.0
        %1189 = vmatprep.subr.mxu0 0.0
        %1190 = vmatpush1.xpose.msra.mxu0 0.0
        %1191 = vmatprep.subr.mxu0 0.0
        %1192 = vmatpush1.xpose.msra.mxu0 0.0
        %1193 = vmatprep.subr.mxu0 0.0
        %1194 = vmatpush1.xpose.msra.mxu0 0.0
        %1195 = vmatprep.subr.mxu0 0.0
        %1196 = vmatpush1.xpose.msra.mxu0 0.0
        %1197 = vmatprep.subr.mxu0 0.0
        %1198 = vmatpush1.xpose.msra.mxu0 0.0
        %1199 = vmatprep.subr.mxu0 0.0
        %1200 = vmatpush1.xpose.msra.mxu0 0.0
        %1201 = vmatprep.subr.mxu0 0.0
        %1202 = vmatpush1.xpose.msra.mxu0 0.0
        %1203 = vmatprep.subr.mxu0 0.0
        %1204 = vmatpush1.xpose.msra.mxu0 0.0
        %1205 = vmatprep.subr.mxu0 0.0
        %1206 = vmatpush1.xpose.msra.mxu0 0.0
        %1207 = vmatprep.subr.mxu0 0.0
        %1208 = vmatpush1.xpose.msra.mxu0 0.0
        %1209 = vmatprep.subr.mxu0 0.0
        %1210 = vmatpush1.xpose.msra.mxu0 0.0
        %1211 = vmatprep.subr.mxu0 0.0
        %1212 = vmatpush1.xpose.msra.mxu0 0.0
        %1213 = vmatprep.subr.mxu0 0.0
        %1214 = vmatpush1.xpose.msra.mxu0 0.0
        %1215 = vmatprep.subr.mxu0 0.0
        %1216 = vmatpush1.xpose.msra.mxu0 0.0
        %1217 = vmatprep.subr.mxu0 0.0
        %1218 = vmatpush1.xpose.msra.mxu0 0.0
        %1219 = vmatprep.mubr.f32.mxu0 0.0
        %v1220 = vand.u32 %v996, 4294901760
        %v1221 = vsub.f32 %v996, %v1220
        %1222 = vmatmul.mubr.f32.gmra.mrb[0].mxu0 %v1221
        %v1223 = vpop.f32.mrb[0].mxu0
        %v1224 = vadd.f32 %v1150, %v1223
        %v1225 = vpop.f32.mrb[0].mxu0
        %1226 = vdwg.mxu0
        %1227 = vmatprep.subr.mxu0 0.0
        %v1228 = vand.u32 %v999, 4294901760
        %1229 = vmatpush1.xpose.msra.mxu0 %v1228
        %1230 = vmatprep.subr.mxu0 0.0
        %1231 = vmatpush1.xpose.msra.mxu0 0.0
        %1232 = vmatprep.subr.mxu0 0.0
        %1233 = vmatpush1.xpose.msra.mxu0 0.0
        %1234 = vmatprep.subr.mxu0 0.0
        %1235 = vmatpush1.xpose.msra.mxu0 0.0
        %1236 = vmatprep.subr.mxu0 0.0
        %1237 = vmatpush1.xpose.msra.mxu0 0.0
        %1238 = vmatprep.subr.mxu0 0.0
        %1239 = vmatpush1.xpose.msra.mxu0 0.0
        %1240 = vmatprep.subr.mxu0 0.0
        %1241 = vmatpush1.xpose.msra.mxu0 0.0
        %1242 = vmatprep.subr.mxu0 0.0
        %1243 = vmatpush1.xpose.msra.mxu0 0.0
        %1244 = vmatprep.subr.mxu0 0.0
        %1245 = vmatpush1.xpose.msra.mxu0 0.0
        %1246 = vmatprep.subr.mxu0 0.0
        %1247 = vmatpush1.xpose.msra.mxu0 0.0
        %1248 = vmatprep.subr.mxu0 0.0
        %1249 = vmatpush1.xpose.msra.mxu0 0.0
        %1250 = vmatprep.subr.mxu0 0.0
        %1251 = vmatpush1.xpose.msra.mxu0 0.0
        %1252 = vmatprep.subr.mxu0 0.0
        %1253 = vmatpush1.xpose.msra.mxu0 0.0
        %1254 = vmatprep.subr.mxu0 0.0
        %1255 = vmatpush1.xpose.msra.mxu0 0.0
        %1256 = vmatprep.subr.mxu0 0.0
        %1257 = vmatpush1.xpose.msra.mxu0 0.0
        %1258 = vmatprep.subr.mxu0 0.0
        %1259 = vmatpush1.xpose.msra.mxu0 0.0
        %1260 = vmatprep.subr.mxu0 0.0
        %1261 = vmatpush1.xpose.msra.mxu0 0.0
        %1262 = vmatprep.subr.mxu0 0.0
        %1263 = vmatpush1.xpose.msra.mxu0 0.0
        %1264 = vmatprep.subr.mxu0 0.0
        %1265 = vmatpush1.xpose.msra.mxu0 0.0
        %1266 = vmatprep.subr.mxu0 0.0
        %1267 = vmatpush1.xpose.msra.mxu0 0.0
        %1268 = vmatprep.subr.mxu0 0.0
        %1269 = vmatpush1.xpose.msra.mxu0 0.0
        %1270 = vmatprep.subr.mxu0 0.0
        %1271 = vmatpush1.xpose.msra.mxu0 0.0
        %1272 = vmatprep.subr.mxu0 0.0
        %1273 = vmatpush1.xpose.msra.mxu0 0.0
        %1274 = vmatprep.subr.mxu0 0.0
        %1275 = vmatpush1.xpose.msra.mxu0 0.0
        %1276 = vmatprep.subr.mxu0 0.0
        %1277 = vmatpush1.xpose.msra.mxu0 0.0
        %1278 = vmatprep.subr.mxu0 0.0
        %1279 = vmatpush1.xpose.msra.mxu0 0.0
        %1280 = vmatprep.subr.mxu0 0.0
        %1281 = vmatpush1.xpose.msra.mxu0 0.0
        %1282 = vmatprep.subr.mxu0 0.0
        %1283 = vmatpush1.xpose.msra.mxu0 0.0
        %1284 = vmatprep.subr.mxu0 0.0
        %1285 = vmatpush1.xpose.msra.mxu0 0.0
        %1286 = vmatprep.subr.mxu0 0.0
        %1287 = vmatpush1.xpose.msra.mxu0 0.0
        %1288 = vmatprep.subr.mxu0 0.0
        %1289 = vmatpush1.xpose.msra.mxu0 0.0
        %1290 = vmatprep.subr.mxu0 0.0
        %1291 = vmatpush1.xpose.msra.mxu0 0.0
        %1292 = vmatprep.mubr.f32.mxu0 0.0
        %v1293 = vand.u32 %v996, 4294901760
        %v1294 = vsub.f32 %v996, %v1293
        %v1295 = vand.u32 %v1294, 4294901760
        %1296 = vmatmul.mubr.f32.gmra.mrb[0].mxu0 %v1295
        %v1297 = vpop.f32.mrb[0].mxu0
        %v1298 = vadd.f32 %v1224, %v1297
        %v1299 = vpop.f32.mrb[0].mxu0
        %1300 = vdwg.mxu0
        %1301 = vmatprep.subr.mxu0 0.0
        %v1302 = vand.u32 %v999, 4294901760
        %v1303 = vsub.f32 %v999, %v1302
        %v1304 = vand.u32 %v1303, 4294901760
        %1305 = vmatpush1.xpose.msra.mxu0 %v1304
        %1306 = vmatprep.subr.mxu0 0.0
        %1307 = vmatpush1.xpose.msra.mxu0 0.0
        %1308 = vmatprep.subr.mxu0 0.0
        %1309 = vmatpush1.xpose.msra.mxu0 0.0
        %1310 = vmatprep.subr.mxu0 0.0
        %1311 = vmatpush1.xpose.msra.mxu0 0.0
        %1312 = vmatprep.subr.mxu0 0.0
        %1313 = vmatpush1.xpose.msra.mxu0 0.0
        %1314 = vmatprep.subr.mxu0 0.0
        %1315 = vmatpush1.xpose.msra.mxu0 0.0
        %1316 = vmatprep.subr.mxu0 0.0
        %1317 = vmatpush1.xpose.msra.mxu0 0.0
        %1318 = vmatprep.subr.mxu0 0.0
        %1319 = vmatpush1.xpose.msra.mxu0 0.0
        %1320 = vmatprep.subr.mxu0 0.0
        %1321 = vmatpush1.xpose.msra.mxu0 0.0
        %1322 = vmatprep.subr.mxu0 0.0
        %1323 = vmatpush1.xpose.msra.mxu0 0.0
        %1324 = vmatprep.subr.mxu0 0.0
        %1325 = vmatpush1.xpose.msra.mxu0 0.0
        %1326 = vmatprep.subr.mxu0 0.0
        %1327 = vmatpush1.xpose.msra.mxu0 0.0
        %1328 = vmatprep.subr.mxu0 0.0
        %1329 = vmatpush1.xpose.msra.mxu0 0.0
        %1330 = vmatprep.subr.mxu0 0.0
        %1331 = vmatpush1.xpose.msra.mxu0 0.0
        %1332 = vmatprep.subr.mxu0 0.0
        %1333 = vmatpush1.xpose.msra.mxu0 0.0
        %1334 = vmatprep.subr.mxu0 0.0
        %1335 = vmatpush1.xpose.msra.mxu0 0.0
        %1336 = vmatprep.subr.mxu0 0.0
        %1337 = vmatpush1.xpose.msra.mxu0 0.0
        %1338 = vmatprep.subr.mxu0 0.0
        %1339 = vmatpush1.xpose.msra.mxu0 0.0
        %1340 = vmatprep.subr.mxu0 0.0
        %1341 = vmatpush1.xpose.msra.mxu0 0.0
        %1342 = vmatprep.subr.mxu0 0.0
        %1343 = vmatpush1.xpose.msra.mxu0 0.0
        %1344 = vmatprep.subr.mxu0 0.0
        %1345 = vmatpush1.xpose.msra.mxu0 0.0
        %1346 = vmatprep.subr.mxu0 0.0
        %1347 = vmatpush1.xpose.msra.mxu0 0.0
        %1348 = vmatprep.subr.mxu0 0.0
        %1349 = vmatpush1.xpose.msra.mxu0 0.0
        %1350 = vmatprep.subr.mxu0 0.0
        %1351 = vmatpush1.xpose.msra.mxu0 0.0
        %1352 = vmatprep.subr.mxu0 0.0
        %1353 = vmatpush1.xpose.msra.mxu0 0.0
        %1354 = vmatprep.subr.mxu0 0.0
        %1355 = vmatpush1.xpose.msra.mxu0 0.0
        %1356 = vmatprep.subr.mxu0 0.0
        %1357 = vmatpush1.xpose.msra.mxu0 0.0
        %1358 = vmatprep.subr.mxu0 0.0
        %1359 = vmatpush1.xpose.msra.mxu0 0.0
        %1360 = vmatprep.subr.mxu0 0.0
        %1361 = vmatpush1.xpose.msra.mxu0 0.0
        %1362 = vmatprep.subr.mxu0 0.0
        %1363 = vmatpush1.xpose.msra.mxu0 0.0
        %1364 = vmatprep.subr.mxu0 0.0
        %1365 = vmatpush1.xpose.msra.mxu0 0.0
        %1366 = vmatprep.subr.mxu0 0.0
        %1367 = vmatpush1.xpose.msra.mxu0 0.0
        %1368 = vmatprep.mubr.f32.mxu0 0.0
        %v1369 = vand.u32 %v996, 4294901760
        %1370 = vmatmul.mubr.f32.gmra.mrb[0].mxu0 %v1369
        %v1371 = vpop.f32.mrb[0].mxu0
        %v1372 = vadd.f32 %v1298, %v1371
        %v1373 = vpop.f32.mrb[0].mxu0
        %1374 = vdwg.mxu0
        %1375 = vmatprep.subr.mxu0 0.0
        %v1376 = vand.u32 %v999, 4294901760
        %1377 = vmatpush1.xpose.msra.mxu0 %v1376
        %1378 = vmatprep.subr.mxu0 0.0
        %1379 = vmatpush1.xpose.msra.mxu0 0.0
        %1380 = vmatprep.subr.mxu0 0.0
        %1381 = vmatpush1.xpose.msra.mxu0 0.0
        %1382 = vmatprep.subr.mxu0 0.0
        %1383 = vmatpush1.xpose.msra.mxu0 0.0
        %1384 = vmatprep.subr.mxu0 0.0
        %1385 = vmatpush1.xpose.msra.mxu0 0.0
        %1386 = vmatprep.subr.mxu0 0.0
        %1387 = vmatpush1.xpose.msra.mxu0 0.0
        %1388 = vmatprep.subr.mxu0 0.0
        %1389 = vmatpush1.xpose.msra.mxu0 0.0
        %1390 = vmatprep.subr.mxu0 0.0
        %1391 = vmatpush1.xpose.msra.mxu0 0.0
        %1392 = vmatprep.subr.mxu0 0.0
        %1393 = vmatpush1.xpose.msra.mxu0 0.0
        %1394 = vmatprep.subr.mxu0 0.0
        %1395 = vmatpush1.xpose.msra.mxu0 0.0
        %1396 = vmatprep.subr.mxu0 0.0
        %1397 = vmatpush1.xpose.msra.mxu0 0.0
        %1398 = vmatprep.subr.mxu0 0.0
        %1399 = vmatpush1.xpose.msra.mxu0 0.0
        %1400 = vmatprep.subr.mxu0 0.0
        %1401 = vmatpush1.xpose.msra.mxu0 0.0
        %1402 = vmatprep.subr.mxu0 0.0
        %1403 = vmatpush1.xpose.msra.mxu0 0.0
        %1404 = vmatprep.subr.mxu0 0.0
        %1405 = vmatpush1.xpose.msra.mxu0 0.0
        %1406 = vmatprep.subr.mxu0 0.0
        %1407 = vmatpush1.xpose.msra.mxu0 0.0
        %1408 = vmatprep.subr.mxu0 0.0
        %1409 = vmatpush1.xpose.msra.mxu0 0.0
        %1410 = vmatprep.subr.mxu0 0.0
        %1411 = vmatpush1.xpose.msra.mxu0 0.0
        %1412 = vmatprep.subr.mxu0 0.0
        %1413 = vmatpush1.xpose.msra.mxu0 0.0
        %1414 = vmatprep.subr.mxu0 0.0
        %1415 = vmatpush1.xpose.msra.mxu0 0.0
        %1416 = vmatprep.subr.mxu0 0.0
        %1417 = vmatpush1.xpose.msra.mxu0 0.0
        %1418 = vmatprep.subr.mxu0 0.0
        %1419 = vmatpush1.xpose.msra.mxu0 0.0
        %1420 = vmatprep.subr.mxu0 0.0
        %1421 = vmatpush1.xpose.msra.mxu0 0.0
        %1422 = vmatprep.subr.mxu0 0.0
        %1423 = vmatpush1.xpose.msra.mxu0 0.0
        %1424 = vmatprep.subr.mxu0 0.0
        %1425 = vmatpush1.xpose.msra.mxu0 0.0
        %1426 = vmatprep.subr.mxu0 0.0
        %1427 = vmatpush1.xpose.msra.mxu0 0.0
        %1428 = vmatprep.subr.mxu0 0.0
        %1429 = vmatpush1.xpose.msra.mxu0 0.0
        %1430 = vmatprep.subr.mxu0 0.0
        %1431 = vmatpush1.xpose.msra.mxu0 0.0
        %1432 = vmatprep.subr.mxu0 0.0
        %1433 = vmatpush1.xpose.msra.mxu0 0.0
        %1434 = vmatprep.subr.mxu0 0.0
        %1435 = vmatpush1.xpose.msra.mxu0 0.0
        %1436 = vmatprep.subr.mxu0 0.0
        %1437 = vmatpush1.xpose.msra.mxu0 0.0
        %1438 = vmatprep.subr.mxu0 0.0
        %1439 = vmatpush1.xpose.msra.mxu0 0.0
        %1440 = vmatprep.mubr.f32.mxu0 0.0
        %v1441 = vand.u32 %v996, 4294901760
        %1442 = vmatmul.mubr.f32.gmra.mrb[0].mxu0 %v1441
        %v1443 = vpop.f32.mrb[0].mxu0
        %v1444 = vadd.f32 %v1372, %v1443
        %v1445 = vpop.f32.mrb[0].mxu0
        %1446 = vdwg.mxu0
        %v1448 = vsel %vm994, %v991, 0
        %v1451 = vsel %vm994, %v341, 0
        %1453 = vmatprep.subr.mxu0 0.0
        %v1454 = vand.u32 %v1451, 4294901760
        %1455 = vmatpush1.xpose.msra.mxu0 %v1454
        %1456 = vmatprep.subr.mxu0 0.0
        %1457 = vmatpush1.xpose.msra.mxu0 0.0
        %1458 = vmatprep.subr.mxu0 0.0
        %1459 = vmatpush1.xpose.msra.mxu0 0.0
        %1460 = vmatprep.subr.mxu0 0.0
        %1461 = vmatpush1.xpose.msra.mxu0 0.0
        %1462 = vmatprep.subr.mxu0 0.0
        %1463 = vmatpush1.xpose.msra.mxu0 0.0
        %1464 = vmatprep.subr.mxu0 0.0
        %1465 = vmatpush1.xpose.msra.mxu0 0.0
        %1466 = vmatprep.subr.mxu0 0.0
        %1467 = vmatpush1.xpose.msra.mxu0 0.0
        %1468 = vmatprep.subr.mxu0 0.0
        %1469 = vmatpush1.xpose.msra.mxu0 0.0
        %1470 = vmatprep.subr.mxu0 0.0
        %1471 = vmatpush1.xpose.msra.mxu0 0.0
        %1472 = vmatprep.subr.mxu0 0.0
        %1473 = vmatpush1.xpose.msra.mxu0 0.0
        %1474 = vmatprep.subr.mxu0 0.0
        %1475 = vmatpush1.xpose.msra.mxu0 0.0
        %1476 = vmatprep.subr.mxu0 0.0
        %1477 = vmatpush1.xpose.msra.mxu0 0.0
        %1478 = vmatprep.subr.mxu0 0.0
        %1479 = vmatpush1.xpose.msra.mxu0 0.0
        %1480 = vmatprep.subr.mxu0 0.0
        %1481 = vmatpush1.xpose.msra.mxu0 0.0
        %1482 = vmatprep.subr.mxu0 0.0
        %1483 = vmatpush1.xpose.msra.mxu0 0.0
        %1484 = vmatprep.subr.mxu0 0.0
        %1485 = vmatpush1.xpose.msra.mxu0 0.0
        %1486 = vmatprep.subr.mxu0 0.0
        %1487 = vmatpush1.xpose.msra.mxu0 0.0
        %1488 = vmatprep.subr.mxu0 0.0
        %1489 = vmatpush1.xpose.msra.mxu0 0.0
        %1490 = vmatprep.subr.mxu0 0.0
        %1491 = vmatpush1.xpose.msra.mxu0 0.0
        %1492 = vmatprep.subr.mxu0 0.0
        %1493 = vmatpush1.xpose.msra.mxu0 0.0
        %1494 = vmatprep.subr.mxu0 0.0
        %1495 = vmatpush1.xpose.msra.mxu0 0.0
        %1496 = vmatprep.subr.mxu0 0.0
        %1497 = vmatpush1.xpose.msra.mxu0 0.0
        %1498 = vmatprep.subr.mxu0 0.0
        %1499 = vmatpush1.xpose.msra.mxu0 0.0
        %1500 = vmatprep.subr.mxu0 0.0
        %1501 = vmatpush1.xpose.msra.mxu0 0.0
        %1502 = vmatprep.subr.mxu0 0.0
        %1503 = vmatpush1.xpose.msra.mxu0 0.0
        %1504 = vmatprep.subr.mxu0 0.0
        %1505 = vmatpush1.xpose.msra.mxu0 0.0
        %1506 = vmatprep.subr.mxu0 0.0
        %1507 = vmatpush1.xpose.msra.mxu0 0.0
        %1508 = vmatprep.subr.mxu0 0.0
        %1509 = vmatpush1.xpose.msra.mxu0 0.0
        %1510 = vmatprep.subr.mxu0 0.0
        %1511 = vmatpush1.xpose.msra.mxu0 0.0
        %1512 = vmatprep.subr.mxu0 0.0
        %1513 = vmatpush1.xpose.msra.mxu0 0.0
        %1514 = vmatprep.subr.mxu0 0.0
        %1515 = vmatpush1.xpose.msra.mxu0 0.0
        %1516 = vmatprep.subr.mxu0 0.0
        %1517 = vmatpush1.xpose.msra.mxu0 0.0
        %1518 = vmatprep.mubr.f32.mxu0 0.0
        %v1519 = vand.u32 %v1448, 4294901760
        %v1520 = vsub.f32 %v1448, %v1519
        %v1521 = vand.u32 %v1520, 4294901760
        %v1522 = vsub.f32 %v1520, %v1521
        %v1523 = vand.u32 %v1522, 4294901760
        %1524 = vmatmul.mubr.f32.gmra.mrb[0].mxu0 %v1523
        %v1525 = vpop.f32.mrb[0].mxu0
        %v1526 = vadd.f32 0.0, %v1525
        %v1527 = vpop.f32.mrb[0].mxu0
        %1528 = vdwg.mxu0
        %1529 = vmatprep.subr.mxu0 0.0
        %v1530 = vand.u32 %v1451, 4294901760
        %v1531 = vsub.f32 %v1451, %v1530
        %v1532 = vand.u32 %v1531, 4294901760
        %v1533 = vsub.f32 %v1531, %v1532
        %v1534 = vand.u32 %v1533, 4294901760
        %1535 = vmatpush1.xpose.msra.mxu0 %v1534
        %1536 = vmatprep.subr.mxu0 0.0
        %1537 = vmatpush1.xpose.msra.mxu0 0.0
        %1538 = vmatprep.subr.mxu0 0.0
        %1539 = vmatpush1.xpose.msra.mxu0 0.0
        %1540 = vmatprep.subr.mxu0 0.0
        %1541 = vmatpush1.xpose.msra.mxu0 0.0
        %1542 = vmatprep.subr.mxu0 0.0
        %1543 = vmatpush1.xpose.msra.mxu0 0.0
        %1544 = vmatprep.subr.mxu0 0.0
        %1545 = vmatpush1.xpose.msra.mxu0 0.0
        %1546 = vmatprep.subr.mxu0 0.0
        %1547 = vmatpush1.xpose.msra.mxu0 0.0
        %1548 = vmatprep.subr.mxu0 0.0
        %1549 = vmatpush1.xpose.msra.mxu0 0.0
        %1550 = vmatprep.subr.mxu0 0.0
        %1551 = vmatpush1.xpose.msra.mxu0 0.0
        %1552 = vmatprep.subr.mxu0 0.0
        %1553 = vmatpush1.xpose.msra.mxu0 0.0
        %1554 = vmatprep.subr.mxu0 0.0
        %1555 = vmatpush1.xpose.msra.mxu0 0.0
        %1556 = vmatprep.subr.mxu0 0.0
        %1557 = vmatpush1.xpose.msra.mxu0 0.0
        %1558 = vmatprep.subr.mxu0 0.0
        %1559 = vmatpush1.xpose.msra.mxu0 0.0
        %1560 = vmatprep.subr.mxu0 0.0
        %1561 = vmatpush1.xpose.msra.mxu0 0.0
        %1562 = vmatprep.subr.mxu0 0.0
        %1563 = vmatpush1.xpose.msra.mxu0 0.0
        %1564 = vmatprep.subr.mxu0 0.0
        %1565 = vmatpush1.xpose.msra.mxu0 0.0
        %1566 = vmatprep.subr.mxu0 0.0
        %1567 = vmatpush1.xpose.msra.mxu0 0.0
        %1568 = vmatprep.subr.mxu0 0.0
        %1569 = vmatpush1.xpose.msra.mxu0 0.0
        %1570 = vmatprep.subr.mxu0 0.0
        %1571 = vmatpush1.xpose.msra.mxu0 0.0
        %1572 = vmatprep.subr.mxu0 0.0
        %1573 = vmatpush1.xpose.msra.mxu0 0.0
        %1574 = vmatprep.subr.mxu0 0.0
        %1575 = vmatpush1.xpose.msra.mxu0 0.0
        %1576 = vmatprep.subr.mxu0 0.0
        %1577 = vmatpush1.xpose.msra.mxu0 0.0
        %1578 = vmatprep.subr.mxu0 0.0
        %1579 = vmatpush1.xpose.msra.mxu0 0.0
        %1580 = vmatprep.subr.mxu0 0.0
        %1581 = vmatpush1.xpose.msra.mxu0 0.0
        %1582 = vmatprep.subr.mxu0 0.0
        %1583 = vmatpush1.xpose.msra.mxu0 0.0
        %1584 = vmatprep.subr.mxu0 0.0
        %1585 = vmatpush1.xpose.msra.mxu0 0.0
        %1586 = vmatprep.subr.mxu0 0.0
        %1587 = vmatpush1.xpose.msra.mxu0 0.0
        %1588 = vmatprep.subr.mxu0 0.0
        %1589 = vmatpush1.xpose.msra.mxu0 0.0
        %1590 = vmatprep.subr.mxu0 0.0
        %1591 = vmatpush1.xpose.msra.mxu0 0.0
        %1592 = vmatprep.subr.mxu0 0.0
        %1593 = vmatpush1.xpose.msra.mxu0 0.0
        %1594 = vmatprep.subr.mxu0 0.0
        %1595 = vmatpush1.xpose.msra.mxu0 0.0
        %1596 = vmatprep.subr.mxu0 0.0
        %1597 = vmatpush1.xpose.msra.mxu0 0.0
        %1598 = vmatprep.mubr.f32.mxu0 0.0
        %v1599 = vand.u32 %v1448, 4294901760
        %1600 = vmatmul.mubr.f32.gmra.mrb[0].mxu0 %v1599
        %v1601 = vpop.f32.mrb[0].mxu0
        %v1602 = vadd.f32 %v1526, %v1601
        %v1603 = vpop.f32.mrb[0].mxu0
        %1604 = vdwg.mxu0
        %1605 = vmatprep.subr.mxu0 0.0
        %v1606 = vand.u32 %v1451, 4294901760
        %v1607 = vsub.f32 %v1451, %v1606
        %1608 = vmatpush1.xpose.msra.mxu0 %v1607
        %1609 = vmatprep.subr.mxu0 0.0
        %1610 = vmatpush1.xpose.msra.mxu0 0.0
        %1611 = vmatprep.subr.mxu0 0.0
        %1612 = vmatpush1.xpose.msra.mxu0 0.0
        %1613 = vmatprep.subr.mxu0 0.0
        %1614 = vmatpush1.xpose.msra.mxu0 0.0
        %1615 = vmatprep.subr.mxu0 0.0
        %1616 = vmatpush1.xpose.msra.mxu0 0.0
        %1617 = vmatprep.subr.mxu0 0.0
        %1618 = vmatpush1.xpose.msra.mxu0 0.0
        %1619 = vmatprep.subr.mxu0 0.0
        %1620 = vmatpush1.xpose.msra.mxu0 0.0
        %1621 = vmatprep.subr.mxu0 0.0
        %1622 = vmatpush1.xpose.msra.mxu0 0.0
        %1623 = vmatprep.subr.mxu0 0.0
        %1624 = vmatpush1.xpose.msra.mxu0 0.0
        %1625 = vmatprep.subr.mxu0 0.0
        %1626 = vmatpush1.xpose.msra.mxu0 0.0
        %1627 = vmatprep.subr.mxu0 0.0
        %1628 = vmatpush1.xpose.msra.mxu0 0.0
        %1629 = vmatprep.subr.mxu0 0.0
        %1630 = vmatpush1.xpose.msra.mxu0 0.0
        %1631 = vmatprep.subr.mxu0 0.0
        %1632 = vmatpush1.xpose.msra.mxu0 0.0
        %1633 = vmatprep.subr.mxu0 0.0
        %1634 = vmatpush1.xpose.msra.mxu0 0.0
        %1635 = vmatprep.subr.mxu0 0.0
        %1636 = vmatpush1.xpose.msra.mxu0 0.0
        %1637 = vmatprep.subr.mxu0 0.0
        %1638 = vmatpush1.xpose.msra.mxu0 0.0
        %1639 = vmatprep.subr.mxu0 0.0
        %1640 = vmatpush1.xpose.msra.mxu0 0.0
        %1641 = vmatprep.subr.mxu0 0.0
        %1642 = vmatpush1.xpose.msra.mxu0 0.0
        %1643 = vmatprep.subr.mxu0 0.0
        %1644 = vmatpush1.xpose.msra.mxu0 0.0
        %1645 = vmatprep.subr.mxu0 0.0
        %1646 = vmatpush1.xpose.msra.mxu0 0.0
        %1647 = vmatprep.subr.mxu0 0.0
        %1648 = vmatpush1.xpose.msra.mxu0 0.0
        %1649 = vmatprep.subr.mxu0 0.0
        %1650 = vmatpush1.xpose.msra.mxu0 0.0
        %1651 = vmatprep.subr.mxu0 0.0
        %1652 = vmatpush1.xpose.msra.mxu0 0.0
        %1653 = vmatprep.subr.mxu0 0.0
        %1654 = vmatpush1.xpose.msra.mxu0 0.0
        %1655 = vmatprep.subr.mxu0 0.0
        %1656 = vmatpush1.xpose.msra.mxu0 0.0
        %1657 = vmatprep.subr.mxu0 0.0
        %1658 = vmatpush1.xpose.msra.mxu0 0.0
        %1659 = vmatprep.subr.mxu0 0.0
        %1660 = vmatpush1.xpose.msra.mxu0 0.0
        %1661 = vmatprep.subr.mxu0 0.0
        %1662 = vmatpush1.xpose.msra.mxu0 0.0
        %1663 = vmatprep.subr.mxu0 0.0
        %1664 = vmatpush1.xpose.msra.mxu0 0.0
        %1665 = vmatprep.subr.mxu0 0.0
        %1666 = vmatpush1.xpose.msra.mxu0 0.0
        %1667 = vmatprep.subr.mxu0 0.0
        %1668 = vmatpush1.xpose.msra.mxu0 0.0
        %1669 = vmatprep.subr.mxu0 0.0
        %1670 = vmatpush1.xpose.msra.mxu0 0.0
        %1671 = vmatprep.mubr.f32.mxu0 0.0
        %v1672 = vand.u32 %v1448, 4294901760
        %v1673 = vsub.f32 %v1448, %v1672
        %1674 = vmatmul.mubr.f32.gmra.mrb[0].mxu0 %v1673
        %v1675 = vpop.f32.mrb[0].mxu0
        %v1676 = vadd.f32 %v1602, %v1675
        %v1677 = vpop.f32.mrb[0].mxu0
        %1678 = vdwg.mxu0
        %1679 = vmatprep.subr.mxu0 0.0
        %v1680 = vand.u32 %v1451, 4294901760
        %1681 = vmatpush1.xpose.msra.mxu0 %v1680
        %1682 = vmatprep.subr.mxu0 0.0
        %1683 = vmatpush1.xpose.msra.mxu0 0.0
        %1684 = vmatprep.subr.mxu0 0.0
        %1685 = vmatpush1.xpose.msra.mxu0 0.0
        %1686 = vmatprep.subr.mxu0 0.0
        %1687 = vmatpush1.xpose.msra.mxu0 0.0
        %1688 = vmatprep.subr.mxu0 0.0
        %1689 = vmatpush1.xpose.msra.mxu0 0.0
        %1690 = vmatprep.subr.mxu0 0.0
        %1691 = vmatpush1.xpose.msra.mxu0 0.0
        %1692 = vmatprep.subr.mxu0 0.0
        %1693 = vmatpush1.xpose.msra.mxu0 0.0
        %1694 = vmatprep.subr.mxu0 0.0
        %1695 = vmatpush1.xpose.msra.mxu0 0.0
        %1696 = vmatprep.subr.mxu0 0.0
        %1697 = vmatpush1.xpose.msra.mxu0 0.0
        %1698 = vmatprep.subr.mxu0 0.0
        %1699 = vmatpush1.xpose.msra.mxu0 0.0
        %1700 = vmatprep.subr.mxu0 0.0
        %1701 = vmatpush1.xpose.msra.mxu0 0.0
        %1702 = vmatprep.subr.mxu0 0.0
        %1703 = vmatpush1.xpose.msra.mxu0 0.0
        %1704 = vmatprep.subr.mxu0 0.0
        %1705 = vmatpush1.xpose.msra.mxu0 0.0
        %1706 = vmatprep.subr.mxu0 0.0
        %1707 = vmatpush1.xpose.msra.mxu0 0.0
        %1708 = vmatprep.subr.mxu0 0.0
        %1709 = vmatpush1.xpose.msra.mxu0 0.0
        %1710 = vmatprep.subr.mxu0 0.0
        %1711 = vmatpush1.xpose.msra.mxu0 0.0
        %1712 = vmatprep.subr.mxu0 0.0
        %1713 = vmatpush1.xpose.msra.mxu0 0.0
        %1714 = vmatprep.subr.mxu0 0.0
        %1715 = vmatpush1.xpose.msra.mxu0 0.0
        %1716 = vmatprep.subr.mxu0 0.0
        %1717 = vmatpush1.xpose.msra.mxu0 0.0
        %1718 = vmatprep.subr.mxu0 0.0
        %1719 = vmatpush1.xpose.msra.mxu0 0.0
        %1720 = vmatprep.subr.mxu0 0.0
        %1721 = vmatpush1.xpose.msra.mxu0 0.0
        %1722 = vmatprep.subr.mxu0 0.0
        %1723 = vmatpush1.xpose.msra.mxu0 0.0
        %1724 = vmatprep.subr.mxu0 0.0
        %1725 = vmatpush1.xpose.msra.mxu0 0.0
        %1726 = vmatprep.subr.mxu0 0.0
        %1727 = vmatpush1.xpose.msra.mxu0 0.0
        %1728 = vmatprep.subr.mxu0 0.0
        %1729 = vmatpush1.xpose.msra.mxu0 0.0
        %1730 = vmatprep.subr.mxu0 0.0
        %1731 = vmatpush1.xpose.msra.mxu0 0.0
        %1732 = vmatprep.subr.mxu0 0.0
        %1733 = vmatpush1.xpose.msra.mxu0 0.0
        %1734 = vmatprep.subr.mxu0 0.0
        %1735 = vmatpush1.xpose.msra.mxu0 0.0
        %1736 = vmatprep.subr.mxu0 0.0
        %1737 = vmatpush1.xpose.msra.mxu0 0.0
        %1738 = vmatprep.subr.mxu0 0.0
        %1739 = vmatpush1.xpose.msra.mxu0 0.0
        %1740 = vmatprep.subr.mxu0 0.0
        %1741 = vmatpush1.xpose.msra.mxu0 0.0
        %1742 = vmatprep.subr.mxu0 0.0
        %1743 = vmatpush1.xpose.msra.mxu0 0.0
        %1744 = vmatprep.mubr.f32.mxu0 0.0
        %v1745 = vand.u32 %v1448, 4294901760
        %v1746 = vsub.f32 %v1448, %v1745
        %v1747 = vand.u32 %v1746, 4294901760
        %1748 = vmatmul.mubr.f32.gmra.mrb[0].mxu0 %v1747
        %v1749 = vpop.f32.mrb[0].mxu0
        %v1750 = vadd.f32 %v1676, %v1749
        %v1751 = vpop.f32.mrb[0].mxu0
        %1752 = vdwg.mxu0
        %1753 = vmatprep.subr.mxu0 0.0
        %v1754 = vand.u32 %v1451, 4294901760
        %v1755 = vsub.f32 %v1451, %v1754
        %v1756 = vand.u32 %v1755, 4294901760
        %1757 = vmatpush1.xpose.msra.mxu0 %v1756
        %1758 = vmatprep.subr.mxu0 0.0
        %1759 = vmatpush1.xpose.msra.mxu0 0.0
        %1760 = vmatprep.subr.mxu0 0.0
        %1761 = vmatpush1.xpose.msra.mxu0 0.0
        %1762 = vmatprep.subr.mxu0 0.0
        %1763 = vmatpush1.xpose.msra.mxu0 0.0
        %1764 = vmatprep.subr.mxu0 0.0
        %1765 = vmatpush1.xpose.msra.mxu0 0.0
        %1766 = vmatprep.subr.mxu0 0.0
        %1767 = vmatpush1.xpose.msra.mxu0 0.0
        %1768 = vmatprep.subr.mxu0 0.0
        %1769 = vmatpush1.xpose.msra.mxu0 0.0
        %1770 = vmatprep.subr.mxu0 0.0
        %1771 = vmatpush1.xpose.msra.mxu0 0.0
        %1772 = vmatprep.subr.mxu0 0.0
        %1773 = vmatpush1.xpose.msra.mxu0 0.0
        %1774 = vmatprep.subr.mxu0 0.0
        %1775 = vmatpush1.xpose.msra.mxu0 0.0
        %1776 = vmatprep.subr.mxu0 0.0
        %1777 = vmatpush1.xpose.msra.mxu0 0.0
        %1778 = vmatprep.subr.mxu0 0.0
        %1779 = vmatpush1.xpose.msra.mxu0 0.0
        %1780 = vmatprep.subr.mxu0 0.0
        %1781 = vmatpush1.xpose.msra.mxu0 0.0
        %1782 = vmatprep.subr.mxu0 0.0
        %1783 = vmatpush1.xpose.msra.mxu0 0.0
        %1784 = vmatprep.subr.mxu0 0.0
        %1785 = vmatpush1.xpose.msra.mxu0 0.0
        %1786 = vmatprep.subr.mxu0 0.0
        %1787 = vmatpush1.xpose.msra.mxu0 0.0
        %1788 = vmatprep.subr.mxu0 0.0
        %1789 = vmatpush1.xpose.msra.mxu0 0.0
        %1790 = vmatprep.subr.mxu0 0.0
        %1791 = vmatpush1.xpose.msra.mxu0 0.0
        %1792 = vmatprep.subr.mxu0 0.0
        %1793 = vmatpush1.xpose.msra.mxu0 0.0
        %1794 = vmatprep.subr.mxu0 0.0
        %1795 = vmatpush1.xpose.msra.mxu0 0.0
        %1796 = vmatprep.subr.mxu0 0.0
        %1797 = vmatpush1.xpose.msra.mxu0 0.0
        %1798 = vmatprep.subr.mxu0 0.0
        %1799 = vmatpush1.xpose.msra.mxu0 0.0
        %1800 = vmatprep.subr.mxu0 0.0
        %1801 = vmatpush1.xpose.msra.mxu0 0.0
        %1802 = vmatprep.subr.mxu0 0.0
        %1803 = vmatpush1.xpose.msra.mxu0 0.0
        %1804 = vmatprep.subr.mxu0 0.0
        %1805 = vmatpush1.xpose.msra.mxu0 0.0
        %1806 = vmatprep.subr.mxu0 0.0
        %1807 = vmatpush1.xpose.msra.mxu0 0.0
        %1808 = vmatprep.subr.mxu0 0.0
        %1809 = vmatpush1.xpose.msra.mxu0 0.0
        %1810 = vmatprep.subr.mxu0 0.0
        %1811 = vmatpush1.xpose.msra.mxu0 0.0
        %1812 = vmatprep.subr.mxu0 0.0
        %1813 = vmatpush1.xpose.msra.mxu0 0.0
        %1814 = vmatprep.subr.mxu0 0.0
        %1815 = vmatpush1.xpose.msra.mxu0 0.0
        %1816 = vmatprep.subr.mxu0 0.0
        %1817 = vmatpush1.xpose.msra.mxu0 0.0
        %1818 = vmatprep.subr.mxu0 0.0
        %1819 = vmatpush1.xpose.msra.mxu0 0.0
        %1820 = vmatprep.mubr.f32.mxu0 0.0
        %v1821 = vand.u32 %v1448, 4294901760
        %1822 = vmatmul.mubr.f32.gmra.mrb[0].mxu0 %v1821
        %v1823 = vpop.f32.mrb[0].mxu0
        %v1824 = vadd.f32 %v1750, %v1823
        %v1825 = vpop.f32.mrb[0].mxu0
        %1826 = vdwg.mxu0
        %1827 = vmatprep.subr.mxu0 0.0
        %v1828 = vand.u32 %v1451, 4294901760
        %1829 = vmatpush1.xpose.msra.mxu0 %v1828
        %1830 = vmatprep.subr.mxu0 0.0
        %1831 = vmatpush1.xpose.msra.mxu0 0.0
        %1832 = vmatprep.subr.mxu0 0.0
        %1833 = vmatpush1.xpose.msra.mxu0 0.0
        %1834 = vmatprep.subr.mxu0 0.0
        %1835 = vmatpush1.xpose.msra.mxu0 0.0
        %1836 = vmatprep.subr.mxu0 0.0
        %1837 = vmatpush1.xpose.msra.mxu0 0.0
        %1838 = vmatprep.subr.mxu0 0.0
        %1839 = vmatpush1.xpose.msra.mxu0 0.0
        %1840 = vmatprep.subr.mxu0 0.0
        %1841 = vmatpush1.xpose.msra.mxu0 0.0
        %1842 = vmatprep.subr.mxu0 0.0
        %1843 = vmatpush1.xpose.msra.mxu0 0.0
        %1844 = vmatprep.subr.mxu0 0.0
        %1845 = vmatpush1.xpose.msra.mxu0 0.0
        %1846 = vmatprep.subr.mxu0 0.0
        %1847 = vmatpush1.xpose.msra.mxu0 0.0
        %1848 = vmatprep.subr.mxu0 0.0
        %1849 = vmatpush1.xpose.msra.mxu0 0.0
        %1850 = vmatprep.subr.mxu0 0.0
        %1851 = vmatpush1.xpose.msra.mxu0 0.0
        %1852 = vmatprep.subr.mxu0 0.0
        %1853 = vmatpush1.xpose.msra.mxu0 0.0
        %1854 = vmatprep.subr.mxu0 0.0
        %1855 = vmatpush1.xpose.msra.mxu0 0.0
        %1856 = vmatprep.subr.mxu0 0.0
        %1857 = vmatpush1.xpose.msra.mxu0 0.0
        %1858 = vmatprep.subr.mxu0 0.0
        %1859 = vmatpush1.xpose.msra.mxu0 0.0
        %1860 = vmatprep.subr.mxu0 0.0
        %1861 = vmatpush1.xpose.msra.mxu0 0.0
        %1862 = vmatprep.subr.mxu0 0.0
        %1863 = vmatpush1.xpose.msra.mxu0 0.0
        %1864 = vmatprep.subr.mxu0 0.0
        %1865 = vmatpush1.xpose.msra.mxu0 0.0
        %1866 = vmatprep.subr.mxu0 0.0
        %1867 = vmatpush1.xpose.msra.mxu0 0.0
        %1868 = vmatprep.subr.mxu0 0.0
        %1869 = vmatpush1.xpose.msra.mxu0 0.0
        %1870 = vmatprep.subr.mxu0 0.0
        %1871 = vmatpush1.xpose.msra.mxu0 0.0
        %1872 = vmatprep.subr.mxu0 0.0
        %1873 = vmatpush1.xpose.msra.mxu0 0.0
        %1874 = vmatprep.subr.mxu0 0.0
        %1875 = vmatpush1.xpose.msra.mxu0 0.0
        %1876 = vmatprep.subr.mxu0 0.0
        %1877 = vmatpush1.xpose.msra.mxu0 0.0
        %1878 = vmatprep.subr.mxu0 0.0
        %1879 = vmatpush1.xpose.msra.mxu0 0.0
        %1880 = vmatprep.subr.mxu0 0.0
        %1881 = vmatpush1.xpose.msra.mxu0 0.0
        %1882 = vmatprep.subr.mxu0 0.0
        %1883 = vmatpush1.xpose.msra.mxu0 0.0
        %1884 = vmatprep.subr.mxu0 0.0
        %1885 = vmatpush1.xpose.msra.mxu0 0.0
        %1886 = vmatprep.subr.mxu0 0.0
        %1887 = vmatpush1.xpose.msra.mxu0 0.0
        %1888 = vmatprep.subr.mxu0 0.0
        %1889 = vmatpush1.xpose.msra.mxu0 0.0
        %1890 = vmatprep.subr.mxu0 0.0
        %1891 = vmatpush1.xpose.msra.mxu0 0.0
        %1892 = vmatprep.mubr.f32.mxu0 0.0
        %v1893 = vand.u32 %v1448, 4294901760
        %1894 = vmatmul.mubr.f32.gmra.mrb[0].mxu0 %v1893
        %v1895 = vpop.f32.mrb[0].mxu0
        %v1896 = vadd.f32 %v1824, %v1895
        %v1897 = vpop.f32.mrb[0].mxu0
        %1898 = vdwg.mxu0
        %v1900 = vsel %vm994, %v992, 0
        %v1903 = vsel %vm994, %v342, 0
        %1905 = vmatprep.subr.mxu0 0.0
        %v1906 = vand.u32 %v1903, 4294901760
        %1907 = vmatpush1.xpose.msra.mxu0 %v1906
        %1908 = vmatprep.subr.mxu0 0.0
        %1909 = vmatpush1.xpose.msra.mxu0 0.0
        %1910 = vmatprep.subr.mxu0 0.0
        %1911 = vmatpush1.xpose.msra.mxu0 0.0
        %1912 = vmatprep.subr.mxu0 0.0
        %1913 = vmatpush1.xpose.msra.mxu0 0.0
        %1914 = vmatprep.subr.mxu0 0.0
        %1915 = vmatpush1.xpose.msra.mxu0 0.0
        %1916 = vmatprep.subr.mxu0 0.0
        %1917 = vmatpush1.xpose.msra.mxu0 0.0
        %1918 = vmatprep.subr.mxu0 0.0
        %1919 = vmatpush1.xpose.msra.mxu0 0.0
        %1920 = vmatprep.subr.mxu0 0.0
        %1921 = vmatpush1.xpose.msra.mxu0 0.0
        %1922 = vmatprep.subr.mxu0 0.0
        %1923 = vmatpush1.xpose.msra.mxu0 0.0
        %1924 = vmatprep.subr.mxu0 0.0
        %1925 = vmatpush1.xpose.msra.mxu0 0.0
        %1926 = vmatprep.subr.mxu0 0.0
        %1927 = vmatpush1.xpose.msra.mxu0 0.0
        %1928 = vmatprep.subr.mxu0 0.0
        %1929 = vmatpush1.xpose.msra.mxu0 0.0
        %1930 = vmatprep.subr.mxu0 0.0
        %1931 = vmatpush1.xpose.msra.mxu0 0.0
        %1932 = vmatprep.subr.mxu0 0.0
        %1933 = vmatpush1.xpose.msra.mxu0 0.0
        %1934 = vmatprep.subr.mxu0 0.0
        %1935 = vmatpush1.xpose.msra.mxu0 0.0
        %1936 = vmatprep.subr.mxu0 0.0
        %1937 = vmatpush1.xpose.msra.mxu0 0.0
        %1938 = vmatprep.subr.mxu0 0.0
        %1939 = vmatpush1.xpose.msra.mxu0 0.0
        %1940 = vmatprep.subr.mxu0 0.0
        %1941 = vmatpush1.xpose.msra.mxu0 0.0
        %1942 = vmatprep.subr.mxu0 0.0
        %1943 = vmatpush1.xpose.msra.mxu0 0.0
        %1944 = vmatprep.subr.mxu0 0.0
        %1945 = vmatpush1.xpose.msra.mxu0 0.0
        %1946 = vmatprep.subr.mxu0 0.0
        %1947 = vmatpush1.xpose.msra.mxu0 0.0
        %1948 = vmatprep.subr.mxu0 0.0
        %1949 = vmatpush1.xpose.msra.mxu0 0.0
        %1950 = vmatprep.subr.mxu0 0.0
        %1951 = vmatpush1.xpose.msra.mxu0 0.0
        %1952 = vmatprep.subr.mxu0 0.0
        %1953 = vmatpush1.xpose.msra.mxu0 0.0
        %1954 = vmatprep.subr.mxu0 0.0
        %1955 = vmatpush1.xpose.msra.mxu0 0.0
        %1956 = vmatprep.subr.mxu0 0.0
        %1957 = vmatpush1.xpose.msra.mxu0 0.0
        %1958 = vmatprep.subr.mxu0 0.0
        %1959 = vmatpush1.xpose.msra.mxu0 0.0
        %1960 = vmatprep.subr.mxu0 0.0
        %1961 = vmatpush1.xpose.msra.mxu0 0.0
        %1962 = vmatprep.subr.mxu0 0.0
        %1963 = vmatpush1.xpose.msra.mxu0 0.0
        %1964 = vmatprep.subr.mxu0 0.0
        %1965 = vmatpush1.xpose.msra.mxu0 0.0
        %1966 = vmatprep.subr.mxu0 0.0
        %1967 = vmatpush1.xpose.msra.mxu0 0.0
        %1968 = vmatprep.subr.mxu0 0.0
        %1969 = vmatpush1.xpose.msra.mxu0 0.0
        %1970 = vmatprep.mubr.f32.mxu0 0.0
        %v1971 = vand.u32 %v1900, 4294901760
        %v1972 = vsub.f32 %v1900, %v1971
        %v1973 = vand.u32 %v1972, 4294901760
        %v1974 = vsub.f32 %v1972, %v1973
        %v1975 = vand.u32 %v1974, 4294901760
        %1976 = vmatmul.mubr.f32.gmra.mrb[0].mxu0 %v1975
        %v1977 = vpop.f32.mrb[0].mxu0
        %v1978 = vadd.f32 0.0, %v1977
        %v1979 = vpop.f32.mrb[0].mxu0
        %1980 = vdwg.mxu0
        %1981 = vmatprep.subr.mxu0 0.0
        %v1982 = vand.u32 %v1903, 4294901760
        %v1983 = vsub.f32 %v1903, %v1982
        %v1984 = vand.u32 %v1983, 4294901760
        %v1985 = vsub.f32 %v1983, %v1984
        %v1986 = vand.u32 %v1985, 4294901760
        %1987 = vmatpush1.xpose.msra.mxu0 %v1986
        %1988 = vmatprep.subr.mxu0 0.0
        %1989 = vmatpush1.xpose.msra.mxu0 0.0
        %1990 = vmatprep.subr.mxu0 0.0
        %1991 = vmatpush1.xpose.msra.mxu0 0.0
        %1992 = vmatprep.subr.mxu0 0.0
        %1993 = vmatpush1.xpose.msra.mxu0 0.0
        %1994 = vmatprep.subr.mxu0 0.0
        %1995 = vmatpush1.xpose.msra.mxu0 0.0
        %1996 = vmatprep.subr.mxu0 0.0
        %1997 = vmatpush1.xpose.msra.mxu0 0.0
        %1998 = vmatprep.subr.mxu0 0.0
        %1999 = vmatpush1.xpose.msra.mxu0 0.0
        %2000 = vmatprep.subr.mxu0 0.0
        %2001 = vmatpush1.xpose.msra.mxu0 0.0
        %2002 = vmatprep.subr.mxu0 0.0
        %2003 = vmatpush1.xpose.msra.mxu0 0.0
        %2004 = vmatprep.subr.mxu0 0.0
        %2005 = vmatpush1.xpose.msra.mxu0 0.0
        %2006 = vmatprep.subr.mxu0 0.0
        %2007 = vmatpush1.xpose.msra.mxu0 0.0
        %2008 = vmatprep.subr.mxu0 0.0
        %2009 = vmatpush1.xpose.msra.mxu0 0.0
        %2010 = vmatprep.subr.mxu0 0.0
        %2011 = vmatpush1.xpose.msra.mxu0 0.0
        %2012 = vmatprep.subr.mxu0 0.0
        %2013 = vmatpush1.xpose.msra.mxu0 0.0
        %2014 = vmatprep.subr.mxu0 0.0
        %2015 = vmatpush1.xpose.msra.mxu0 0.0
        %2016 = vmatprep.subr.mxu0 0.0
        %2017 = vmatpush1.xpose.msra.mxu0 0.0
        %2018 = vmatprep.subr.mxu0 0.0
        %2019 = vmatpush1.xpose.msra.mxu0 0.0
        %2020 = vmatprep.subr.mxu0 0.0
        %2021 = vmatpush1.xpose.msra.mxu0 0.0
        %2022 = vmatprep.subr.mxu0 0.0
        %2023 = vmatpush1.xpose.msra.mxu0 0.0
        %2024 = vmatprep.subr.mxu0 0.0
        %2025 = vmatpush1.xpose.msra.mxu0 0.0
        %2026 = vmatprep.subr.mxu0 0.0
        %2027 = vmatpush1.xpose.msra.mxu0 0.0
        %2028 = vmatprep.subr.mxu0 0.0
        %2029 = vmatpush1.xpose.msra.mxu0 0.0
        %2030 = vmatprep.subr.mxu0 0.0
        %2031 = vmatpush1.xpose.msra.mxu0 0.0
        %2032 = vmatprep.subr.mxu0 0.0
        %2033 = vmatpush1.xpose.msra.mxu0 0.0
        %2034 = vmatprep.subr.mxu0 0.0
        %2035 = vmatpush1.xpose.msra.mxu0 0.0
        %2036 = vmatprep.subr.mxu0 0.0
        %2037 = vmatpush1.xpose.msra.mxu0 0.0
        %2038 = vmatprep.subr.mxu0 0.0
        %2039 = vmatpush1.xpose.msra.mxu0 0.0
        %2040 = vmatprep.subr.mxu0 0.0
        %2041 = vmatpush1.xpose.msra.mxu0 0.0
        %2042 = vmatprep.subr.mxu0 0.0
        %2043 = vmatpush1.xpose.msra.mxu0 0.0
        %2044 = vmatprep.subr.mxu0 0.0
        %2045 = vmatpush1.xpose.msra.mxu0 0.0
        %2046 = vmatprep.subr.mxu0 0.0
        %2047 = vmatpush1.xpose.msra.mxu0 0.0
        %2048 = vmatprep.subr.mxu0 0.0
        %2049 = vmatpush1.xpose.msra.mxu0 0.0
        %2050 = vmatprep.mubr.f32.mxu0 0.0
        %v2051 = vand.u32 %v1900, 4294901760
        %2052 = vmatmul.mubr.f32.gmra.mrb[0].mxu0 %v2051
        %v2053 = vpop.f32.mrb[0].mxu0
        %v2054 = vadd.f32 %v1978, %v2053
        %v2055 = vpop.f32.mrb[0].mxu0
        %2056 = vdwg.mxu0
        %2057 = vmatprep.subr.mxu0 0.0
        %v2058 = vand.u32 %v1903, 4294901760
        %v2059 = vsub.f32 %v1903, %v2058
        %2060 = vmatpush1.xpose.msra.mxu0 %v2059
        %2061 = vmatprep.subr.mxu0 0.0
        %2062 = vmatpush1.xpose.msra.mxu0 0.0
        %2063 = vmatprep.subr.mxu0 0.0
        %2064 = vmatpush1.xpose.msra.mxu0 0.0
        %2065 = vmatprep.subr.mxu0 0.0
        %2066 = vmatpush1.xpose.msra.mxu0 0.0
        %2067 = vmatprep.subr.mxu0 0.0
        %2068 = vmatpush1.xpose.msra.mxu0 0.0
        %2069 = vmatprep.subr.mxu0 0.0
        %2070 = vmatpush1.xpose.msra.mxu0 0.0
        %2071 = vmatprep.subr.mxu0 0.0
        %2072 = vmatpush1.xpose.msra.mxu0 0.0
        %2073 = vmatprep.subr.mxu0 0.0
        %2074 = vmatpush1.xpose.msra.mxu0 0.0
        %2075 = vmatprep.subr.mxu0 0.0
        %2076 = vmatpush1.xpose.msra.mxu0 0.0
        %2077 = vmatprep.subr.mxu0 0.0
        %2078 = vmatpush1.xpose.msra.mxu0 0.0
        %2079 = vmatprep.subr.mxu0 0.0
        %2080 = vmatpush1.xpose.msra.mxu0 0.0
        %2081 = vmatprep.subr.mxu0 0.0
        %2082 = vmatpush1.xpose.msra.mxu0 0.0
        %2083 = vmatprep.subr.mxu0 0.0
        %2084 = vmatpush1.xpose.msra.mxu0 0.0
        %2085 = vmatprep.subr.mxu0 0.0
        %2086 = vmatpush1.xpose.msra.mxu0 0.0
        %2087 = vmatprep.subr.mxu0 0.0
        %2088 = vmatpush1.xpose.msra.mxu0 0.0
        %2089 = vmatprep.subr.mxu0 0.0
        %2090 = vmatpush1.xpose.msra.mxu0 0.0
        %2091 = vmatprep.subr.mxu0 0.0
        %2092 = vmatpush1.xpose.msra.mxu0 0.0
        %2093 = vmatprep.subr.mxu0 0.0
        %2094 = vmatpush1.xpose.msra.mxu0 0.0
        %2095 = vmatprep.subr.mxu0 0.0
        %2096 = vmatpush1.xpose.msra.mxu0 0.0
        %2097 = vmatprep.subr.mxu0 0.0
        %2098 = vmatpush1.xpose.msra.mxu0 0.0
        %2099 = vmatprep.subr.mxu0 0.0
        %2100 = vmatpush1.xpose.msra.mxu0 0.0
        %2101 = vmatprep.subr.mxu0 0.0
        %2102 = vmatpush1.xpose.msra.mxu0 0.0
        %2103 = vmatprep.subr.mxu0 0.0
        %2104 = vmatpush1.xpose.msra.mxu0 0.0
        %2105 = vmatprep.subr.mxu0 0.0
        %2106 = vmatpush1.xpose.msra.mxu0 0.0
        %2107 = vmatprep.subr.mxu0 0.0
        %2108 = vmatpush1.xpose.msra.mxu0 0.0
        %2109 = vmatprep.subr.mxu0 0.0
        %2110 = vmatpush1.xpose.msra.mxu0 0.0
        %2111 = vmatprep.subr.mxu0 0.0
        %2112 = vmatpush1.xpose.msra.mxu0 0.0
        %2113 = vmatprep.subr.mxu0 0.0
        %2114 = vmatpush1.xpose.msra.mxu0 0.0
        %2115 = vmatprep.subr.mxu0 0.0
        %2116 = vmatpush1.xpose.msra.mxu0 0.0
        %2117 = vmatprep.subr.mxu0 0.0
        %2118 = vmatpush1.xpose.msra.mxu0 0.0
        %2119 = vmatprep.subr.mxu0 0.0
        %2120 = vmatpush1.xpose.msra.mxu0 0.0
        %2121 = vmatprep.subr.mxu0 0.0
        %2122 = vmatpush1.xpose.msra.mxu0 0.0
        %2123 = vmatprep.mubr.f32.mxu0 0.0
        %v2124 = vand.u32 %v1900, 4294901760
        %v2125 = vsub.f32 %v1900, %v2124
        %2126 = vmatmul.mubr.f32.gmra.mrb[0].mxu0 %v2125
        %v2127 = vpop.f32.mrb[0].mxu0
        %v2128 = vadd.f32 %v2054, %v2127
        %v2129 = vpop.f32.mrb[0].mxu0
        %2130 = vdwg.mxu0
        %2131 = vmatprep.subr.mxu0 0.0
        %v2132 = vand.u32 %v1903, 4294901760
        %2133 = vmatpush1.xpose.msra.mxu0 %v2132
        %2134 = vmatprep.subr.mxu0 0.0
        %2135 = vmatpush1.xpose.msra.mxu0 0.0
        %2136 = vmatprep.subr.mxu0 0.0
        %2137 = vmatpush1.xpose.msra.mxu0 0.0
        %2138 = vmatprep.subr.mxu0 0.0
        %2139 = vmatpush1.xpose.msra.mxu0 0.0
        %2140 = vmatprep.subr.mxu0 0.0
        %2141 = vmatpush1.xpose.msra.mxu0 0.0
        %2142 = vmatprep.subr.mxu0 0.0
        %2143 = vmatpush1.xpose.msra.mxu0 0.0
        %2144 = vmatprep.subr.mxu0 0.0
        %2145 = vmatpush1.xpose.msra.mxu0 0.0
        %2146 = vmatprep.subr.mxu0 0.0
        %2147 = vmatpush1.xpose.msra.mxu0 0.0
        %2148 = vmatprep.subr.mxu0 0.0
        %2149 = vmatpush1.xpose.msra.mxu0 0.0
        %2150 = vmatprep.subr.mxu0 0.0
        %2151 = vmatpush1.xpose.msra.mxu0 0.0
        %2152 = vmatprep.subr.mxu0 0.0
        %2153 = vmatpush1.xpose.msra.mxu0 0.0
        %2154 = vmatprep.subr.mxu0 0.0
        %2155 = vmatpush1.xpose.msra.mxu0 0.0
        %2156 = vmatprep.subr.mxu0 0.0
        %2157 = vmatpush1.xpose.msra.mxu0 0.0
        %2158 = vmatprep.subr.mxu0 0.0
        %2159 = vmatpush1.xpose.msra.mxu0 0.0
        %2160 = vmatprep.subr.mxu0 0.0
        %2161 = vmatpush1.xpose.msra.mxu0 0.0
        %2162 = vmatprep.subr.mxu0 0.0
        %2163 = vmatpush1.xpose.msra.mxu0 0.0
        %2164 = vmatprep.subr.mxu0 0.0
        %2165 = vmatpush1.xpose.msra.mxu0 0.0
        %2166 = vmatprep.subr.mxu0 0.0
        %2167 = vmatpush1.xpose.msra.mxu0 0.0
        %2168 = vmatprep.subr.mxu0 0.0
        %2169 = vmatpush1.xpose.msra.mxu0 0.0
        %2170 = vmatprep.subr.mxu0 0.0
        %2171 = vmatpush1.xpose.msra.mxu0 0.0
        %2172 = vmatprep.subr.mxu0 0.0
        %2173 = vmatpush1.xpose.msra.mxu0 0.0
        %2174 = vmatprep.subr.mxu0 0.0
        %2175 = vmatpush1.xpose.msra.mxu0 0.0
        %2176 = vmatprep.subr.mxu0 0.0
        %2177 = vmatpush1.xpose.msra.mxu0 0.0
        %2178 = vmatprep.subr.mxu0 0.0
        %2179 = vmatpush1.xpose.msra.mxu0 0.0
        %2180 = vmatprep.subr.mxu0 0.0
        %2181 = vmatpush1.xpose.msra.mxu0 0.0
        %2182 = vmatprep.subr.mxu0 0.0
        %2183 = vmatpush1.xpose.msra.mxu0 0.0
        %2184 = vmatprep.subr.mxu0 0.0
        %2185 = vmatpush1.xpose.msra.mxu0 0.0
        %2186 = vmatprep.subr.mxu0 0.0
        %2187 = vmatpush1.xpose.msra.mxu0 0.0
        %2188 = vmatprep.subr.mxu0 0.0
        %2189 = vmatpush1.xpose.msra.mxu0 0.0
        %2190 = vmatprep.subr.mxu0 0.0
        %2191 = vmatpush1.xpose.msra.mxu0 0.0
        %2192 = vmatprep.subr.mxu0 0.0
        %2193 = vmatpush1.xpose.msra.mxu0 0.0
        %2194 = vmatprep.subr.mxu0 0.0
        %2195 = vmatpush1.xpose.msra.mxu0 0.0
        %2196 = vmatprep.mubr.f32.mxu0 0.0
        %v2197 = vand.u32 %v1900, 4294901760
        %v2198 = vsub.f32 %v1900, %v2197
        %v2199 = vand.u32 %v2198, 4294901760
        %2200 = vmatmul.mubr.f32.gmra.mrb[0].mxu0 %v2199
        %v2201 = vpop.f32.mrb[0].mxu0
        %v2202 = vadd.f32 %v2128, %v2201
        %v2203 = vpop.f32.mrb[0].mxu0
        %2204 = vdwg.mxu0
        %2205 = vmatprep.subr.mxu0 0.0
        %v2206 = vand.u32 %v1903, 4294901760
        %v2207 = vsub.f32 %v1903, %v2206
        %v2208 = vand.u32 %v2207, 4294901760
        %2209 = vmatpush1.xpose.msra.mxu0 %v2208
        %2210 = vmatprep.subr.mxu0 0.0
        %2211 = vmatpush1.xpose.msra.mxu0 0.0
        %2212 = vmatprep.subr.mxu0 0.0
        %2213 = vmatpush1.xpose.msra.mxu0 0.0
        %2214 = vmatprep.subr.mxu0 0.0
        %2215 = vmatpush1.xpose.msra.mxu0 0.0
        %2216 = vmatprep.subr.mxu0 0.0
        %2217 = vmatpush1.xpose.msra.mxu0 0.0
        %2218 = vmatprep.subr.mxu0 0.0
        %2219 = vmatpush1.xpose.msra.mxu0 0.0
        %2220 = vmatprep.subr.mxu0 0.0
        %2221 = vmatpush1.xpose.msra.mxu0 0.0
        %2222 = vmatprep.subr.mxu0 0.0
        %2223 = vmatpush1.xpose.msra.mxu0 0.0
        %2224 = vmatprep.subr.mxu0 0.0
        %2225 = vmatpush1.xpose.msra.mxu0 0.0
        %2226 = vmatprep.subr.mxu0 0.0
        %2227 = vmatpush1.xpose.msra.mxu0 0.0
        %2228 = vmatprep.subr.mxu0 0.0
        %2229 = vmatpush1.xpose.msra.mxu0 0.0
        %2230 = vmatprep.subr.mxu0 0.0
        %2231 = vmatpush1.xpose.msra.mxu0 0.0
        %2232 = vmatprep.subr.mxu0 0.0
        %2233 = vmatpush1.xpose.msra.mxu0 0.0
        %2234 = vmatprep.subr.mxu0 0.0
        %2235 = vmatpush1.xpose.msra.mxu0 0.0
        %2236 = vmatprep.subr.mxu0 0.0
        %2237 = vmatpush1.xpose.msra.mxu0 0.0
        %2238 = vmatprep.subr.mxu0 0.0
        %2239 = vmatpush1.xpose.msra.mxu0 0.0
        %2240 = vmatprep.subr.mxu0 0.0
        %2241 = vmatpush1.xpose.msra.mxu0 0.0
        %2242 = vmatprep.subr.mxu0 0.0
        %2243 = vmatpush1.xpose.msra.mxu0 0.0
        %2244 = vmatprep.subr.mxu0 0.0
        %2245 = vmatpush1.xpose.msra.mxu0 0.0
        %2246 = vmatprep.subr.mxu0 0.0
        %2247 = vmatpush1.xpose.msra.mxu0 0.0
        %2248 = vmatprep.subr.mxu0 0.0
        %2249 = vmatpush1.xpose.msra.mxu0 0.0
        %2250 = vmatprep.subr.mxu0 0.0
        %2251 = vmatpush1.xpose.msra.mxu0 0.0
        %2252 = vmatprep.subr.mxu0 0.0
        %2253 = vmatpush1.xpose.msra.mxu0 0.0
        %2254 = vmatprep.subr.mxu0 0.0
        %2255 = vmatpush1.xpose.msra.mxu0 0.0
        %2256 = vmatprep.subr.mxu0 0.0
        %2257 = vmatpush1.xpose.msra.mxu0 0.0
        %2258 = vmatprep.subr.mxu0 0.0
        %2259 = vmatpush1.xpose.msra.mxu0 0.0
        %2260 = vmatprep.subr.mxu0 0.0
        %2261 = vmatpush1.xpose.msra.mxu0 0.0
        %2262 = vmatprep.subr.mxu0 0.0
        %2263 = vmatpush1.xpose.msra.mxu0 0.0
        %2264 = vmatprep.subr.mxu0 0.0
        %2265 = vmatpush1.xpose.msra.mxu0 0.0
        %2266 = vmatprep.subr.mxu0 0.0
        %2267 = vmatpush1.xpose.msra.mxu0 0.0
        %2268 = vmatprep.subr.mxu0 0.0
        %2269 = vmatpush1.xpose.msra.mxu0 0.0
        %2270 = vmatprep.subr.mxu0 0.0
        %2271 = vmatpush1.xpose.msra.mxu0 0.0
        %2272 = vmatprep.mubr.f32.mxu0 0.0
        %v2273 = vand.u32 %v1900, 4294901760
        %2274 = vmatmul.mubr.f32.gmra.mrb[0].mxu0 %v2273
        %v2275 = vpop.f32.mrb[0].mxu0
        %v2276 = vadd.f32 %v2202, %v2275
        %v2277 = vpop.f32.mrb[0].mxu0
        %2278 = vdwg.mxu0
        %2279 = vmatprep.subr.mxu0 0.0
        %v2280 = vand.u32 %v1903, 4294901760
        %2281 = vmatpush1.xpose.msra.mxu0 %v2280
        %2282 = vmatprep.subr.mxu0 0.0
        %2283 = vmatpush1.xpose.msra.mxu0 0.0
        %2284 = vmatprep.subr.mxu0 0.0
        %2285 = vmatpush1.xpose.msra.mxu0 0.0
        %2286 = vmatprep.subr.mxu0 0.0
        %2287 = vmatpush1.xpose.msra.mxu0 0.0
        %2288 = vmatprep.subr.mxu0 0.0
        %2289 = vmatpush1.xpose.msra.mxu0 0.0
        %2290 = vmatprep.subr.mxu0 0.0
        %2291 = vmatpush1.xpose.msra.mxu0 0.0
        %2292 = vmatprep.subr.mxu0 0.0
        %2293 = vmatpush1.xpose.msra.mxu0 0.0
        %2294 = vmatprep.subr.mxu0 0.0
        %2295 = vmatpush1.xpose.msra.mxu0 0.0
        %2296 = vmatprep.subr.mxu0 0.0
        %2297 = vmatpush1.xpose.msra.mxu0 0.0
        %2298 = vmatprep.subr.mxu0 0.0
        %2299 = vmatpush1.xpose.msra.mxu0 0.0
        %2300 = vmatprep.subr.mxu0 0.0
        %2301 = vmatpush1.xpose.msra.mxu0 0.0
        %2302 = vmatprep.subr.mxu0 0.0
        %2303 = vmatpush1.xpose.msra.mxu0 0.0
        %2304 = vmatprep.subr.mxu0 0.0
        %2305 = vmatpush1.xpose.msra.mxu0 0.0
        %2306 = vmatprep.subr.mxu0 0.0
        %2307 = vmatpush1.xpose.msra.mxu0 0.0
        %2308 = vmatprep.subr.mxu0 0.0
        %2309 = vmatpush1.xpose.msra.mxu0 0.0
        %2310 = vmatprep.subr.mxu0 0.0
        %2311 = vmatpush1.xpose.msra.mxu0 0.0
        %2312 = vmatprep.subr.mxu0 0.0
        %2313 = vmatpush1.xpose.msra.mxu0 0.0
        %2314 = vmatprep.subr.mxu0 0.0
        %2315 = vmatpush1.xpose.msra.mxu0 0.0
        %2316 = vmatprep.subr.mxu0 0.0
        %2317 = vmatpush1.xpose.msra.mxu0 0.0
        %2318 = vmatprep.subr.mxu0 0.0
        %2319 = vmatpush1.xpose.msra.mxu0 0.0
        %2320 = vmatprep.subr.mxu0 0.0
        %2321 = vmatpush1.xpose.msra.mxu0 0.0
        %2322 = vmatprep.subr.mxu0 0.0
        %2323 = vmatpush1.xpose.msra.mxu0 0.0
        %2324 = vmatprep.subr.mxu0 0.0
        %2325 = vmatpush1.xpose.msra.mxu0 0.0
        %2326 = vmatprep.subr.mxu0 0.0
        %2327 = vmatpush1.xpose.msra.mxu0 0.0
        %2328 = vmatprep.subr.mxu0 0.0
        %2329 = vmatpush1.xpose.msra.mxu0 0.0
        %2330 = vmatprep.subr.mxu0 0.0
        %2331 = vmatpush1.xpose.msra.mxu0 0.0
        %2332 = vmatprep.subr.mxu0 0.0
        %2333 = vmatpush1.xpose.msra.mxu0 0.0
        %2334 = vmatprep.subr.mxu0 0.0
        %2335 = vmatpush1.xpose.msra.mxu0 0.0
        %2336 = vmatprep.subr.mxu0 0.0
        %2337 = vmatpush1.xpose.msra.mxu0 0.0
        %2338 = vmatprep.subr.mxu0 0.0
        %2339 = vmatpush1.xpose.msra.mxu0 0.0
        %2340 = vmatprep.subr.mxu0 0.0
        %2341 = vmatpush1.xpose.msra.mxu0 0.0
        %2342 = vmatprep.subr.mxu0 0.0
        %2343 = vmatpush1.xpose.msra.mxu0 0.0
        %2344 = vmatprep.mubr.f32.mxu0 0.0
        %v2345 = vand.u32 %v1900, 4294901760
        %2346 = vmatmul.mubr.f32.gmra.mrb[0].mxu0 %v2345
        %v2347 = vpop.f32.mrb[0].mxu0
        %v2348 = vadd.f32 %v2276, %v2347
        %v2349 = vpop.f32.mrb[0].mxu0
        %2350 = vdwg.mxu0
        %v2352 = vsel %vm994, %v993, 0
        %v2355 = vsel %vm994, %v343, 0
        %2357 = vmatprep.subr.mxu0 0.0
        %v2358 = vand.u32 %v2355, 4294901760
        %2359 = vmatpush1.xpose.msra.mxu0 %v2358
        %2360 = vmatprep.subr.mxu0 0.0
        %2361 = vmatpush1.xpose.msra.mxu0 0.0
        %2362 = vmatprep.subr.mxu0 0.0
        %2363 = vmatpush1.xpose.msra.mxu0 0.0
        %2364 = vmatprep.subr.mxu0 0.0
        %2365 = vmatpush1.xpose.msra.mxu0 0.0
        %2366 = vmatprep.subr.mxu0 0.0
        %2367 = vmatpush1.xpose.msra.mxu0 0.0
        %2368 = vmatprep.subr.mxu0 0.0
        %2369 = vmatpush1.xpose.msra.mxu0 0.0
        %2370 = vmatprep.subr.mxu0 0.0
        %2371 = vmatpush1.xpose.msra.mxu0 0.0
        %2372 = vmatprep.subr.mxu0 0.0
        %2373 = vmatpush1.xpose.msra.mxu0 0.0
        %2374 = vmatprep.subr.mxu0 0.0
        %2375 = vmatpush1.xpose.msra.mxu0 0.0
        %2376 = vmatprep.subr.mxu0 0.0
        %2377 = vmatpush1.xpose.msra.mxu0 0.0
        %2378 = vmatprep.subr.mxu0 0.0
        %2379 = vmatpush1.xpose.msra.mxu0 0.0
        %2380 = vmatprep.subr.mxu0 0.0
        %2381 = vmatpush1.xpose.msra.mxu0 0.0
        %2382 = vmatprep.subr.mxu0 0.0
        %2383 = vmatpush1.xpose.msra.mxu0 0.0
        %2384 = vmatprep.subr.mxu0 0.0
        %2385 = vmatpush1.xpose.msra.mxu0 0.0
        %2386 = vmatprep.subr.mxu0 0.0
        %2387 = vmatpush1.xpose.msra.mxu0 0.0
        %2388 = vmatprep.subr.mxu0 0.0
        %2389 = vmatpush1.xpose.msra.mxu0 0.0
        %2390 = vmatprep.subr.mxu0 0.0
        %2391 = vmatpush1.xpose.msra.mxu0 0.0
        %2392 = vmatprep.subr.mxu0 0.0
        %2393 = vmatpush1.xpose.msra.mxu0 0.0
        %2394 = vmatprep.subr.mxu0 0.0
        %2395 = vmatpush1.xpose.msra.mxu0 0.0
        %2396 = vmatprep.subr.mxu0 0.0
        %2397 = vmatpush1.xpose.msra.mxu0 0.0
        %2398 = vmatprep.subr.mxu0 0.0
        %2399 = vmatpush1.xpose.msra.mxu0 0.0
        %2400 = vmatprep.subr.mxu0 0.0
        %2401 = vmatpush1.xpose.msra.mxu0 0.0
        %2402 = vmatprep.subr.mxu0 0.0
        %2403 = vmatpush1.xpose.msra.mxu0 0.0
        %2404 = vmatprep.subr.mxu0 0.0
        %2405 = vmatpush1.xpose.msra.mxu0 0.0
        %2406 = vmatprep.subr.mxu0 0.0
        %2407 = vmatpush1.xpose.msra.mxu0 0.0
        %2408 = vmatprep.subr.mxu0 0.0
        %2409 = vmatpush1.xpose.msra.mxu0 0.0
        %2410 = vmatprep.subr.mxu0 0.0
        %2411 = vmatpush1.xpose.msra.mxu0 0.0
        %2412 = vmatprep.subr.mxu0 0.0
        %2413 = vmatpush1.xpose.msra.mxu0 0.0
        %2414 = vmatprep.subr.mxu0 0.0
        %2415 = vmatpush1.xpose.msra.mxu0 0.0
        %2416 = vmatprep.subr.mxu0 0.0
        %2417 = vmatpush1.xpose.msra.mxu0 0.0
        %2418 = vmatprep.subr.mxu0 0.0
        %2419 = vmatpush1.xpose.msra.mxu0 0.0
        %2420 = vmatprep.subr.mxu0 0.0
        %2421 = vmatpush1.xpose.msra.mxu0 0.0
        %2422 = vmatprep.mubr.f32.mxu0 0.0
        %v2423 = vand.u32 %v2352, 4294901760
        %v2424 = vsub.f32 %v2352, %v2423
        %v2425 = vand.u32 %v2424, 4294901760
        %v2426 = vsub.f32 %v2424, %v2425
        %v2427 = vand.u32 %v2426, 4294901760
        %2428 = vmatmul.mubr.f32.gmra.mrb[0].mxu0 %v2427
        %v2429 = vpop.f32.mrb[0].mxu0
        %v2430 = vadd.f32 0.0, %v2429
        %v2431 = vpop.f32.mrb[0].mxu0
        %2432 = vdwg.mxu0
        %2433 = vmatprep.subr.mxu0 0.0
        %v2434 = vand.u32 %v2355, 4294901760
        %v2435 = vsub.f32 %v2355, %v2434
        %v2436 = vand.u32 %v2435, 4294901760
        %v2437 = vsub.f32 %v2435, %v2436
        %v2438 = vand.u32 %v2437, 4294901760
        %2439 = vmatpush1.xpose.msra.mxu0 %v2438
        %2440 = vmatprep.subr.mxu0 0.0
        %2441 = vmatpush1.xpose.msra.mxu0 0.0
        %2442 = vmatprep.subr.mxu0 0.0
        %2443 = vmatpush1.xpose.msra.mxu0 0.0
        %2444 = vmatprep.subr.mxu0 0.0
        %2445 = vmatpush1.xpose.msra.mxu0 0.0
        %2446 = vmatprep.subr.mxu0 0.0
        %2447 = vmatpush1.xpose.msra.mxu0 0.0
        %2448 = vmatprep.subr.mxu0 0.0
        %2449 = vmatpush1.xpose.msra.mxu0 0.0
        %2450 = vmatprep.subr.mxu0 0.0
        %2451 = vmatpush1.xpose.msra.mxu0 0.0
        %2452 = vmatprep.subr.mxu0 0.0
        %2453 = vmatpush1.xpose.msra.mxu0 0.0
        %2454 = vmatprep.subr.mxu0 0.0
        %2455 = vmatpush1.xpose.msra.mxu0 0.0
        %2456 = vmatprep.subr.mxu0 0.0
        %2457 = vmatpush1.xpose.msra.mxu0 0.0
        %2458 = vmatprep.subr.mxu0 0.0
        %2459 = vmatpush1.xpose.msra.mxu0 0.0
        %2460 = vmatprep.subr.mxu0 0.0
        %2461 = vmatpush1.xpose.msra.mxu0 0.0
        %2462 = vmatprep.subr.mxu0 0.0
        %2463 = vmatpush1.xpose.msra.mxu0 0.0
        %2464 = vmatprep.subr.mxu0 0.0
        %2465 = vmatpush1.xpose.msra.mxu0 0.0
        %2466 = vmatprep.subr.mxu0 0.0
        %2467 = vmatpush1.xpose.msra.mxu0 0.0
        %2468 = vmatprep.subr.mxu0 0.0
        %2469 = vmatpush1.xpose.msra.mxu0 0.0
        %2470 = vmatprep.subr.mxu0 0.0
        %2471 = vmatpush1.xpose.msra.mxu0 0.0
        %2472 = vmatprep.subr.mxu0 0.0
        %2473 = vmatpush1.xpose.msra.mxu0 0.0
        %2474 = vmatprep.subr.mxu0 0.0
        %2475 = vmatpush1.xpose.msra.mxu0 0.0
        %2476 = vmatprep.subr.mxu0 0.0
        %2477 = vmatpush1.xpose.msra.mxu0 0.0
        %2478 = vmatprep.subr.mxu0 0.0
        %2479 = vmatpush1.xpose.msra.mxu0 0.0
        %2480 = vmatprep.subr.mxu0 0.0
        %2481 = vmatpush1.xpose.msra.mxu0 0.0
        %2482 = vmatprep.subr.mxu0 0.0
        %2483 = vmatpush1.xpose.msra.mxu0 0.0
        %2484 = vmatprep.subr.mxu0 0.0
        %2485 = vmatpush1.xpose.msra.mxu0 0.0
        %2486 = vmatprep.subr.mxu0 0.0
        %2487 = vmatpush1.xpose.msra.mxu0 0.0
        %2488 = vmatprep.subr.mxu0 0.0
        %2489 = vmatpush1.xpose.msra.mxu0 0.0
        %2490 = vmatprep.subr.mxu0 0.0
        %2491 = vmatpush1.xpose.msra.mxu0 0.0
        %2492 = vmatprep.subr.mxu0 0.0
        %2493 = vmatpush1.xpose.msra.mxu0 0.0
        %2494 = vmatprep.subr.mxu0 0.0
        %2495 = vmatpush1.xpose.msra.mxu0 0.0
        %2496 = vmatprep.subr.mxu0 0.0
        %2497 = vmatpush1.xpose.msra.mxu0 0.0
        %2498 = vmatprep.subr.mxu0 0.0
        %2499 = vmatpush1.xpose.msra.mxu0 0.0
        %2500 = vmatprep.subr.mxu0 0.0
        %2501 = vmatpush1.xpose.msra.mxu0 0.0
        %2502 = vmatprep.mubr.f32.mxu0 0.0
        %v2503 = vand.u32 %v2352, 4294901760
        %2504 = vmatmul.mubr.f32.gmra.mrb[0].mxu0 %v2503
        %v2505 = vpop.f32.mrb[0].mxu0
        %v2506 = vadd.f32 %v2430, %v2505
        %v2507 = vpop.f32.mrb[0].mxu0
        %2508 = vdwg.mxu0
        %2509 = vmatprep.subr.mxu0 0.0
        %v2510 = vand.u32 %v2355, 4294901760
        %v2511 = vsub.f32 %v2355, %v2510
        %2512 = vmatpush1.xpose.msra.mxu0 %v2511
        %2513 = vmatprep.subr.mxu0 0.0
        %2514 = vmatpush1.xpose.msra.mxu0 0.0
        %2515 = vmatprep.subr.mxu0 0.0
        %2516 = vmatpush1.xpose.msra.mxu0 0.0
        %2517 = vmatprep.subr.mxu0 0.0
        %2518 = vmatpush1.xpose.msra.mxu0 0.0
        %2519 = vmatprep.subr.mxu0 0.0
        %2520 = vmatpush1.xpose.msra.mxu0 0.0
        %2521 = vmatprep.subr.mxu0 0.0
        %2522 = vmatpush1.xpose.msra.mxu0 0.0
        %2523 = vmatprep.subr.mxu0 0.0
        %2524 = vmatpush1.xpose.msra.mxu0 0.0
        %2525 = vmatprep.subr.mxu0 0.0
        %2526 = vmatpush1.xpose.msra.mxu0 0.0
        %2527 = vmatprep.subr.mxu0 0.0
        %2528 = vmatpush1.xpose.msra.mxu0 0.0
        %2529 = vmatprep.subr.mxu0 0.0
        %2530 = vmatpush1.xpose.msra.mxu0 0.0
        %2531 = vmatprep.subr.mxu0 0.0
        %2532 = vmatpush1.xpose.msra.mxu0 0.0
        %2533 = vmatprep.subr.mxu0 0.0
        %2534 = vmatpush1.xpose.msra.mxu0 0.0
        %2535 = vmatprep.subr.mxu0 0.0
        %2536 = vmatpush1.xpose.msra.mxu0 0.0
        %2537 = vmatprep.subr.mxu0 0.0
        %2538 = vmatpush1.xpose.msra.mxu0 0.0
        %2539 = vmatprep.subr.mxu0 0.0
        %2540 = vmatpush1.xpose.msra.mxu0 0.0
        %2541 = vmatprep.subr.mxu0 0.0
        %2542 = vmatpush1.xpose.msra.mxu0 0.0
        %2543 = vmatprep.subr.mxu0 0.0
        %2544 = vmatpush1.xpose.msra.mxu0 0.0
        %2545 = vmatprep.subr.mxu0 0.0
        %2546 = vmatpush1.xpose.msra.mxu0 0.0
        %2547 = vmatprep.subr.mxu0 0.0
        %2548 = vmatpush1.xpose.msra.mxu0 0.0
        %2549 = vmatprep.subr.mxu0 0.0
        %2550 = vmatpush1.xpose.msra.mxu0 0.0
        %2551 = vmatprep.subr.mxu0 0.0
        %2552 = vmatpush1.xpose.msra.mxu0 0.0
        %2553 = vmatprep.subr.mxu0 0.0
        %2554 = vmatpush1.xpose.msra.mxu0 0.0
        %2555 = vmatprep.subr.mxu0 0.0
        %2556 = vmatpush1.xpose.msra.mxu0 0.0
        %2557 = vmatprep.subr.mxu0 0.0
        %2558 = vmatpush1.xpose.msra.mxu0 0.0
        %2559 = vmatprep.subr.mxu0 0.0
        %2560 = vmatpush1.xpose.msra.mxu0 0.0
        %2561 = vmatprep.subr.mxu0 0.0
        %2562 = vmatpush1.xpose.msra.mxu0 0.0
        %2563 = vmatprep.subr.mxu0 0.0
        %2564 = vmatpush1.xpose.msra.mxu0 0.0
        %2565 = vmatprep.subr.mxu0 0.0
        %2566 = vmatpush1.xpose.msra.mxu0 0.0
        %2567 = vmatprep.subr.mxu0 0.0
        %2568 = vmatpush1.xpose.msra.mxu0 0.0
        %2569 = vmatprep.subr.mxu0 0.0
        %2570 = vmatpush1.xpose.msra.mxu0 0.0
        %2571 = vmatprep.subr.mxu0 0.0
        %2572 = vmatpush1.xpose.msra.mxu0 0.0
        %2573 = vmatprep.subr.mxu0 0.0
        %2574 = vmatpush1.xpose.msra.mxu0 0.0
        %2575 = vmatprep.mubr.f32.mxu0 0.0
        %v2576 = vand.u32 %v2352, 4294901760
        %v2577 = vsub.f32 %v2352, %v2576
        %2578 = vmatmul.mubr.f32.gmra.mrb[0].mxu0 %v2577
        %v2579 = vpop.f32.mrb[0].mxu0
        %v2580 = vadd.f32 %v2506, %v2579
        %v2581 = vpop.f32.mrb[0].mxu0
        %2582 = vdwg.mxu0
        %2583 = vmatprep.subr.mxu0 0.0
        %v2584 = vand.u32 %v2355, 4294901760
        %2585 = vmatpush1.xpose.msra.mxu0 %v2584
        %2586 = vmatprep.subr.mxu0 0.0
        %2587 = vmatpush1.xpose.msra.mxu0 0.0
        %2588 = vmatprep.subr.mxu0 0.0
        %2589 = vmatpush1.xpose.msra.mxu0 0.0
        %2590 = vmatprep.subr.mxu0 0.0
        %2591 = vmatpush1.xpose.msra.mxu0 0.0
        %2592 = vmatprep.subr.mxu0 0.0
        %2593 = vmatpush1.xpose.msra.mxu0 0.0
        %2594 = vmatprep.subr.mxu0 0.0
        %2595 = vmatpush1.xpose.msra.mxu0 0.0
        %2596 = vmatprep.subr.mxu0 0.0
        %2597 = vmatpush1.xpose.msra.mxu0 0.0
        %2598 = vmatprep.subr.mxu0 0.0
        %2599 = vmatpush1.xpose.msra.mxu0 0.0
        %2600 = vmatprep.subr.mxu0 0.0
        %2601 = vmatpush1.xpose.msra.mxu0 0.0
        %2602 = vmatprep.subr.mxu0 0.0
        %2603 = vmatpush1.xpose.msra.mxu0 0.0
        %2604 = vmatprep.subr.mxu0 0.0
        %2605 = vmatpush1.xpose.msra.mxu0 0.0
        %2606 = vmatprep.subr.mxu0 0.0
        %2607 = vmatpush1.xpose.msra.mxu0 0.0
        %2608 = vmatprep.subr.mxu0 0.0
        %2609 = vmatpush1.xpose.msra.mxu0 0.0
        %2610 = vmatprep.subr.mxu0 0.0
        %2611 = vmatpush1.xpose.msra.mxu0 0.0
        %2612 = vmatprep.subr.mxu0 0.0
        %2613 = vmatpush1.xpose.msra.mxu0 0.0
        %2614 = vmatprep.subr.mxu0 0.0
        %2615 = vmatpush1.xpose.msra.mxu0 0.0
        %2616 = vmatprep.subr.mxu0 0.0
        %2617 = vmatpush1.xpose.msra.mxu0 0.0
        %2618 = vmatprep.subr.mxu0 0.0
        %2619 = vmatpush1.xpose.msra.mxu0 0.0
        %2620 = vmatprep.subr.mxu0 0.0
        %2621 = vmatpush1.xpose.msra.mxu0 0.0
        %2622 = vmatprep.subr.mxu0 0.0
        %2623 = vmatpush1.xpose.msra.mxu0 0.0
        %2624 = vmatprep.subr.mxu0 0.0
        %2625 = vmatpush1.xpose.msra.mxu0 0.0
        %2626 = vmatprep.subr.mxu0 0.0
        %2627 = vmatpush1.xpose.msra.mxu0 0.0
        %2628 = vmatprep.subr.mxu0 0.0
        %2629 = vmatpush1.xpose.msra.mxu0 0.0
        %2630 = vmatprep.subr.mxu0 0.0
        %2631 = vmatpush1.xpose.msra.mxu0 0.0
        %2632 = vmatprep.subr.mxu0 0.0
        %2633 = vmatpush1.xpose.msra.mxu0 0.0
        %2634 = vmatprep.subr.mxu0 0.0
        %2635 = vmatpush1.xpose.msra.mxu0 0.0
        %2636 = vmatprep.subr.mxu0 0.0
        %2637 = vmatpush1.xpose.msra.mxu0 0.0
        %2638 = vmatprep.subr.mxu0 0.0
        %2639 = vmatpush1.xpose.msra.mxu0 0.0
        %2640 = vmatprep.subr.mxu0 0.0
        %2641 = vmatpush1.xpose.msra.mxu0 0.0
        %2642 = vmatprep.subr.mxu0 0.0
        %2643 = vmatpush1.xpose.msra.mxu0 0.0
        %2644 = vmatprep.subr.mxu0 0.0
        %2645 = vmatpush1.xpose.msra.mxu0 0.0
        %2646 = vmatprep.subr.mxu0 0.0
        %2647 = vmatpush1.xpose.msra.mxu0 0.0
        %2648 = vmatprep.mubr.f32.mxu0 0.0
        %v2649 = vand.u32 %v2352, 4294901760
        %v2650 = vsub.f32 %v2352, %v2649
        %v2651 = vand.u32 %v2650, 4294901760
        %2652 = vmatmul.mubr.f32.gmra.mrb[0].mxu0 %v2651
        %v2653 = vpop.f32.mrb[0].mxu0
        %v2654 = vadd.f32 %v2580, %v2653
        %v2655 = vpop.f32.mrb[0].mxu0
        %2656 = vdwg.mxu0
        %2657 = vmatprep.subr.mxu0 0.0
        %v2658 = vand.u32 %v2355, 4294901760
        %v2659 = vsub.f32 %v2355, %v2658
        %v2660 = vand.u32 %v2659, 4294901760
        %2661 = vmatpush1.xpose.msra.mxu0 %v2660
        %2662 = vmatprep.subr.mxu0 0.0
        %2663 = vmatpush1.xpose.msra.mxu0 0.0
        %2664 = vmatprep.subr.mxu0 0.0
        %2665 = vmatpush1.xpose.msra.mxu0 0.0
        %2666 = vmatprep.subr.mxu0 0.0
        %2667 = vmatpush1.xpose.msra.mxu0 0.0
        %2668 = vmatprep.subr.mxu0 0.0
        %2669 = vmatpush1.xpose.msra.mxu0 0.0
        %2670 = vmatprep.subr.mxu0 0.0
        %2671 = vmatpush1.xpose.msra.mxu0 0.0
        %2672 = vmatprep.subr.mxu0 0.0
        %2673 = vmatpush1.xpose.msra.mxu0 0.0
        %2674 = vmatprep.subr.mxu0 0.0
        %2675 = vmatpush1.xpose.msra.mxu0 0.0
        %2676 = vmatprep.subr.mxu0 0.0
        %2677 = vmatpush1.xpose.msra.mxu0 0.0
        %2678 = vmatprep.subr.mxu0 0.0
        %2679 = vmatpush1.xpose.msra.mxu0 0.0
        %2680 = vmatprep.subr.mxu0 0.0
        %2681 = vmatpush1.xpose.msra.mxu0 0.0
        %2682 = vmatprep.subr.mxu0 0.0
        %2683 = vmatpush1.xpose.msra.mxu0 0.0
        %2684 = vmatprep.subr.mxu0 0.0
        %2685 = vmatpush1.xpose.msra.mxu0 0.0
        %2686 = vmatprep.subr.mxu0 0.0
        %2687 = vmatpush1.xpose.msra.mxu0 0.0
        %2688 = vmatprep.subr.mxu0 0.0
        %2689 = vmatpush1.xpose.msra.mxu0 0.0
        %2690 = vmatprep.subr.mxu0 0.0
        %2691 = vmatpush1.xpose.msra.mxu0 0.0
        %2692 = vmatprep.subr.mxu0 0.0
        %2693 = vmatpush1.xpose.msra.mxu0 0.0
        %2694 = vmatprep.subr.mxu0 0.0
        %2695 = vmatpush1.xpose.msra.mxu0 0.0
        %2696 = vmatprep.subr.mxu0 0.0
        %2697 = vmatpush1.xpose.msra.mxu0 0.0
        %2698 = vmatprep.subr.mxu0 0.0
        %2699 = vmatpush1.xpose.msra.mxu0 0.0
        %2700 = vmatprep.subr.mxu0 0.0
        %2701 = vmatpush1.xpose.msra.mxu0 0.0
        %2702 = vmatprep.subr.mxu0 0.0
        %2703 = vmatpush1.xpose.msra.mxu0 0.0
        %2704 = vmatprep.subr.mxu0 0.0
        %2705 = vmatpush1.xpose.msra.mxu0 0.0
        %2706 = vmatprep.subr.mxu0 0.0
        %2707 = vmatpush1.xpose.msra.mxu0 0.0
        %2708 = vmatprep.subr.mxu0 0.0
        %2709 = vmatpush1.xpose.msra.mxu0 0.0
        %2710 = vmatprep.subr.mxu0 0.0
        %2711 = vmatpush1.xpose.msra.mxu0 0.0
        %2712 = vmatprep.subr.mxu0 0.0
        %2713 = vmatpush1.xpose.msra.mxu0 0.0
        %2714 = vmatprep.subr.mxu0 0.0
        %2715 = vmatpush1.xpose.msra.mxu0 0.0
        %2716 = vmatprep.subr.mxu0 0.0
        %2717 = vmatpush1.xpose.msra.mxu0 0.0
        %2718 = vmatprep.subr.mxu0 0.0
        %2719 = vmatpush1.xpose.msra.mxu0 0.0
        %2720 = vmatprep.subr.mxu0 0.0
        %2721 = vmatpush1.xpose.msra.mxu0 0.0
        %2722 = vmatprep.subr.mxu0 0.0
        %2723 = vmatpush1.xpose.msra.mxu0 0.0
        %2724 = vmatprep.mubr.f32.mxu0 0.0
        %v2725 = vand.u32 %v2352, 4294901760
        %2726 = vmatmul.mubr.f32.gmra.mrb[0].mxu0 %v2725
        %v2727 = vpop.f32.mrb[0].mxu0
        %v2728 = vadd.f32 %v2654, %v2727
        %v2729 = vpop.f32.mrb[0].mxu0
        %2730 = vdwg.mxu0
        %2731 = vmatprep.subr.mxu0 0.0
        %v2732 = vand.u32 %v2355, 4294901760
        %2733 = vmatpush1.xpose.msra.mxu0 %v2732
        %2734 = vmatprep.subr.mxu0 0.0
        %2735 = vmatpush1.xpose.msra.mxu0 0.0
        %2736 = vmatprep.subr.mxu0 0.0
        %2737 = vmatpush1.xpose.msra.mxu0 0.0
        %2738 = vmatprep.subr.mxu0 0.0
        %2739 = vmatpush1.xpose.msra.mxu0 0.0
        %2740 = vmatprep.subr.mxu0 0.0
        %2741 = vmatpush1.xpose.msra.mxu0 0.0
        %2742 = vmatprep.subr.mxu0 0.0
        %2743 = vmatpush1.xpose.msra.mxu0 0.0
        %2744 = vmatprep.subr.mxu0 0.0
        %2745 = vmatpush1.xpose.msra.mxu0 0.0
        %2746 = vmatprep.subr.mxu0 0.0
        %2747 = vmatpush1.xpose.msra.mxu0 0.0
        %2748 = vmatprep.subr.mxu0 0.0
        %2749 = vmatpush1.xpose.msra.mxu0 0.0
        %2750 = vmatprep.subr.mxu0 0.0
        %2751 = vmatpush1.xpose.msra.mxu0 0.0
        %2752 = vmatprep.subr.mxu0 0.0
        %2753 = vmatpush1.xpose.msra.mxu0 0.0
        %2754 = vmatprep.subr.mxu0 0.0
        %2755 = vmatpush1.xpose.msra.mxu0 0.0
        %2756 = vmatprep.subr.mxu0 0.0
        %2757 = vmatpush1.xpose.msra.mxu0 0.0
        %2758 = vmatprep.subr.mxu0 0.0
        %2759 = vmatpush1.xpose.msra.mxu0 0.0
        %2760 = vmatprep.subr.mxu0 0.0
        %2761 = vmatpush1.xpose.msra.mxu0 0.0
        %2762 = vmatprep.subr.mxu0 0.0
        %2763 = vmatpush1.xpose.msra.mxu0 0.0
        %2764 = vmatprep.subr.mxu0 0.0
        %2765 = vmatpush1.xpose.msra.mxu0 0.0
        %2766 = vmatprep.subr.mxu0 0.0
        %2767 = vmatpush1.xpose.msra.mxu0 0.0
        %2768 = vmatprep.subr.mxu0 0.0
        %2769 = vmatpush1.xpose.msra.mxu0 0.0
        %2770 = vmatprep.subr.mxu0 0.0
        %2771 = vmatpush1.xpose.msra.mxu0 0.0
        %2772 = vmatprep.subr.mxu0 0.0
        %2773 = vmatpush1.xpose.msra.mxu0 0.0
        %2774 = vmatprep.subr.mxu0 0.0
        %2775 = vmatpush1.xpose.msra.mxu0 0.0
        %2776 = vmatprep.subr.mxu0 0.0
        %2777 = vmatpush1.xpose.msra.mxu0 0.0
        %2778 = vmatprep.subr.mxu0 0.0
        %2779 = vmatpush1.xpose.msra.mxu0 0.0
        %2780 = vmatprep.subr.mxu0 0.0
        %2781 = vmatpush1.xpose.msra.mxu0 0.0
        %2782 = vmatprep.subr.mxu0 0.0
        %2783 = vmatpush1.xpose.msra.mxu0 0.0
        %2784 = vmatprep.subr.mxu0 0.0
        %2785 = vmatpush1.xpose.msra.mxu0 0.0
        %2786 = vmatprep.subr.mxu0 0.0
        %2787 = vmatpush1.xpose.msra.mxu0 0.0
        %2788 = vmatprep.subr.mxu0 0.0
        %2789 = vmatpush1.xpose.msra.mxu0 0.0
        %2790 = vmatprep.subr.mxu0 0.0
        %2791 = vmatpush1.xpose.msra.mxu0 0.0
        %2792 = vmatprep.subr.mxu0 0.0
        %2793 = vmatpush1.xpose.msra.mxu0 0.0
        %2794 = vmatprep.subr.mxu0 0.0
        %2795 = vmatpush1.xpose.msra.mxu0 0.0
        %2796 = vmatprep.mubr.f32.mxu0 0.0
        %v2797 = vand.u32 %v2352, 4294901760
        %2798 = vmatmul.mubr.f32.gmra.mrb[0].mxu0 %v2797
        %v2799 = vpop.f32.mrb[0].mxu0
        %v2800 = vadd.f32 %v2728, %v2799
        %v2801 = vpop.f32.mrb[0].mxu0
        %2802 = vdwg.mxu0
        %v2803 = vsel %vm994, %v1444, -inf
        %2804 = vmax.xlane.f32.xlu0 %v2803
        %v2805 = vpop.xlane.xlu0 %2804
        %v2806 = vsel %vm994, %v1896, -inf
        %2807 = vmax.xlane.f32.xlu0 %v2806
        %v2808 = vpop.xlane.xlu0 %2807
        %v2809 = vsel %vm994, %v2348, -inf
        %2810 = vmax.xlane.f32.xlu0 %v2809
        %v2811 = vpop.xlane.xlu0 %2810
        %v2812 = vsel %vm994, %v2800, -inf
        %2813 = vmax.xlane.f32.xlu0 %v2812
        %v2814 = vpop.xlane.xlu0 %2813
        %v2815 = vsub.f32 %v1444, %v2805
        %v2816 = vsub.f32 %v1896, %v2808
        %v2817 = vsub.f32 %v2348, %v2811
        %v2818 = vsub.f32 %v2800, %v2814
        %v2819 = vmul.f32 %v2815, 1.442695
        %v2820 = vpow.pop %v2819
        %v2821 = vmul.f32 %v2816, 1.442695
        %v2822 = vpow.pop %v2821
        %v2823 = vmul.f32 %v2817, 1.442695
        %v2824 = vpow.pop %v2823
        %v2825 = vmul.f32 %v2818, 1.442695
        %v2826 = vpow.pop %v2825
        %v2827 = vsel %vm994, %v2820, 0.0
        %2828 = vadd.xlane.f32.xlu0 %v2827
        %v2829 = vpop.xlane.xlu0 %2828
        %v2830 = vsel %vm994, %v2822, 0.0
        %2831 = vadd.xlane.f32.xlu0 %v2830
        %v2832 = vpop.xlane.xlu0 %2831
        %v2833 = vsel %vm994, %v2824, 0.0
        %2834 = vadd.xlane.f32.xlu0 %v2833
        %v2835 = vpop.xlane.xlu0 %2834
        %v2836 = vsel %vm994, %v2826, 0.0
        %2837 = vadd.xlane.f32.xlu0 %v2836
        %v2838 = vpop.xlane.xlu0 %2837
        %v2840 = vsel %vm994, %v2820, 0
        %2842 = vmatprep.subr.mxu0 0.0
        %v2843 = vand.u32 %v344, 4294901760
        %2844 = vmatpush1.msra.mxu0 %v2843
        %2845 = vmatprep.subr.mxu0 0.0
        %2846 = vmatpush1.msra.mxu0 0.0
        %2847 = vmatprep.subr.mxu0 0.0
        %2848 = vmatpush1.msra.mxu0 0.0
        %2849 = vmatprep.subr.mxu0 0.0
        %2850 = vmatpush1.msra.mxu0 0.0
        %2851 = vmatprep.subr.mxu0 0.0
        %2852 = vmatpush1.msra.mxu0 0.0
        %2853 = vmatprep.subr.mxu0 0.0
        %2854 = vmatpush1.msra.mxu0 0.0
        %2855 = vmatprep.subr.mxu0 0.0
        %2856 = vmatpush1.msra.mxu0 0.0
        %2857 = vmatprep.subr.mxu0 0.0
        %2858 = vmatpush1.msra.mxu0 0.0
        %2859 = vmatprep.subr.mxu0 0.0
        %2860 = vmatpush1.msra.mxu0 0.0
        %2861 = vmatprep.subr.mxu0 0.0
        %2862 = vmatpush1.msra.mxu0 0.0
        %2863 = vmatprep.subr.mxu0 0.0
        %2864 = vmatpush1.msra.mxu0 0.0
        %2865 = vmatprep.subr.mxu0 0.0
        %2866 = vmatpush1.msra.mxu0 0.0
        %2867 = vmatprep.subr.mxu0 0.0
        %2868 = vmatpush1.msra.mxu0 0.0
        %2869 = vmatprep.subr.mxu0 0.0
        %2870 = vmatpush1.msra.mxu0 0.0
        %2871 = vmatprep.subr.mxu0 0.0
        %2872 = vmatpush1.msra.mxu0 0.0
        %2873 = vmatprep.subr.mxu0 0.0
        %2874 = vmatpush1.msra.mxu0 0.0
        %2875 = vmatprep.subr.mxu0 0.0
        %2876 = vmatpush1.msra.mxu0 0.0
        %2877 = vmatprep.subr.mxu0 0.0
        %2878 = vmatpush1.msra.mxu0 0.0
        %2879 = vmatprep.subr.mxu0 0.0
        %2880 = vmatpush1.msra.mxu0 0.0
        %2881 = vmatprep.subr.mxu0 0.0
        %2882 = vmatpush1.msra.mxu0 0.0
        %2883 = vmatprep.subr.mxu0 0.0
        %2884 = vmatpush1.msra.mxu0 0.0
        %2885 = vmatprep.subr.mxu0 0.0
        %2886 = vmatpush1.msra.mxu0 0.0
        %2887 = vmatprep.subr.mxu0 0.0
        %2888 = vmatpush1.msra.mxu0 0.0
        %2889 = vmatprep.subr.mxu0 0.0
        %2890 = vmatpush1.msra.mxu0 0.0
        %2891 = vmatprep.subr.mxu0 0.0
        %2892 = vmatpush1.msra.mxu0 0.0
        %2893 = vmatprep.subr.mxu0 0.0
        %2894 = vmatpush1.msra.mxu0 0.0
        %2895 = vmatprep.subr.mxu0 0.0
        %2896 = vmatpush1.msra.mxu0 0.0
        %2897 = vmatprep.subr.mxu0 0.0
        %2898 = vmatpush1.msra.mxu0 0.0
        %2899 = vmatprep.subr.mxu0 0.0
        %2900 = vmatpush1.msra.mxu0 0.0
        %2901 = vmatprep.subr.mxu0 0.0
        %2902 = vmatpush1.msra.mxu0 0.0
        %2903 = vmatprep.subr.mxu0 0.0
        %2904 = vmatpush1.msra.mxu0 0.0
        %2905 = vmatprep.subr.mxu0 0.0
        %2906 = vmatpush1.msra.mxu0 0.0
        %2907 = vmatprep.mubr.f32.mxu0 0.0
        %v2908 = vand.u32 %v2840, 4294901760
        %v2909 = vsub.f32 %v2840, %v2908
        %v2910 = vand.u32 %v2909, 4294901760
        %v2911 = vsub.f32 %v2909, %v2910
        %v2912 = vand.u32 %v2911, 4294901760
        %2913 = vmatmul.mubr.f32.gmra.mrb[0].mxu0 %v2912
        %v2914 = vpop.f32.mrb[0].mxu0
        %v2915 = vadd.f32 0.0, %v2914
        %v2916 = vpop.f32.mrb[0].mxu0
        %2917 = vdwg.mxu0
        %2918 = vmatprep.subr.mxu0 0.0
        %v2919 = vand.u32 %v344, 4294901760
        %v2920 = vsub.f32 %v344, %v2919
        %v2921 = vand.u32 %v2920, 4294901760
        %v2922 = vsub.f32 %v2920, %v2921
        %v2923 = vand.u32 %v2922, 4294901760
        %2924 = vmatpush1.msra.mxu0 %v2923
        %2925 = vmatprep.subr.mxu0 0.0
        %2926 = vmatpush1.msra.mxu0 0.0
        %2927 = vmatprep.subr.mxu0 0.0
        %2928 = vmatpush1.msra.mxu0 0.0
        %2929 = vmatprep.subr.mxu0 0.0
        %2930 = vmatpush1.msra.mxu0 0.0
        %2931 = vmatprep.subr.mxu0 0.0
        %2932 = vmatpush1.msra.mxu0 0.0
        %2933 = vmatprep.subr.mxu0 0.0
        %2934 = vmatpush1.msra.mxu0 0.0
        %2935 = vmatprep.subr.mxu0 0.0
        %2936 = vmatpush1.msra.mxu0 0.0
        %2937 = vmatprep.subr.mxu0 0.0
        %2938 = vmatpush1.msra.mxu0 0.0
        %2939 = vmatprep.subr.mxu0 0.0
        %2940 = vmatpush1.msra.mxu0 0.0
        %2941 = vmatprep.subr.mxu0 0.0
        %2942 = vmatpush1.msra.mxu0 0.0
        %2943 = vmatprep.subr.mxu0 0.0
        %2944 = vmatpush1.msra.mxu0 0.0
        %2945 = vmatprep.subr.mxu0 0.0
        %2946 = vmatpush1.msra.mxu0 0.0
        %2947 = vmatprep.subr.mxu0 0.0
        %2948 = vmatpush1.msra.mxu0 0.0
        %2949 = vmatprep.subr.mxu0 0.0
        %2950 = vmatpush1.msra.mxu0 0.0
        %2951 = vmatprep.subr.mxu0 0.0
        %2952 = vmatpush1.msra.mxu0 0.0
        %2953 = vmatprep.subr.mxu0 0.0
        %2954 = vmatpush1.msra.mxu0 0.0
        %2955 = vmatprep.subr.mxu0 0.0
        %2956 = vmatpush1.msra.mxu0 0.0
        %2957 = vmatprep.subr.mxu0 0.0
        %2958 = vmatpush1.msra.mxu0 0.0
        %2959 = vmatprep.subr.mxu0 0.0
        %2960 = vmatpush1.msra.mxu0 0.0
        %2961 = vmatprep.subr.mxu0 0.0
        %2962 = vmatpush1.msra.mxu0 0.0
        %2963 = vmatprep.subr.mxu0 0.0
        %2964 = vmatpush1.msra.mxu0 0.0
        %2965 = vmatprep.subr.mxu0 0.0
        %2966 = vmatpush1.msra.mxu0 0.0
        %2967 = vmatprep.subr.mxu0 0.0
        %2968 = vmatpush1.msra.mxu0 0.0
        %2969 = vmatprep.subr.mxu0 0.0
        %2970 = vmatpush1.msra.mxu0 0.0
        %2971 = vmatprep.subr.mxu0 0.0
        %2972 = vmatpush1.msra.mxu0 0.0
        %2973 = vmatprep.subr.mxu0 0.0
        %2974 = vmatpush1.msra.mxu0 0.0
        %2975 = vmatprep.subr.mxu0 0.0
        %2976 = vmatpush1.msra.mxu0 0.0
        %2977 = vmatprep.subr.mxu0 0.0
        %2978 = vmatpush1.msra.mxu0 0.0
        %2979 = vmatprep.subr.mxu0 0.0
        %2980 = vmatpush1.msra.mxu0 0.0
        %2981 = vmatprep.subr.mxu0 0.0
        %2982 = vmatpush1.msra.mxu0 0.0
        %2983 = vmatprep.subr.mxu0 0.0
        %2984 = vmatpush1.msra.mxu0 0.0
        %2985 = vmatprep.subr.mxu0 0.0
        %2986 = vmatpush1.msra.mxu0 0.0
        %2987 = vmatprep.mubr.f32.mxu0 0.0
        %v2988 = vand.u32 %v2840, 4294901760
        %2989 = vmatmul.mubr.f32.gmra.mrb[0].mxu0 %v2988
        %v2990 = vpop.f32.mrb[0].mxu0
        %v2991 = vadd.f32 %v2915, %v2990
        %v2992 = vpop.f32.mrb[0].mxu0
        %2993 = vdwg.mxu0
        %2994 = vmatprep.subr.mxu0 0.0
        %v2995 = vand.u32 %v344, 4294901760
        %v2996 = vsub.f32 %v344, %v2995
        %2997 = vmatpush1.msra.mxu0 %v2996
        %2998 = vmatprep.subr.mxu0 0.0
        %2999 = vmatpush1.msra.mxu0 0.0
        %3000 = vmatprep.subr.mxu0 0.0
        %3001 = vmatpush1.msra.mxu0 0.0
        %3002 = vmatprep.subr.mxu0 0.0
        %3003 = vmatpush1.msra.mxu0 0.0
        %3004 = vmatprep.subr.mxu0 0.0
        %3005 = vmatpush1.msra.mxu0 0.0
        %3006 = vmatprep.subr.mxu0 0.0
        %3007 = vmatpush1.msra.mxu0 0.0
        %3008 = vmatprep.subr.mxu0 0.0
        %3009 = vmatpush1.msra.mxu0 0.0
        %3010 = vmatprep.subr.mxu0 0.0
        %3011 = vmatpush1.msra.mxu0 0.0
        %3012 = vmatprep.subr.mxu0 0.0
        %3013 = vmatpush1.msra.mxu0 0.0
        %3014 = vmatprep.subr.mxu0 0.0
        %3015 = vmatpush1.msra.mxu0 0.0
        %3016 = vmatprep.subr.mxu0 0.0
        %3017 = vmatpush1.msra.mxu0 0.0
        %3018 = vmatprep.subr.mxu0 0.0
        %3019 = vmatpush1.msra.mxu0 0.0
        %3020 = vmatprep.subr.mxu0 0.0
        %3021 = vmatpush1.msra.mxu0 0.0
        %3022 = vmatprep.subr.mxu0 0.0
        %3023 = vmatpush1.msra.mxu0 0.0
        %3024 = vmatprep.subr.mxu0 0.0
        %3025 = vmatpush1.msra.mxu0 0.0
        %3026 = vmatprep.subr.mxu0 0.0
        %3027 = vmatpush1.msra.mxu0 0.0
        %3028 = vmatprep.subr.mxu0 0.0
        %3029 = vmatpush1.msra.mxu0 0.0
        %3030 = vmatprep.subr.mxu0 0.0
        %3031 = vmatpush1.msra.mxu0 0.0
        %3032 = vmatprep.subr.mxu0 0.0
        %3033 = vmatpush1.msra.mxu0 0.0
        %3034 = vmatprep.subr.mxu0 0.0
        %3035 = vmatpush1.msra.mxu0 0.0
        %3036 = vmatprep.subr.mxu0 0.0
        %3037 = vmatpush1.msra.mxu0 0.0
        %3038 = vmatprep.subr.mxu0 0.0
        %3039 = vmatpush1.msra.mxu0 0.0
        %3040 = vmatprep.subr.mxu0 0.0
        %3041 = vmatpush1.msra.mxu0 0.0
        %3042 = vmatprep.subr.mxu0 0.0
        %3043 = vmatpush1.msra.mxu0 0.0
        %3044 = vmatprep.subr.mxu0 0.0
        %3045 = vmatpush1.msra.mxu0 0.0
        %3046 = vmatprep.subr.mxu0 0.0
        %3047 = vmatpush1.msra.mxu0 0.0
        %3048 = vmatprep.subr.mxu0 0.0
        %3049 = vmatpush1.msra.mxu0 0.0
        %3050 = vmatprep.subr.mxu0 0.0
        %3051 = vmatpush1.msra.mxu0 0.0
        %3052 = vmatprep.subr.mxu0 0.0
        %3053 = vmatpush1.msra.mxu0 0.0
        %3054 = vmatprep.subr.mxu0 0.0
        %3055 = vmatpush1.msra.mxu0 0.0
        %3056 = vmatprep.subr.mxu0 0.0
        %3057 = vmatpush1.msra.mxu0 0.0
        %3058 = vmatprep.subr.mxu0 0.0
        %3059 = vmatpush1.msra.mxu0 0.0
        %3060 = vmatprep.mubr.f32.mxu0 0.0
        %v3061 = vand.u32 %v2840, 4294901760
        %v3062 = vsub.f32 %v2840, %v3061
        %3063 = vmatmul.mubr.f32.gmra.mrb[0].mxu0 %v3062
        %v3064 = vpop.f32.mrb[0].mxu0
        %v3065 = vadd.f32 %v2991, %v3064
        %v3066 = vpop.f32.mrb[0].mxu0
        %3067 = vdwg.mxu0
        %3068 = vmatprep.subr.mxu0 0.0
        %v3069 = vand.u32 %v344, 4294901760
        %3070 = vmatpush1.msra.mxu0 %v3069
        %3071 = vmatprep.subr.mxu0 0.0
        %3072 = vmatpush1.msra.mxu0 0.0
        %3073 = vmatprep.subr.mxu0 0.0
        %3074 = vmatpush1.msra.mxu0 0.0
        %3075 = vmatprep.subr.mxu0 0.0
        %3076 = vmatpush1.msra.mxu0 0.0
        %3077 = vmatprep.subr.mxu0 0.0
        %3078 = vmatpush1.msra.mxu0 0.0
        %3079 = vmatprep.subr.mxu0 0.0
        %3080 = vmatpush1.msra.mxu0 0.0
        %3081 = vmatprep.subr.mxu0 0.0
        %3082 = vmatpush1.msra.mxu0 0.0
        %3083 = vmatprep.subr.mxu0 0.0
        %3084 = vmatpush1.msra.mxu0 0.0
        %3085 = vmatprep.subr.mxu0 0.0
        %3086 = vmatpush1.msra.mxu0 0.0
        %3087 = vmatprep.subr.mxu0 0.0
        %3088 = vmatpush1.msra.mxu0 0.0
        %3089 = vmatprep.subr.mxu0 0.0
        %3090 = vmatpush1.msra.mxu0 0.0
        %3091 = vmatprep.subr.mxu0 0.0
        %3092 = vmatpush1.msra.mxu0 0.0
        %3093 = vmatprep.subr.mxu0 0.0
        %3094 = vmatpush1.msra.mxu0 0.0
        %3095 = vmatprep.subr.mxu0 0.0
        %3096 = vmatpush1.msra.mxu0 0.0
        %3097 = vmatprep.subr.mxu0 0.0
        %3098 = vmatpush1.msra.mxu0 0.0
        %3099 = vmatprep.subr.mxu0 0.0
        %3100 = vmatpush1.msra.mxu0 0.0
        %3101 = vmatprep.subr.mxu0 0.0
        %3102 = vmatpush1.msra.mxu0 0.0
        %3103 = vmatprep.subr.mxu0 0.0
        %3104 = vmatpush1.msra.mxu0 0.0
        %3105 = vmatprep.subr.mxu0 0.0
        %3106 = vmatpush1.msra.mxu0 0.0
        %3107 = vmatprep.subr.mxu0 0.0
        %3108 = vmatpush1.msra.mxu0 0.0
        %3109 = vmatprep.subr.mxu0 0.0
        %3110 = vmatpush1.msra.mxu0 0.0
        %3111 = vmatprep.subr.mxu0 0.0
        %3112 = vmatpush1.msra.mxu0 0.0
        %3113 = vmatprep.subr.mxu0 0.0
        %3114 = vmatpush1.msra.mxu0 0.0
        %3115 = vmatprep.subr.mxu0 0.0
        %3116 = vmatpush1.msra.mxu0 0.0
        %3117 = vmatprep.subr.mxu0 0.0
        %3118 = vmatpush1.msra.mxu0 0.0
        %3119 = vmatprep.subr.mxu0 0.0
        %3120 = vmatpush1.msra.mxu0 0.0
        %3121 = vmatprep.subr.mxu0 0.0
        %3122 = vmatpush1.msra.mxu0 0.0
        %3123 = vmatprep.subr.mxu0 0.0
        %3124 = vmatpush1.msra.mxu0 0.0
        %3125 = vmatprep.subr.mxu0 0.0
        %3126 = vmatpush1.msra.mxu0 0.0
        %3127 = vmatprep.subr.mxu0 0.0
        %3128 = vmatpush1.msra.mxu0 0.0
        %3129 = vmatprep.subr.mxu0 0.0
        %3130 = vmatpush1.msra.mxu0 0.0
        %3131 = vmatprep.subr.mxu0 0.0
        %3132 = vmatpush1.msra.mxu0 0.0
        %3133 = vmatprep.mubr.f32.mxu0 0.0
        %v3134 = vand.u32 %v2840, 4294901760
        %v3135 = vsub.f32 %v2840, %v3134
        %v3136 = vand.u32 %v3135, 4294901760
        %3137 = vmatmul.mubr.f32.gmra.mrb[0].mxu0 %v3136
        %v3138 = vpop.f32.mrb[0].mxu0
        %v3139 = vadd.f32 %v3065, %v3138
        %v3140 = vpop.f32.mrb[0].mxu0
        %3141 = vdwg.mxu0
        %3142 = vmatprep.subr.mxu0 0.0
        %v3143 = vand.u32 %v344, 4294901760
        %v3144 = vsub.f32 %v344, %v3143
        %v3145 = vand.u32 %v3144, 4294901760
        %3146 = vmatpush1.msra.mxu0 %v3145
        %3147 = vmatprep.subr.mxu0 0.0
        %3148 = vmatpush1.msra.mxu0 0.0
        %3149 = vmatprep.subr.mxu0 0.0
        %3150 = vmatpush1.msra.mxu0 0.0
        %3151 = vmatprep.subr.mxu0 0.0
        %3152 = vmatpush1.msra.mxu0 0.0
        %3153 = vmatprep.subr.mxu0 0.0
        %3154 = vmatpush1.msra.mxu0 0.0
        %3155 = vmatprep.subr.mxu0 0.0
        %3156 = vmatpush1.msra.mxu0 0.0
        %3157 = vmatprep.subr.mxu0 0.0
        %3158 = vmatpush1.msra.mxu0 0.0
        %3159 = vmatprep.subr.mxu0 0.0
        %3160 = vmatpush1.msra.mxu0 0.0
        %3161 = vmatprep.subr.mxu0 0.0
        %3162 = vmatpush1.msra.mxu0 0.0
        %3163 = vmatprep.subr.mxu0 0.0
        %3164 = vmatpush1.msra.mxu0 0.0
        %3165 = vmatprep.subr.mxu0 0.0
        %3166 = vmatpush1.msra.mxu0 0.0
        %3167 = vmatprep.subr.mxu0 0.0
        %3168 = vmatpush1.msra.mxu0 0.0
        %3169 = vmatprep.subr.mxu0 0.0
        %3170 = vmatpush1.msra.mxu0 0.0
        %3171 = vmatprep.subr.mxu0 0.0
        %3172 = vmatpush1.msra.mxu0 0.0
        %3173 = vmatprep.subr.mxu0 0.0
        %3174 = vmatpush1.msra.mxu0 0.0
        %3175 = vmatprep.subr.mxu0 0.0
        %3176 = vmatpush1.msra.mxu0 0.0
        %3177 = vmatprep.subr.mxu0 0.0
        %3178 = vmatpush1.msra.mxu0 0.0
        %3179 = vmatprep.subr.mxu0 0.0
        %3180 = vmatpush1.msra.mxu0 0.0
        %3181 = vmatprep.subr.mxu0 0.0
        %3182 = vmatpush1.msra.mxu0 0.0
        %3183 = vmatprep.subr.mxu0 0.0
        %3184 = vmatpush1.msra.mxu0 0.0
        %3185 = vmatprep.subr.mxu0 0.0
        %3186 = vmatpush1.msra.mxu0 0.0
        %3187 = vmatprep.subr.mxu0 0.0
        %3188 = vmatpush1.msra.mxu0 0.0
        %3189 = vmatprep.subr.mxu0 0.0
        %3190 = vmatpush1.msra.mxu0 0.0
        %3191 = vmatprep.subr.mxu0 0.0
        %3192 = vmatpush1.msra.mxu0 0.0
        %3193 = vmatprep.subr.mxu0 0.0
        %3194 = vmatpush1.msra.mxu0 0.0
        %3195 = vmatprep.subr.mxu0 0.0
        %3196 = vmatpush1.msra.mxu0 0.0
        %3197 = vmatprep.subr.mxu0 0.0
        %3198 = vmatpush1.msra.mxu0 0.0
        %3199 = vmatprep.subr.mxu0 0.0
        %3200 = vmatpush1.msra.mxu0 0.0
        %3201 = vmatprep.subr.mxu0 0.0
        %3202 = vmatpush1.msra.mxu0 0.0
        %3203 = vmatprep.subr.mxu0 0.0
        %3204 = vmatpush1.msra.mxu0 0.0
        %3205 = vmatprep.subr.mxu0 0.0
        %3206 = vmatpush1.msra.mxu0 0.0
        %3207 = vmatprep.subr.mxu0 0.0
        %3208 = vmatpush1.msra.mxu0 0.0
        %3209 = vmatprep.mubr.f32.mxu0 0.0
        %v3210 = vand.u32 %v2840, 4294901760
        %3211 = vmatmul.mubr.f32.gmra.mrb[0].mxu0 %v3210
        %v3212 = vpop.f32.mrb[0].mxu0
        %v3213 = vadd.f32 %v3139, %v3212
        %v3214 = vpop.f32.mrb[0].mxu0
        %3215 = vdwg.mxu0
        %3216 = vmatprep.subr.mxu0 0.0
        %v3217 = vand.u32 %v344, 4294901760
        %3218 = vmatpush1.msra.mxu0 %v3217
        %3219 = vmatprep.subr.mxu0 0.0
        %3220 = vmatpush1.msra.mxu0 0.0
        %3221 = vmatprep.subr.mxu0 0.0
        %3222 = vmatpush1.msra.mxu0 0.0
        %3223 = vmatprep.subr.mxu0 0.0
        %3224 = vmatpush1.msra.mxu0 0.0
        %3225 = vmatprep.subr.mxu0 0.0
        %3226 = vmatpush1.msra.mxu0 0.0
        %3227 = vmatprep.subr.mxu0 0.0
        %3228 = vmatpush1.msra.mxu0 0.0
        %3229 = vmatprep.subr.mxu0 0.0
        %3230 = vmatpush1.msra.mxu0 0.0
        %3231 = vmatprep.subr.mxu0 0.0
        %3232 = vmatpush1.msra.mxu0 0.0
        %3233 = vmatprep.subr.mxu0 0.0
        %3234 = vmatpush1.msra.mxu0 0.0
        %3235 = vmatprep.subr.mxu0 0.0
        %3236 = vmatpush1.msra.mxu0 0.0
        %3237 = vmatprep.subr.mxu0 0.0
        %3238 = vmatpush1.msra.mxu0 0.0
        %3239 = vmatprep.subr.mxu0 0.0
        %3240 = vmatpush1.msra.mxu0 0.0
        %3241 = vmatprep.subr.mxu0 0.0
        %3242 = vmatpush1.msra.mxu0 0.0
        %3243 = vmatprep.subr.mxu0 0.0
        %3244 = vmatpush1.msra.mxu0 0.0
        %3245 = vmatprep.subr.mxu0 0.0
        %3246 = vmatpush1.msra.mxu0 0.0
        %3247 = vmatprep.subr.mxu0 0.0
        %3248 = vmatpush1.msra.mxu0 0.0
        %3249 = vmatprep.subr.mxu0 0.0
        %3250 = vmatpush1.msra.mxu0 0.0
        %3251 = vmatprep.subr.mxu0 0.0
        %3252 = vmatpush1.msra.mxu0 0.0
        %3253 = vmatprep.subr.mxu0 0.0
        %3254 = vmatpush1.msra.mxu0 0.0
        %3255 = vmatprep.subr.mxu0 0.0
        %3256 = vmatpush1.msra.mxu0 0.0
        %3257 = vmatprep.subr.mxu0 0.0
        %3258 = vmatpush1.msra.mxu0 0.0
        %3259 = vmatprep.subr.mxu0 0.0
        %3260 = vmatpush1.msra.mxu0 0.0
        %3261 = vmatprep.subr.mxu0 0.0
        %3262 = vmatpush1.msra.mxu0 0.0
        %3263 = vmatprep.subr.mxu0 0.0
        %3264 = vmatpush1.msra.mxu0 0.0
        %3265 = vmatprep.subr.mxu0 0.0
        %3266 = vmatpush1.msra.mxu0 0.0
        %3267 = vmatprep.subr.mxu0 0.0
        %3268 = vmatpush1.msra.mxu0 0.0
        %3269 = vmatprep.subr.mxu0 0.0
        %3270 = vmatpush1.msra.mxu0 0.0
        %3271 = vmatprep.subr.mxu0 0.0
        %3272 = vmatpush1.msra.mxu0 0.0
        %3273 = vmatprep.subr.mxu0 0.0
        %3274 = vmatpush1.msra.mxu0 0.0
        %3275 = vmatprep.subr.mxu0 0.0
        %3276 = vmatpush1.msra.mxu0 0.0
        %3277 = vmatprep.subr.mxu0 0.0
        %3278 = vmatpush1.msra.mxu0 0.0
        %3279 = vmatprep.subr.mxu0 0.0
        %3280 = vmatpush1.msra.mxu0 0.0
        %3281 = vmatprep.mubr.f32.mxu0 0.0
        %v3282 = vand.u32 %v2840, 4294901760
        %3283 = vmatmul.mubr.f32.gmra.mrb[0].mxu0 %v3282
        %v3284 = vpop.f32.mrb[0].mxu0
        %v3285 = vadd.f32 %v3213, %v3284
        %v3286 = vpop.f32.mrb[0].mxu0
        %3287 = vdwg.mxu0
        %v3289 = vsel %vm994, %v2822, 0
        %3291 = vmatprep.subr.mxu0 0.0
        %v3292 = vand.u32 %v345, 4294901760
        %3293 = vmatpush1.msra.mxu0 %v3292
        %3294 = vmatprep.subr.mxu0 0.0
        %3295 = vmatpush1.msra.mxu0 0.0
        %3296 = vmatprep.subr.mxu0 0.0
        %3297 = vmatpush1.msra.mxu0 0.0
        %3298 = vmatprep.subr.mxu0 0.0
        %3299 = vmatpush1.msra.mxu0 0.0
        %3300 = vmatprep.subr.mxu0 0.0
        %3301 = vmatpush1.msra.mxu0 0.0
        %3302 = vmatprep.subr.mxu0 0.0
        %3303 = vmatpush1.msra.mxu0 0.0
        %3304 = vmatprep.subr.mxu0 0.0
        %3305 = vmatpush1.msra.mxu0 0.0
        %3306 = vmatprep.subr.mxu0 0.0
        %3307 = vmatpush1.msra.mxu0 0.0
        %3308 = vmatprep.subr.mxu0 0.0
        %3309 = vmatpush1.msra.mxu0 0.0
        %3310 = vmatprep.subr.mxu0 0.0
        %3311 = vmatpush1.msra.mxu0 0.0
        %3312 = vmatprep.subr.mxu0 0.0
        %3313 = vmatpush1.msra.mxu0 0.0
        %3314 = vmatprep.subr.mxu0 0.0
        %3315 = vmatpush1.msra.mxu0 0.0
        %3316 = vmatprep.subr.mxu0 0.0
        %3317 = vmatpush1.msra.mxu0 0.0
        %3318 = vmatprep.subr.mxu0 0.0
        %3319 = vmatpush1.msra.mxu0 0.0
        %3320 = vmatprep.subr.mxu0 0.0
        %3321 = vmatpush1.msra.mxu0 0.0
        %3322 = vmatprep.subr.mxu0 0.0
        %3323 = vmatpush1.msra.mxu0 0.0
        %3324 = vmatprep.subr.mxu0 0.0
        %3325 = vmatpush1.msra.mxu0 0.0
        %3326 = vmatprep.subr.mxu0 0.0
        %3327 = vmatpush1.msra.mxu0 0.0
        %3328 = vmatprep.subr.mxu0 0.0
        %3329 = vmatpush1.msra.mxu0 0.0
        %3330 = vmatprep.subr.mxu0 0.0
        %3331 = vmatpush1.msra.mxu0 0.0
        %3332 = vmatprep.subr.mxu0 0.0
        %3333 = vmatpush1.msra.mxu0 0.0
        %3334 = vmatprep.subr.mxu0 0.0
        %3335 = vmatpush1.msra.mxu0 0.0
        %3336 = vmatprep.subr.mxu0 0.0
        %3337 = vmatpush1.msra.mxu0 0.0
        %3338 = vmatprep.subr.mxu0 0.0
        %3339 = vmatpush1.msra.mxu0 0.0
        %3340 = vmatprep.subr.mxu0 0.0
        %3341 = vmatpush1.msra.mxu0 0.0
        %3342 = vmatprep.subr.mxu0 0.0
        %3343 = vmatpush1.msra.mxu0 0.0
        %3344 = vmatprep.subr.mxu0 0.0
        %3345 = vmatpush1.msra.mxu0 0.0
        %3346 = vmatprep.subr.mxu0 0.0
        %3347 = vmatpush1.msra.mxu0 0.0
        %3348 = vmatprep.subr.mxu0 0.0
        %3349 = vmatpush1.msra.mxu0 0.0
        %3350 = vmatprep.subr.mxu0 0.0
        %3351 = vmatpush1.msra.mxu0 0.0
        %3352 = vmatprep.subr.mxu0 0.0
        %3353 = vmatpush1.msra.mxu0 0.0
        %3354 = vmatprep.subr.mxu0 0.0
        %3355 = vmatpush1.msra.mxu0 0.0
        %3356 = vmatprep.mubr.f32.mxu0 0.0
        %v3357 = vand.u32 %v3289, 4294901760
        %v3358 = vsub.f32 %v3289, %v3357
        %v3359 = vand.u32 %v3358, 4294901760
        %v3360 = vsub.f32 %v3358, %v3359
        %v3361 = vand.u32 %v3360, 4294901760
        %3362 = vmatmul.mubr.f32.gmra.mrb[0].mxu0 %v3361
        %v3363 = vpop.f32.mrb[0].mxu0
        %v3364 = vadd.f32 0.0, %v3363
        %v3365 = vpop.f32.mrb[0].mxu0
        %3366 = vdwg.mxu0
        %3367 = vmatprep.subr.mxu0 0.0
        %v3368 = vand.u32 %v345, 4294901760
        %v3369 = vsub.f32 %v345, %v3368
        %v3370 = vand.u32 %v3369, 4294901760
        %v3371 = vsub.f32 %v3369, %v3370
        %v3372 = vand.u32 %v3371, 4294901760
        %3373 = vmatpush1.msra.mxu0 %v3372
        %3374 = vmatprep.subr.mxu0 0.0
        %3375 = vmatpush1.msra.mxu0 0.0
        %3376 = vmatprep.subr.mxu0 0.0
        %3377 = vmatpush1.msra.mxu0 0.0
        %3378 = vmatprep.subr.mxu0 0.0
        %3379 = vmatpush1.msra.mxu0 0.0
        %3380 = vmatprep.subr.mxu0 0.0
        %3381 = vmatpush1.msra.mxu0 0.0
        %3382 = vmatprep.subr.mxu0 0.0
        %3383 = vmatpush1.msra.mxu0 0.0
        %3384 = vmatprep.subr.mxu0 0.0
        %3385 = vmatpush1.msra.mxu0 0.0
        %3386 = vmatprep.subr.mxu0 0.0
        %3387 = vmatpush1.msra.mxu0 0.0
        %3388 = vmatprep.subr.mxu0 0.0
        %3389 = vmatpush1.msra.mxu0 0.0
        %3390 = vmatprep.subr.mxu0 0.0
        %3391 = vmatpush1.msra.mxu0 0.0
        %3392 = vmatprep.subr.mxu0 0.0
        %3393 = vmatpush1.msra.mxu0 0.0
        %3394 = vmatprep.subr.mxu0 0.0
        %3395 = vmatpush1.msra.mxu0 0.0
        %3396 = vmatprep.subr.mxu0 0.0
        %3397 = vmatpush1.msra.mxu0 0.0
        %3398 = vmatprep.subr.mxu0 0.0
        %3399 = vmatpush1.msra.mxu0 0.0
        %3400 = vmatprep.subr.mxu0 0.0
        %3401 = vmatpush1.msra.mxu0 0.0
        %3402 = vmatprep.subr.mxu0 0.0
        %3403 = vmatpush1.msra.mxu0 0.0
        %3404 = vmatprep.subr.mxu0 0.0
        %3405 = vmatpush1.msra.mxu0 0.0
        %3406 = vmatprep.subr.mxu0 0.0
        %3407 = vmatpush1.msra.mxu0 0.0
        %3408 = vmatprep.subr.mxu0 0.0
        %3409 = vmatpush1.msra.mxu0 0.0
        %3410 = vmatprep.subr.mxu0 0.0
        %3411 = vmatpush1.msra.mxu0 0.0
        %3412 = vmatprep.subr.mxu0 0.0
        %3413 = vmatpush1.msra.mxu0 0.0
        %3414 = vmatprep.subr.mxu0 0.0
        %3415 = vmatpush1.msra.mxu0 0.0
        %3416 = vmatprep.subr.mxu0 0.0
        %3417 = vmatpush1.msra.mxu0 0.0
        %3418 = vmatprep.subr.mxu0 0.0
        %3419 = vmatpush1.msra.mxu0 0.0
        %3420 = vmatprep.subr.mxu0 0.0
        %3421 = vmatpush1.msra.mxu0 0.0
        %3422 = vmatprep.subr.mxu0 0.0
        %3423 = vmatpush1.msra.mxu0 0.0
        %3424 = vmatprep.subr.mxu0 0.0
        %3425 = vmatpush1.msra.mxu0 0.0
        %3426 = vmatprep.subr.mxu0 0.0
        %3427 = vmatpush1.msra.mxu0 0.0
        %3428 = vmatprep.subr.mxu0 0.0
        %3429 = vmatpush1.msra.mxu0 0.0
        %3430 = vmatprep.subr.mxu0 0.0
        %3431 = vmatpush1.msra.mxu0 0.0
        %3432 = vmatprep.subr.mxu0 0.0
        %3433 = vmatpush1.msra.mxu0 0.0
        %3434 = vmatprep.subr.mxu0 0.0
        %3435 = vmatpush1.msra.mxu0 0.0
        %3436 = vmatprep.mubr.f32.mxu0 0.0
        %v3437 = vand.u32 %v3289, 4294901760
        %3438 = vmatmul.mubr.f32.gmra.mrb[0].mxu0 %v3437
        %v3439 = vpop.f32.mrb[0].mxu0
        %v3440 = vadd.f32 %v3364, %v3439
        %v3441 = vpop.f32.mrb[0].mxu0
        %3442 = vdwg.mxu0
        %3443 = vmatprep.subr.mxu0 0.0
        %v3444 = vand.u32 %v345, 4294901760
        %v3445 = vsub.f32 %v345, %v3444
        %3446 = vmatpush1.msra.mxu0 %v3445
        %3447 = vmatprep.subr.mxu0 0.0
        %3448 = vmatpush1.msra.mxu0 0.0
        %3449 = vmatprep.subr.mxu0 0.0
        %3450 = vmatpush1.msra.mxu0 0.0
        %3451 = vmatprep.subr.mxu0 0.0
        %3452 = vmatpush1.msra.mxu0 0.0
        %3453 = vmatprep.subr.mxu0 0.0
        %3454 = vmatpush1.msra.mxu0 0.0
        %3455 = vmatprep.subr.mxu0 0.0
        %3456 = vmatpush1.msra.mxu0 0.0
        %3457 = vmatprep.subr.mxu0 0.0
        %3458 = vmatpush1.msra.mxu0 0.0
        %3459 = vmatprep.subr.mxu0 0.0
        %3460 = vmatpush1.msra.mxu0 0.0
        %3461 = vmatprep.subr.mxu0 0.0
        %3462 = vmatpush1.msra.mxu0 0.0
        %3463 = vmatprep.subr.mxu0 0.0
        %3464 = vmatpush1.msra.mxu0 0.0
        %3465 = vmatprep.subr.mxu0 0.0
        %3466 = vmatpush1.msra.mxu0 0.0
        %3467 = vmatprep.subr.mxu0 0.0
        %3468 = vmatpush1.msra.mxu0 0.0
        %3469 = vmatprep.subr.mxu0 0.0
        %3470 = vmatpush1.msra.mxu0 0.0
        %3471 = vmatprep.subr.mxu0 0.0
        %3472 = vmatpush1.msra.mxu0 0.0
        %3473 = vmatprep.subr.mxu0 0.0
        %3474 = vmatpush1.msra.mxu0 0.0
        %3475 = vmatprep.subr.mxu0 0.0
        %3476 = vmatpush1.msra.mxu0 0.0
        %3477 = vmatprep.subr.mxu0 0.0
        %3478 = vmatpush1.msra.mxu0 0.0
        %3479 = vmatprep.subr.mxu0 0.0
        %3480 = vmatpush1.msra.mxu0 0.0
        %3481 = vmatprep.subr.mxu0 0.0
        %3482 = vmatpush1.msra.mxu0 0.0
        %3483 = vmatprep.subr.mxu0 0.0
        %3484 = vmatpush1.msra.mxu0 0.0
        %3485 = vmatprep.subr.mxu0 0.0
        %3486 = vmatpush1.msra.mxu0 0.0
        %3487 = vmatprep.subr.mxu0 0.0
        %3488 = vmatpush1.msra.mxu0 0.0
        %3489 = vmatprep.subr.mxu0 0.0
        %3490 = vmatpush1.msra.mxu0 0.0
        %3491 = vmatprep.subr.mxu0 0.0
        %3492 = vmatpush1.msra.mxu0 0.0
        %3493 = vmatprep.subr.mxu0 0.0
        %3494 = vmatpush1.msra.mxu0 0.0
        %3495 = vmatprep.subr.mxu0 0.0
        %3496 = vmatpush1.msra.mxu0 0.0
        %3497 = vmatprep.subr.mxu0 0.0
        %3498 = vmatpush1.msra.mxu0 0.0
        %3499 = vmatprep.subr.mxu0 0.0
        %3500 = vmatpush1.msra.mxu0 0.0
        %3501 = vmatprep.subr.mxu0 0.0
        %3502 = vmatpush1.msra.mxu0 0.0
        %3503 = vmatprep.subr.mxu0 0.0
        %3504 = vmatpush1.msra.mxu0 0.0
        %3505 = vmatprep.subr.mxu0 0.0
        %3506 = vmatpush1.msra.mxu0 0.0
        %3507 = vmatprep.subr.mxu0 0.0
        %3508 = vmatpush1.msra.mxu0 0.0
        %3509 = vmatprep.mubr.f32.mxu0 0.0
        %v3510 = vand.u32 %v3289, 4294901760
        %v3511 = vsub.f32 %v3289, %v3510
        %3512 = vmatmul.mubr.f32.gmra.mrb[0].mxu0 %v3511
        %v3513 = vpop.f32.mrb[0].mxu0
        %v3514 = vadd.f32 %v3440, %v3513
        %v3515 = vpop.f32.mrb[0].mxu0
        %3516 = vdwg.mxu0
        %3517 = vmatprep.subr.mxu0 0.0
        %v3518 = vand.u32 %v345, 4294901760
        %3519 = vmatpush1.msra.mxu0 %v3518
        %3520 = vmatprep.subr.mxu0 0.0
        %3521 = vmatpush1.msra.mxu0 0.0
        %3522 = vmatprep.subr.mxu0 0.0
        %3523 = vmatpush1.msra.mxu0 0.0
        %3524 = vmatprep.subr.mxu0 0.0
        %3525 = vmatpush1.msra.mxu0 0.0
        %3526 = vmatprep.subr.mxu0 0.0
        %3527 = vmatpush1.msra.mxu0 0.0
        %3528 = vmatprep.subr.mxu0 0.0
        %3529 = vmatpush1.msra.mxu0 0.0
        %3530 = vmatprep.subr.mxu0 0.0
        %3531 = vmatpush1.msra.mxu0 0.0
        %3532 = vmatprep.subr.mxu0 0.0
        %3533 = vmatpush1.msra.mxu0 0.0
        %3534 = vmatprep.subr.mxu0 0.0
        %3535 = vmatpush1.msra.mxu0 0.0
        %3536 = vmatprep.subr.mxu0 0.0
        %3537 = vmatpush1.msra.mxu0 0.0
        %3538 = vmatprep.subr.mxu0 0.0
        %3539 = vmatpush1.msra.mxu0 0.0
        %3540 = vmatprep.subr.mxu0 0.0
        %3541 = vmatpush1.msra.mxu0 0.0
        %3542 = vmatprep.subr.mxu0 0.0
        %3543 = vmatpush1.msra.mxu0 0.0
        %3544 = vmatprep.subr.mxu0 0.0
        %3545 = vmatpush1.msra.mxu0 0.0
        %3546 = vmatprep.subr.mxu0 0.0
        %3547 = vmatpush1.msra.mxu0 0.0
        %3548 = vmatprep.subr.mxu0 0.0
        %3549 = vmatpush1.msra.mxu0 0.0
        %3550 = vmatprep.subr.mxu0 0.0
        %3551 = vmatpush1.msra.mxu0 0.0
        %3552 = vmatprep.subr.mxu0 0.0
        %3553 = vmatpush1.msra.mxu0 0.0
        %3554 = vmatprep.subr.mxu0 0.0
        %3555 = vmatpush1.msra.mxu0 0.0
        %3556 = vmatprep.subr.mxu0 0.0
        %3557 = vmatpush1.msra.mxu0 0.0
        %3558 = vmatprep.subr.mxu0 0.0
        %3559 = vmatpush1.msra.mxu0 0.0
        %3560 = vmatprep.subr.mxu0 0.0
        %3561 = vmatpush1.msra.mxu0 0.0
        %3562 = vmatprep.subr.mxu0 0.0
        %3563 = vmatpush1.msra.mxu0 0.0
        %3564 = vmatprep.subr.mxu0 0.0
        %3565 = vmatpush1.msra.mxu0 0.0
        %3566 = vmatprep.subr.mxu0 0.0
        %3567 = vmatpush1.msra.mxu0 0.0
        %3568 = vmatprep.subr.mxu0 0.0
        %3569 = vmatpush1.msra.mxu0 0.0
        %3570 = vmatprep.subr.mxu0 0.0
        %3571 = vmatpush1.msra.mxu0 0.0
        %3572 = vmatprep.subr.mxu0 0.0
        %3573 = vmatpush1.msra.mxu0 0.0
        %3574 = vmatprep.subr.mxu0 0.0
        %3575 = vmatpush1.msra.mxu0 0.0
        %3576 = vmatprep.subr.mxu0 0.0
        %3577 = vmatpush1.msra.mxu0 0.0
        %3578 = vmatprep.subr.mxu0 0.0
        %3579 = vmatpush1.msra.mxu0 0.0
        %3580 = vmatprep.subr.mxu0 0.0
        %3581 = vmatpush1.msra.mxu0 0.0
        %3582 = vmatprep.mubr.f32.mxu0 0.0
        %v3583 = vand.u32 %v3289, 4294901760
        %v3584 = vsub.f32 %v3289, %v3583
        %v3585 = vand.u32 %v3584, 4294901760
        %3586 = vmatmul.mubr.f32.gmra.mrb[0].mxu0 %v3585
        %v3587 = vpop.f32.mrb[0].mxu0
        %v3588 = vadd.f32 %v3514, %v3587
        %v3589 = vpop.f32.mrb[0].mxu0
        %3590 = vdwg.mxu0
        %3591 = vmatprep.subr.mxu0 0.0
        %v3592 = vand.u32 %v345, 4294901760
        %v3593 = vsub.f32 %v345, %v3592
        %v3594 = vand.u32 %v3593, 4294901760
        %3595 = vmatpush1.msra.mxu0 %v3594
        %3596 = vmatprep.subr.mxu0 0.0
        %3597 = vmatpush1.msra.mxu0 0.0
        %3598 = vmatprep.subr.mxu0 0.0
        %3599 = vmatpush1.msra.mxu0 0.0
        %3600 = vmatprep.subr.mxu0 0.0
        %3601 = vmatpush1.msra.mxu0 0.0
        %3602 = vmatprep.subr.mxu0 0.0
        %3603 = vmatpush1.msra.mxu0 0.0
        %3604 = vmatprep.subr.mxu0 0.0
        %3605 = vmatpush1.msra.mxu0 0.0
        %3606 = vmatprep.subr.mxu0 0.0
        %3607 = vmatpush1.msra.mxu0 0.0
        %3608 = vmatprep.subr.mxu0 0.0
        %3609 = vmatpush1.msra.mxu0 0.0
        %3610 = vmatprep.subr.mxu0 0.0
        %3611 = vmatpush1.msra.mxu0 0.0
        %3612 = vmatprep.subr.mxu0 0.0
        %3613 = vmatpush1.msra.mxu0 0.0
        %3614 = vmatprep.subr.mxu0 0.0
        %3615 = vmatpush1.msra.mxu0 0.0
        %3616 = vmatprep.subr.mxu0 0.0
        %3617 = vmatpush1.msra.mxu0 0.0
        %3618 = vmatprep.subr.mxu0 0.0
        %3619 = vmatpush1.msra.mxu0 0.0
        %3620 = vmatprep.subr.mxu0 0.0
        %3621 = vmatpush1.msra.mxu0 0.0
        %3622 = vmatprep.subr.mxu0 0.0
        %3623 = vmatpush1.msra.mxu0 0.0
        %3624 = vmatprep.subr.mxu0 0.0
        %3625 = vmatpush1.msra.mxu0 0.0
        %3626 = vmatprep.subr.mxu0 0.0
        %3627 = vmatpush1.msra.mxu0 0.0
        %3628 = vmatprep.subr.mxu0 0.0
        %3629 = vmatpush1.msra.mxu0 0.0
        %3630 = vmatprep.subr.mxu0 0.0
        %3631 = vmatpush1.msra.mxu0 0.0
        %3632 = vmatprep.subr.mxu0 0.0
        %3633 = vmatpush1.msra.mxu0 0.0
        %3634 = vmatprep.subr.mxu0 0.0
        %3635 = vmatpush1.msra.mxu0 0.0
        %3636 = vmatprep.subr.mxu0 0.0
        %3637 = vmatpush1.msra.mxu0 0.0
        %3638 = vmatprep.subr.mxu0 0.0
        %3639 = vmatpush1.msra.mxu0 0.0
        %3640 = vmatprep.subr.mxu0 0.0
        %3641 = vmatpush1.msra.mxu0 0.0
        %3642 = vmatprep.subr.mxu0 0.0
        %3643 = vmatpush1.msra.mxu0 0.0
        %3644 = vmatprep.subr.mxu0 0.0
        %3645 = vmatpush1.msra.mxu0 0.0
        %3646 = vmatprep.subr.mxu0 0.0
        %3647 = vmatpush1.msra.mxu0 0.0
        %3648 = vmatprep.subr.mxu0 0.0
        %3649 = vmatpush1.msra.mxu0 0.0
        %3650 = vmatprep.subr.mxu0 0.0
        %3651 = vmatpush1.msra.mxu0 0.0
        %3652 = vmatprep.subr.mxu0 0.0
        %3653 = vmatpush1.msra.mxu0 0.0
        %3654 = vmatprep.subr.mxu0 0.0
        %3655 = vmatpush1.msra.mxu0 0.0
        %3656 = vmatprep.subr.mxu0 0.0
        %3657 = vmatpush1.msra.mxu0 0.0
        %3658 = vmatprep.mubr.f32.mxu0 0.0
        %v3659 = vand.u32 %v3289, 4294901760
        %3660 = vmatmul.mubr.f32.gmra.mrb[0].mxu0 %v3659
        %v3661 = vpop.f32.mrb[0].mxu0
        %v3662 = vadd.f32 %v3588, %v3661
        %v3663 = vpop.f32.mrb[0].mxu0
        %3664 = vdwg.mxu0
        %3665 = vmatprep.subr.mxu0 0.0
        %v3666 = vand.u32 %v345, 4294901760
        %3667 = vmatpush1.msra.mxu0 %v3666
        %3668 = vmatprep.subr.mxu0 0.0
        %3669 = vmatpush1.msra.mxu0 0.0
        %3670 = vmatprep.subr.mxu0 0.0
        %3671 = vmatpush1.msra.mxu0 0.0
        %3672 = vmatprep.subr.mxu0 0.0
        %3673 = vmatpush1.msra.mxu0 0.0
        %3674 = vmatprep.subr.mxu0 0.0
        %3675 = vmatpush1.msra.mxu0 0.0
        %3676 = vmatprep.subr.mxu0 0.0
        %3677 = vmatpush1.msra.mxu0 0.0
        %3678 = vmatprep.subr.mxu0 0.0
        %3679 = vmatpush1.msra.mxu0 0.0
        %3680 = vmatprep.subr.mxu0 0.0
        %3681 = vmatpush1.msra.mxu0 0.0
        %3682 = vmatprep.subr.mxu0 0.0
        %3683 = vmatpush1.msra.mxu0 0.0
        %3684 = vmatprep.subr.mxu0 0.0
        %3685 = vmatpush1.msra.mxu0 0.0
        %3686 = vmatprep.subr.mxu0 0.0
        %3687 = vmatpush1.msra.mxu0 0.0
        %3688 = vmatprep.subr.mxu0 0.0
        %3689 = vmatpush1.msra.mxu0 0.0
        %3690 = vmatprep.subr.mxu0 0.0
        %3691 = vmatpush1.msra.mxu0 0.0
        %3692 = vmatprep.subr.mxu0 0.0
        %3693 = vmatpush1.msra.mxu0 0.0
        %3694 = vmatprep.subr.mxu0 0.0
        %3695 = vmatpush1.msra.mxu0 0.0
        %3696 = vmatprep.subr.mxu0 0.0
        %3697 = vmatpush1.msra.mxu0 0.0
        %3698 = vmatprep.subr.mxu0 0.0
        %3699 = vmatpush1.msra.mxu0 0.0
        %3700 = vmatprep.subr.mxu0 0.0
        %3701 = vmatpush1.msra.mxu0 0.0
        %3702 = vmatprep.subr.mxu0 0.0
        %3703 = vmatpush1.msra.mxu0 0.0
        %3704 = vmatprep.subr.mxu0 0.0
        %3705 = vmatpush1.msra.mxu0 0.0
        %3706 = vmatprep.subr.mxu0 0.0
        %3707 = vmatpush1.msra.mxu0 0.0
        %3708 = vmatprep.subr.mxu0 0.0
        %3709 = vmatpush1.msra.mxu0 0.0
        %3710 = vmatprep.subr.mxu0 0.0
        %3711 = vmatpush1.msra.mxu0 0.0
        %3712 = vmatprep.subr.mxu0 0.0
        %3713 = vmatpush1.msra.mxu0 0.0
        %3714 = vmatprep.subr.mxu0 0.0
        %3715 = vmatpush1.msra.mxu0 0.0
        %3716 = vmatprep.subr.mxu0 0.0
        %3717 = vmatpush1.msra.mxu0 0.0
        %3718 = vmatprep.subr.mxu0 0.0
        %3719 = vmatpush1.msra.mxu0 0.0
        %3720 = vmatprep.subr.mxu0 0.0
        %3721 = vmatpush1.msra.mxu0 0.0
        %3722 = vmatprep.subr.mxu0 0.0
        %3723 = vmatpush1.msra.mxu0 0.0
        %3724 = vmatprep.subr.mxu0 0.0
        %3725 = vmatpush1.msra.mxu0 0.0
        %3726 = vmatprep.subr.mxu0 0.0
        %3727 = vmatpush1.msra.mxu0 0.0
        %3728 = vmatprep.subr.mxu0 0.0
        %3729 = vmatpush1.msra.mxu0 0.0
        %3730 = vmatprep.mubr.f32.mxu0 0.0
        %v3731 = vand.u32 %v3289, 4294901760
        %3732 = vmatmul.mubr.f32.gmra.mrb[0].mxu0 %v3731
        %v3733 = vpop.f32.mrb[0].mxu0
        %v3734 = vadd.f32 %v3662, %v3733
        %v3735 = vpop.f32.mrb[0].mxu0
        %3736 = vdwg.mxu0
        %v3738 = vsel %vm994, %v2824, 0
        %3740 = vmatprep.subr.mxu0 0.0
        %v3741 = vand.u32 %v346, 4294901760
        %3742 = vmatpush1.msra.mxu0 %v3741
        %3743 = vmatprep.subr.mxu0 0.0
        %3744 = vmatpush1.msra.mxu0 0.0
        %3745 = vmatprep.subr.mxu0 0.0
        %3746 = vmatpush1.msra.mxu0 0.0
        %3747 = vmatprep.subr.mxu0 0.0
        %3748 = vmatpush1.msra.mxu0 0.0
        %3749 = vmatprep.subr.mxu0 0.0
        %3750 = vmatpush1.msra.mxu0 0.0
        %3751 = vmatprep.subr.mxu0 0.0
        %3752 = vmatpush1.msra.mxu0 0.0
        %3753 = vmatprep.subr.mxu0 0.0
        %3754 = vmatpush1.msra.mxu0 0.0
        %3755 = vmatprep.subr.mxu0 0.0
        %3756 = vmatpush1.msra.mxu0 0.0
        %3757 = vmatprep.subr.mxu0 0.0
        %3758 = vmatpush1.msra.mxu0 0.0
        %3759 = vmatprep.subr.mxu0 0.0
        %3760 = vmatpush1.msra.mxu0 0.0
        %3761 = vmatprep.subr.mxu0 0.0
        %3762 = vmatpush1.msra.mxu0 0.0
        %3763 = vmatprep.subr.mxu0 0.0
        %3764 = vmatpush1.msra.mxu0 0.0
        %3765 = vmatprep.subr.mxu0 0.0
        %3766 = vmatpush1.msra.mxu0 0.0
        %3767 = vmatprep.subr.mxu0 0.0
        %3768 = vmatpush1.msra.mxu0 0.0
        %3769 = vmatprep.subr.mxu0 0.0
        %3770 = vmatpush1.msra.mxu0 0.0
        %3771 = vmatprep.subr.mxu0 0.0
        %3772 = vmatpush1.msra.mxu0 0.0
        %3773 = vmatprep.subr.mxu0 0.0
        %3774 = vmatpush1.msra.mxu0 0.0
        %3775 = vmatprep.subr.mxu0 0.0
        %3776 = vmatpush1.msra.mxu0 0.0
        %3777 = vmatprep.subr.mxu0 0.0
        %3778 = vmatpush1.msra.mxu0 0.0
        %3779 = vmatprep.subr.mxu0 0.0
        %3780 = vmatpush1.msra.mxu0 0.0
        %3781 = vmatprep.subr.mxu0 0.0
        %3782 = vmatpush1.msra.mxu0 0.0
        %3783 = vmatprep.subr.mxu0 0.0
        %3784 = vmatpush1.msra.mxu0 0.0
        %3785 = vmatprep.subr.mxu0 0.0
        %3786 = vmatpush1.msra.mxu0 0.0
        %3787 = vmatprep.subr.mxu0 0.0
        %3788 = vmatpush1.msra.mxu0 0.0
        %3789 = vmatprep.subr.mxu0 0.0
        %3790 = vmatpush1.msra.mxu0 0.0
        %3791 = vmatprep.subr.mxu0 0.0
        %3792 = vmatpush1.msra.mxu0 0.0
        %3793 = vmatprep.subr.mxu0 0.0
        %3794 = vmatpush1.msra.mxu0 0.0
        %3795 = vmatprep.subr.mxu0 0.0
        %3796 = vmatpush1.msra.mxu0 0.0
        %3797 = vmatprep.subr.mxu0 0.0
        %3798 = vmatpush1.msra.mxu0 0.0
        %3799 = vmatprep.subr.mxu0 0.0
        %3800 = vmatpush1.msra.mxu0 0.0
        %3801 = vmatprep.subr.mxu0 0.0
        %3802 = vmatpush1.msra.mxu0 0.0
        %3803 = vmatprep.subr.mxu0 0.0
        %3804 = vmatpush1.msra.mxu0 0.0
        %3805 = vmatprep.mubr.f32.mxu0 0.0
        %v3806 = vand.u32 %v3738, 4294901760
        %v3807 = vsub.f32 %v3738, %v3806
        %v3808 = vand.u32 %v3807, 4294901760
        %v3809 = vsub.f32 %v3807, %v3808
        %v3810 = vand.u32 %v3809, 4294901760
        %3811 = vmatmul.mubr.f32.gmra.mrb[0].mxu0 %v3810
        %v3812 = vpop.f32.mrb[0].mxu0
        %v3813 = vadd.f32 0.0, %v3812
        %v3814 = vpop.f32.mrb[0].mxu0
        %3815 = vdwg.mxu0
        %3816 = vmatprep.subr.mxu0 0.0
        %v3817 = vand.u32 %v346, 4294901760
        %v3818 = vsub.f32 %v346, %v3817
        %v3819 = vand.u32 %v3818, 4294901760
        %v3820 = vsub.f32 %v3818, %v3819
        %v3821 = vand.u32 %v3820, 4294901760
        %3822 = vmatpush1.msra.mxu0 %v3821
        %3823 = vmatprep.subr.mxu0 0.0
        %3824 = vmatpush1.msra.mxu0 0.0
        %3825 = vmatprep.subr.mxu0 0.0
        %3826 = vmatpush1.msra.mxu0 0.0
        %3827 = vmatprep.subr.mxu0 0.0
        %3828 = vmatpush1.msra.mxu0 0.0
        %3829 = vmatprep.subr.mxu0 0.0
        %3830 = vmatpush1.msra.mxu0 0.0
        %3831 = vmatprep.subr.mxu0 0.0
        %3832 = vmatpush1.msra.mxu0 0.0
        %3833 = vmatprep.subr.mxu0 0.0
        %3834 = vmatpush1.msra.mxu0 0.0
        %3835 = vmatprep.subr.mxu0 0.0
        %3836 = vmatpush1.msra.mxu0 0.0
        %3837 = vmatprep.subr.mxu0 0.0
        %3838 = vmatpush1.msra.mxu0 0.0
        %3839 = vmatprep.subr.mxu0 0.0
        %3840 = vmatpush1.msra.mxu0 0.0
        %3841 = vmatprep.subr.mxu0 0.0
        %3842 = vmatpush1.msra.mxu0 0.0
        %3843 = vmatprep.subr.mxu0 0.0
        %3844 = vmatpush1.msra.mxu0 0.0
        %3845 = vmatprep.subr.mxu0 0.0
        %3846 = vmatpush1.msra.mxu0 0.0
        %3847 = vmatprep.subr.mxu0 0.0
        %3848 = vmatpush1.msra.mxu0 0.0
        %3849 = vmatprep.subr.mxu0 0.0
        %3850 = vmatpush1.msra.mxu0 0.0
        %3851 = vmatprep.subr.mxu0 0.0
        %3852 = vmatpush1.msra.mxu0 0.0
        %3853 = vmatprep.subr.mxu0 0.0
        %3854 = vmatpush1.msra.mxu0 0.0
        %3855 = vmatprep.subr.mxu0 0.0
        %3856 = vmatpush1.msra.mxu0 0.0
        %3857 = vmatprep.subr.mxu0 0.0
        %3858 = vmatpush1.msra.mxu0 0.0
        %3859 = vmatprep.subr.mxu0 0.0
        %3860 = vmatpush1.msra.mxu0 0.0
        %3861 = vmatprep.subr.mxu0 0.0
        %3862 = vmatpush1.msra.mxu0 0.0
        %3863 = vmatprep.subr.mxu0 0.0
        %3864 = vmatpush1.msra.mxu0 0.0
        %3865 = vmatprep.subr.mxu0 0.0
        %3866 = vmatpush1.msra.mxu0 0.0
        %3867 = vmatprep.subr.mxu0 0.0
        %3868 = vmatpush1.msra.mxu0 0.0
        %3869 = vmatprep.subr.mxu0 0.0
        %3870 = vmatpush1.msra.mxu0 0.0
        %3871 = vmatprep.subr.mxu0 0.0
        %3872 = vmatpush1.msra.mxu0 0.0
        %3873 = vmatprep.subr.mxu0 0.0
        %3874 = vmatpush1.msra.mxu0 0.0
        %3875 = vmatprep.subr.mxu0 0.0
        %3876 = vmatpush1.msra.mxu0 0.0
        %3877 = vmatprep.subr.mxu0 0.0
        %3878 = vmatpush1.msra.mxu0 0.0
        %3879 = vmatprep.subr.mxu0 0.0
        %3880 = vmatpush1.msra.mxu0 0.0
        %3881 = vmatprep.subr.mxu0 0.0
        %3882 = vmatpush1.msra.mxu0 0.0
        %3883 = vmatprep.subr.mxu0 0.0
        %3884 = vmatpush1.msra.mxu0 0.0
        %3885 = vmatprep.mubr.f32.mxu0 0.0
        %v3886 = vand.u32 %v3738, 4294901760
        %3887 = vmatmul.mubr.f32.gmra.mrb[0].mxu0 %v3886
        %v3888 = vpop.f32.mrb[0].mxu0
        %v3889 = vadd.f32 %v3813, %v3888
        %v3890 = vpop.f32.mrb[0].mxu0
        %3891 = vdwg.mxu0
        %3892 = vmatprep.subr.mxu0 0.0
        %v3893 = vand.u32 %v346, 4294901760
        %v3894 = vsub.f32 %v346, %v3893
        %3895 = vmatpush1.msra.mxu0 %v3894
        %3896 = vmatprep.subr.mxu0 0.0
        %3897 = vmatpush1.msra.mxu0 0.0
        %3898 = vmatprep.subr.mxu0 0.0
        %3899 = vmatpush1.msra.mxu0 0.0
        %3900 = vmatprep.subr.mxu0 0.0
        %3901 = vmatpush1.msra.mxu0 0.0
        %3902 = vmatprep.subr.mxu0 0.0
        %3903 = vmatpush1.msra.mxu0 0.0
        %3904 = vmatprep.subr.mxu0 0.0
        %3905 = vmatpush1.msra.mxu0 0.0
        %3906 = vmatprep.subr.mxu0 0.0
        %3907 = vmatpush1.msra.mxu0 0.0
        %3908 = vmatprep.subr.mxu0 0.0
        %3909 = vmatpush1.msra.mxu0 0.0
        %3910 = vmatprep.subr.mxu0 0.0
        %3911 = vmatpush1.msra.mxu0 0.0
        %3912 = vmatprep.subr.mxu0 0.0
        %3913 = vmatpush1.msra.mxu0 0.0
        %3914 = vmatprep.subr.mxu0 0.0
        %3915 = vmatpush1.msra.mxu0 0.0
        %3916 = vmatprep.subr.mxu0 0.0
        %3917 = vmatpush1.msra.mxu0 0.0
        %3918 = vmatprep.subr.mxu0 0.0
        %3919 = vmatpush1.msra.mxu0 0.0
        %3920 = vmatprep.subr.mxu0 0.0
        %3921 = vmatpush1.msra.mxu0 0.0
        %3922 = vmatprep.subr.mxu0 0.0
        %3923 = vmatpush1.msra.mxu0 0.0
        %3924 = vmatprep.subr.mxu0 0.0
        %3925 = vmatpush1.msra.mxu0 0.0
        %3926 = vmatprep.subr.mxu0 0.0
        %3927 = vmatpush1.msra.mxu0 0.0
        %3928 = vmatprep.subr.mxu0 0.0
        %3929 = vmatpush1.msra.mxu0 0.0
        %3930 = vmatprep.subr.mxu0 0.0
        %3931 = vmatpush1.msra.mxu0 0.0
        %3932 = vmatprep.subr.mxu0 0.0
        %3933 = vmatpush1.msra.mxu0 0.0
        %3934 = vmatprep.subr.mxu0 0.0
        %3935 = vmatpush1.msra.mxu0 0.0
        %3936 = vmatprep.subr.mxu0 0.0
        %3937 = vmatpush1.msra.mxu0 0.0
        %3938 = vmatprep.subr.mxu0 0.0
        %3939 = vmatpush1.msra.mxu0 0.0
        %3940 = vmatprep.subr.mxu0 0.0
        %3941 = vmatpush1.msra.mxu0 0.0
        %3942 = vmatprep.subr.mxu0 0.0
        %3943 = vmatpush1.msra.mxu0 0.0
        %3944 = vmatprep.subr.mxu0 0.0
        %3945 = vmatpush1.msra.mxu0 0.0
        %3946 = vmatprep.subr.mxu0 0.0
        %3947 = vmatpush1.msra.mxu0 0.0
        %3948 = vmatprep.subr.mxu0 0.0
        %3949 = vmatpush1.msra.mxu0 0.0
        %3950 = vmatprep.subr.mxu0 0.0
        %3951 = vmatpush1.msra.mxu0 0.0
        %3952 = vmatprep.subr.mxu0 0.0
        %3953 = vmatpush1.msra.mxu0 0.0
        %3954 = vmatprep.subr.mxu0 0.0
        %3955 = vmatpush1.msra.mxu0 0.0
        %3956 = vmatprep.subr.mxu0 0.0
        %3957 = vmatpush1.msra.mxu0 0.0
        %3958 = vmatprep.mubr.f32.mxu0 0.0
        %v3959 = vand.u32 %v3738, 4294901760
        %v3960 = vsub.f32 %v3738, %v3959
        %3961 = vmatmul.mubr.f32.gmra.mrb[0].mxu0 %v3960
        %v3962 = vpop.f32.mrb[0].mxu0
        %v3963 = vadd.f32 %v3889, %v3962
        %v3964 = vpop.f32.mrb[0].mxu0
        %3965 = vdwg.mxu0
        %3966 = vmatprep.subr.mxu0 0.0
        %v3967 = vand.u32 %v346, 4294901760
        %3968 = vmatpush1.msra.mxu0 %v3967
        %3969 = vmatprep.subr.mxu0 0.0
        %3970 = vmatpush1.msra.mxu0 0.0
        %3971 = vmatprep.subr.mxu0 0.0
        %3972 = vmatpush1.msra.mxu0 0.0
        %3973 = vmatprep.subr.mxu0 0.0
        %3974 = vmatpush1.msra.mxu0 0.0
        %3975 = vmatprep.subr.mxu0 0.0
        %3976 = vmatpush1.msra.mxu0 0.0
        %3977 = vmatprep.subr.mxu0 0.0
        %3978 = vmatpush1.msra.mxu0 0.0
        %3979 = vmatprep.subr.mxu0 0.0
        %3980 = vmatpush1.msra.mxu0 0.0
        %3981 = vmatprep.subr.mxu0 0.0
        %3982 = vmatpush1.msra.mxu0 0.0
        %3983 = vmatprep.subr.mxu0 0.0
        %3984 = vmatpush1.msra.mxu0 0.0
        %3985 = vmatprep.subr.mxu0 0.0
        %3986 = vmatpush1.msra.mxu0 0.0
        %3987 = vmatprep.subr.mxu0 0.0
        %3988 = vmatpush1.msra.mxu0 0.0
        %3989 = vmatprep.subr.mxu0 0.0
        %3990 = vmatpush1.msra.mxu0 0.0
        %3991 = vmatprep.subr.mxu0 0.0
        %3992 = vmatpush1.msra.mxu0 0.0
        %3993 = vmatprep.subr.mxu0 0.0
        %3994 = vmatpush1.msra.mxu0 0.0
        %3995 = vmatprep.subr.mxu0 0.0
        %3996 = vmatpush1.msra.mxu0 0.0
        %3997 = vmatprep.subr.mxu0 0.0
        %3998 = vmatpush1.msra.mxu0 0.0
        %3999 = vmatprep.subr.mxu0 0.0
        %4000 = vmatpush1.msra.mxu0 0.0
        %4001 = vmatprep.subr.mxu0 0.0
        %4002 = vmatpush1.msra.mxu0 0.0
        %4003 = vmatprep.subr.mxu0 0.0
        %4004 = vmatpush1.msra.mxu0 0.0
        %4005 = vmatprep.subr.mxu0 0.0
        %4006 = vmatpush1.msra.mxu0 0.0
        %4007 = vmatprep.subr.mxu0 0.0
        %4008 = vmatpush1.msra.mxu0 0.0
        %4009 = vmatprep.subr.mxu0 0.0
        %4010 = vmatpush1.msra.mxu0 0.0
        %4011 = vmatprep.subr.mxu0 0.0
        %4012 = vmatpush1.msra.mxu0 0.0
        %4013 = vmatprep.subr.mxu0 0.0
        %4014 = vmatpush1.msra.mxu0 0.0
        %4015 = vmatprep.subr.mxu0 0.0
        %4016 = vmatpush1.msra.mxu0 0.0
        %4017 = vmatprep.subr.mxu0 0.0
        %4018 = vmatpush1.msra.mxu0 0.0
        %4019 = vmatprep.subr.mxu0 0.0
        %4020 = vmatpush1.msra.mxu0 0.0
        %4021 = vmatprep.subr.mxu0 0.0
        %4022 = vmatpush1.msra.mxu0 0.0
        %4023 = vmatprep.subr.mxu0 0.0
        %4024 = vmatpush1.msra.mxu0 0.0
        %4025 = vmatprep.subr.mxu0 0.0
        %4026 = vmatpush1.msra.mxu0 0.0
        %4027 = vmatprep.subr.mxu0 0.0
        %4028 = vmatpush1.msra.mxu0 0.0
        %4029 = vmatprep.subr.mxu0 0.0
        %4030 = vmatpush1.msra.mxu0 0.0
        %4031 = vmatprep.mubr.f32.mxu0 0.0
        %v4032 = vand.u32 %v3738, 4294901760
        %v4033 = vsub.f32 %v3738, %v4032
        %v4034 = vand.u32 %v4033, 4294901760
        %4035 = vmatmul.mubr.f32.gmra.mrb[0].mxu0 %v4034
        %v4036 = vpop.f32.mrb[0].mxu0
        %v4037 = vadd.f32 %v3963, %v4036
        %v4038 = vpop.f32.mrb[0].mxu0
        %4039 = vdwg.mxu0
        %4040 = vmatprep.subr.mxu0 0.0
        %v4041 = vand.u32 %v346, 4294901760
        %v4042 = vsub.f32 %v346, %v4041
        %v4043 = vand.u32 %v4042, 4294901760
        %4044 = vmatpush1.msra.mxu0 %v4043
        %4045 = vmatprep.subr.mxu0 0.0
        %4046 = vmatpush1.msra.mxu0 0.0
        %4047 = vmatprep.subr.mxu0 0.0
        %4048 = vmatpush1.msra.mxu0 0.0
        %4049 = vmatprep.subr.mxu0 0.0
        %4050 = vmatpush1.msra.mxu0 0.0
        %4051 = vmatprep.subr.mxu0 0.0
        %4052 = vmatpush1.msra.mxu0 0.0
        %4053 = vmatprep.subr.mxu0 0.0
        %4054 = vmatpush1.msra.mxu0 0.0
        %4055 = vmatprep.subr.mxu0 0.0
        %4056 = vmatpush1.msra.mxu0 0.0
        %4057 = vmatprep.subr.mxu0 0.0
        %4058 = vmatpush1.msra.mxu0 0.0
        %4059 = vmatprep.subr.mxu0 0.0
        %4060 = vmatpush1.msra.mxu0 0.0
        %4061 = vmatprep.subr.mxu0 0.0
        %4062 = vmatpush1.msra.mxu0 0.0
        %4063 = vmatprep.subr.mxu0 0.0
        %4064 = vmatpush1.msra.mxu0 0.0
        %4065 = vmatprep.subr.mxu0 0.0
        %4066 = vmatpush1.msra.mxu0 0.0
        %4067 = vmatprep.subr.mxu0 0.0
        %4068 = vmatpush1.msra.mxu0 0.0
        %4069 = vmatprep.subr.mxu0 0.0
        %4070 = vmatpush1.msra.mxu0 0.0
        %4071 = vmatprep.subr.mxu0 0.0
        %4072 = vmatpush1.msra.mxu0 0.0
        %4073 = vmatprep.subr.mxu0 0.0
        %4074 = vmatpush1.msra.mxu0 0.0
        %4075 = vmatprep.subr.mxu0 0.0
        %4076 = vmatpush1.msra.mxu0 0.0
        %4077 = vmatprep.subr.mxu0 0.0
        %4078 = vmatpush1.msra.mxu0 0.0
        %4079 = vmatprep.subr.mxu0 0.0
        %4080 = vmatpush1.msra.mxu0 0.0
        %4081 = vmatprep.subr.mxu0 0.0
        %4082 = vmatpush1.msra.mxu0 0.0
        %4083 = vmatprep.subr.mxu0 0.0
        %4084 = vmatpush1.msra.mxu0 0.0
        %4085 = vmatprep.subr.mxu0 0.0
        %4086 = vmatpush1.msra.mxu0 0.0
        %4087 = vmatprep.subr.mxu0 0.0
        %4088 = vmatpush1.msra.mxu0 0.0
        %4089 = vmatprep.subr.mxu0 0.0
        %4090 = vmatpush1.msra.mxu0 0.0
        %4091 = vmatprep.subr.mxu0 0.0
        %4092 = vmatpush1.msra.mxu0 0.0
        %4093 = vmatprep.subr.mxu0 0.0
        %4094 = vmatpush1.msra.mxu0 0.0
        %4095 = vmatprep.subr.mxu0 0.0
        %4096 = vmatpush1.msra.mxu0 0.0
        %4097 = vmatprep.subr.mxu0 0.0
        %4098 = vmatpush1.msra.mxu0 0.0
        %4099 = vmatprep.subr.mxu0 0.0
        %4100 = vmatpush1.msra.mxu0 0.0
        %4101 = vmatprep.subr.mxu0 0.0
        %4102 = vmatpush1.msra.mxu0 0.0
        %4103 = vmatprep.subr.mxu0 0.0
        %4104 = vmatpush1.msra.mxu0 0.0
        %4105 = vmatprep.subr.mxu0 0.0
        %4106 = vmatpush1.msra.mxu0 0.0
        %4107 = vmatprep.mubr.f32.mxu0 0.0
        %v4108 = vand.u32 %v3738, 4294901760
        %4109 = vmatmul.mubr.f32.gmra.mrb[0].mxu0 %v4108
        %v4110 = vpop.f32.mrb[0].mxu0
        %v4111 = vadd.f32 %v4037, %v4110
        %v4112 = vpop.f32.mrb[0].mxu0
        %4113 = vdwg.mxu0
        %4114 = vmatprep.subr.mxu0 0.0
        %v4115 = vand.u32 %v346, 4294901760
        %4116 = vmatpush1.msra.mxu0 %v4115
        %4117 = vmatprep.subr.mxu0 0.0
        %4118 = vmatpush1.msra.mxu0 0.0
        %4119 = vmatprep.subr.mxu0 0.0
        %4120 = vmatpush1.msra.mxu0 0.0
        %4121 = vmatprep.subr.mxu0 0.0
        %4122 = vmatpush1.msra.mxu0 0.0
        %4123 = vmatprep.subr.mxu0 0.0
        %4124 = vmatpush1.msra.mxu0 0.0
        %4125 = vmatprep.subr.mxu0 0.0
        %4126 = vmatpush1.msra.mxu0 0.0
        %4127 = vmatprep.subr.mxu0 0.0
        %4128 = vmatpush1.msra.mxu0 0.0
        %4129 = vmatprep.subr.mxu0 0.0
        %4130 = vmatpush1.msra.mxu0 0.0
        %4131 = vmatprep.subr.mxu0 0.0
        %4132 = vmatpush1.msra.mxu0 0.0
        %4133 = vmatprep.subr.mxu0 0.0
        %4134 = vmatpush1.msra.mxu0 0.0
        %4135 = vmatprep.subr.mxu0 0.0
        %4136 = vmatpush1.msra.mxu0 0.0
        %4137 = vmatprep.subr.mxu0 0.0
        %4138 = vmatpush1.msra.mxu0 0.0
        %4139 = vmatprep.subr.mxu0 0.0
        %4140 = vmatpush1.msra.mxu0 0.0
        %4141 = vmatprep.subr.mxu0 0.0
        %4142 = vmatpush1.msra.mxu0 0.0
        %4143 = vmatprep.subr.mxu0 0.0
        %4144 = vmatpush1.msra.mxu0 0.0
        %4145 = vmatprep.subr.mxu0 0.0
        %4146 = vmatpush1.msra.mxu0 0.0
        %4147 = vmatprep.subr.mxu0 0.0
        %4148 = vmatpush1.msra.mxu0 0.0
        %4149 = vmatprep.subr.mxu0 0.0
        %4150 = vmatpush1.msra.mxu0 0.0
        %4151 = vmatprep.subr.mxu0 0.0
        %4152 = vmatpush1.msra.mxu0 0.0
        %4153 = vmatprep.subr.mxu0 0.0
        %4154 = vmatpush1.msra.mxu0 0.0
        %4155 = vmatprep.subr.mxu0 0.0
        %4156 = vmatpush1.msra.mxu0 0.0
        %4157 = vmatprep.subr.mxu0 0.0
        %4158 = vmatpush1.msra.mxu0 0.0
        %4159 = vmatprep.subr.mxu0 0.0
        %4160 = vmatpush1.msra.mxu0 0.0
        %4161 = vmatprep.subr.mxu0 0.0
        %4162 = vmatpush1.msra.mxu0 0.0
        %4163 = vmatprep.subr.mxu0 0.0
        %4164 = vmatpush1.msra.mxu0 0.0
        %4165 = vmatprep.subr.mxu0 0.0
        %4166 = vmatpush1.msra.mxu0 0.0
        %4167 = vmatprep.subr.mxu0 0.0
        %4168 = vmatpush1.msra.mxu0 0.0
        %4169 = vmatprep.subr.mxu0 0.0
        %4170 = vmatpush1.msra.mxu0 0.0
        %4171 = vmatprep.subr.mxu0 0.0
        %4172 = vmatpush1.msra.mxu0 0.0
        %4173 = vmatprep.subr.mxu0 0.0
        %4174 = vmatpush1.msra.mxu0 0.0
        %4175 = vmatprep.subr.mxu0 0.0
        %4176 = vmatpush1.msra.mxu0 0.0
        %4177 = vmatprep.subr.mxu0 0.0
        %4178 = vmatpush1.msra.mxu0 0.0
        %4179 = vmatprep.mubr.f32.mxu0 0.0
        %v4180 = vand.u32 %v3738, 4294901760
        %4181 = vmatmul.mubr.f32.gmra.mrb[0].mxu0 %v4180
        %v4182 = vpop.f32.mrb[0].mxu0
        %v4183 = vadd.f32 %v4111, %v4182
        %v4184 = vpop.f32.mrb[0].mxu0
        %4185 = vdwg.mxu0
        %v4187 = vsel %vm994, %v2826, 0
        %4189 = vmatprep.subr.mxu0 0.0
        %v4190 = vand.u32 %v347, 4294901760
        %4191 = vmatpush1.msra.mxu0 %v4190
        %4192 = vmatprep.subr.mxu0 0.0
        %4193 = vmatpush1.msra.mxu0 0.0
        %4194 = vmatprep.subr.mxu0 0.0
        %4195 = vmatpush1.msra.mxu0 0.0
        %4196 = vmatprep.subr.mxu0 0.0
        %4197 = vmatpush1.msra.mxu0 0.0
        %4198 = vmatprep.subr.mxu0 0.0
        %4199 = vmatpush1.msra.mxu0 0.0
        %4200 = vmatprep.subr.mxu0 0.0
        %4201 = vmatpush1.msra.mxu0 0.0
        %4202 = vmatprep.subr.mxu0 0.0
        %4203 = vmatpush1.msra.mxu0 0.0
        %4204 = vmatprep.subr.mxu0 0.0
        %4205 = vmatpush1.msra.mxu0 0.0
        %4206 = vmatprep.subr.mxu0 0.0
        %4207 = vmatpush1.msra.mxu0 0.0
        %4208 = vmatprep.subr.mxu0 0.0
        %4209 = vmatpush1.msra.mxu0 0.0
        %4210 = vmatprep.subr.mxu0 0.0
        %4211 = vmatpush1.msra.mxu0 0.0
        %4212 = vmatprep.subr.mxu0 0.0
        %4213 = vmatpush1.msra.mxu0 0.0
        %4214 = vmatprep.subr.mxu0 0.0
        %4215 = vmatpush1.msra.mxu0 0.0
        %4216 = vmatprep.subr.mxu0 0.0
        %4217 = vmatpush1.msra.mxu0 0.0
        %4218 = vmatprep.subr.mxu0 0.0
        %4219 = vmatpush1.msra.mxu0 0.0
        %4220 = vmatprep.subr.mxu0 0.0
        %4221 = vmatpush1.msra.mxu0 0.0
        %4222 = vmatprep.subr.mxu0 0.0
        %4223 = vmatpush1.msra.mxu0 0.0
        %4224 = vmatprep.subr.mxu0 0.0
        %4225 = vmatpush1.msra.mxu0 0.0
        %4226 = vmatprep.subr.mxu0 0.0
        %4227 = vmatpush1.msra.mxu0 0.0
        %4228 = vmatprep.subr.mxu0 0.0
        %4229 = vmatpush1.msra.mxu0 0.0
        %4230 = vmatprep.subr.mxu0 0.0
        %4231 = vmatpush1.msra.mxu0 0.0
        %4232 = vmatprep.subr.mxu0 0.0
        %4233 = vmatpush1.msra.mxu0 0.0
        %4234 = vmatprep.subr.mxu0 0.0
        %4235 = vmatpush1.msra.mxu0 0.0
        %4236 = vmatprep.subr.mxu0 0.0
        %4237 = vmatpush1.msra.mxu0 0.0
        %4238 = vmatprep.subr.mxu0 0.0
        %4239 = vmatpush1.msra.mxu0 0.0
        %4240 = vmatprep.subr.mxu0 0.0
        %4241 = vmatpush1.msra.mxu0 0.0
        %4242 = vmatprep.subr.mxu0 0.0
        %4243 = vmatpush1.msra.mxu0 0.0
        %4244 = vmatprep.subr.mxu0 0.0
        %4245 = vmatpush1.msra.mxu0 0.0
        %4246 = vmatprep.subr.mxu0 0.0
        %4247 = vmatpush1.msra.mxu0 0.0
        %4248 = vmatprep.subr.mxu0 0.0
        %4249 = vmatpush1.msra.mxu0 0.0
        %4250 = vmatprep.subr.mxu0 0.0
        %4251 = vmatpush1.msra.mxu0 0.0
        %4252 = vmatprep.subr.mxu0 0.0
        %4253 = vmatpush1.msra.mxu0 0.0
        %4254 = vmatprep.mubr.f32.mxu0 0.0
        %v4255 = vand.u32 %v4187, 4294901760
        %v4256 = vsub.f32 %v4187, %v4255
        %v4257 = vand.u32 %v4256, 4294901760
        %v4258 = vsub.f32 %v4256, %v4257
        %v4259 = vand.u32 %v4258, 4294901760
        %4260 = vmatmul.mubr.f32.gmra.mrb[0].mxu0 %v4259
        %v4261 = vpop.f32.mrb[0].mxu0
        %v4262 = vadd.f32 0.0, %v4261
        %v4263 = vpop.f32.mrb[0].mxu0
        %4264 = vdwg.mxu0
        %4265 = vmatprep.subr.mxu0 0.0
        %v4266 = vand.u32 %v347, 4294901760
        %v4267 = vsub.f32 %v347, %v4266
        %v4268 = vand.u32 %v4267, 4294901760
        %v4269 = vsub.f32 %v4267, %v4268
        %v4270 = vand.u32 %v4269, 4294901760
        %4271 = vmatpush1.msra.mxu0 %v4270
        %4272 = vmatprep.subr.mxu0 0.0
        %4273 = vmatpush1.msra.mxu0 0.0
        %4274 = vmatprep.subr.mxu0 0.0
        %4275 = vmatpush1.msra.mxu0 0.0
        %4276 = vmatprep.subr.mxu0 0.0
        %4277 = vmatpush1.msra.mxu0 0.0
        %4278 = vmatprep.subr.mxu0 0.0
        %4279 = vmatpush1.msra.mxu0 0.0
        %4280 = vmatprep.subr.mxu0 0.0
        %4281 = vmatpush1.msra.mxu0 0.0
        %4282 = vmatprep.subr.mxu0 0.0
        %4283 = vmatpush1.msra.mxu0 0.0
        %4284 = vmatprep.subr.mxu0 0.0
        %4285 = vmatpush1.msra.mxu0 0.0
        %4286 = vmatprep.subr.mxu0 0.0
        %4287 = vmatpush1.msra.mxu0 0.0
        %4288 = vmatprep.subr.mxu0 0.0
        %4289 = vmatpush1.msra.mxu0 0.0
        %4290 = vmatprep.subr.mxu0 0.0
        %4291 = vmatpush1.msra.mxu0 0.0
        %4292 = vmatprep.subr.mxu0 0.0
        %4293 = vmatpush1.msra.mxu0 0.0
        %4294 = vmatprep.subr.mxu0 0.0
        %4295 = vmatpush1.msra.mxu0 0.0
        %4296 = vmatprep.subr.mxu0 0.0
        %4297 = vmatpush1.msra.mxu0 0.0
        %4298 = vmatprep.subr.mxu0 0.0
        %4299 = vmatpush1.msra.mxu0 0.0
        %4300 = vmatprep.subr.mxu0 0.0
        %4301 = vmatpush1.msra.mxu0 0.0
        %4302 = vmatprep.subr.mxu0 0.0
        %4303 = vmatpush1.msra.mxu0 0.0
        %4304 = vmatprep.subr.mxu0 0.0
        %4305 = vmatpush1.msra.mxu0 0.0
        %4306 = vmatprep.subr.mxu0 0.0
        %4307 = vmatpush1.msra.mxu0 0.0
        %4308 = vmatprep.subr.mxu0 0.0
        %4309 = vmatpush1.msra.mxu0 0.0
        %4310 = vmatprep.subr.mxu0 0.0
        %4311 = vmatpush1.msra.mxu0 0.0
        %4312 = vmatprep.subr.mxu0 0.0
        %4313 = vmatpush1.msra.mxu0 0.0
        %4314 = vmatprep.subr.mxu0 0.0
        %4315 = vmatpush1.msra.mxu0 0.0
        %4316 = vmatprep.subr.mxu0 0.0
        %4317 = vmatpush1.msra.mxu0 0.0
        %4318 = vmatprep.subr.mxu0 0.0
        %4319 = vmatpush1.msra.mxu0 0.0
        %4320 = vmatprep.subr.mxu0 0.0
        %4321 = vmatpush1.msra.mxu0 0.0
        %4322 = vmatprep.subr.mxu0 0.0
        %4323 = vmatpush1.msra.mxu0 0.0
        %4324 = vmatprep.subr.mxu0 0.0
        %4325 = vmatpush1.msra.mxu0 0.0
        %4326 = vmatprep.subr.mxu0 0.0
        %4327 = vmatpush1.msra.mxu0 0.0
        %4328 = vmatprep.subr.mxu0 0.0
        %4329 = vmatpush1.msra.mxu0 0.0
        %4330 = vmatprep.subr.mxu0 0.0
        %4331 = vmatpush1.msra.mxu0 0.0
        %4332 = vmatprep.subr.mxu0 0.0
        %4333 = vmatpush1.msra.mxu0 0.0
        %4334 = vmatprep.mubr.f32.mxu0 0.0
        %v4335 = vand.u32 %v4187, 4294901760
        %4336 = vmatmul.mubr.f32.gmra.mrb[0].mxu0 %v4335
        %v4337 = vpop.f32.mrb[0].mxu0
        %v4338 = vadd.f32 %v4262, %v4337
        %v4339 = vpop.f32.mrb[0].mxu0
        %4340 = vdwg.mxu0
        %4341 = vmatprep.subr.mxu0 0.0
        %v4342 = vand.u32 %v347, 4294901760
        %v4343 = vsub.f32 %v347, %v4342
        %4344 = vmatpush1.msra.mxu0 %v4343
        %4345 = vmatprep.subr.mxu0 0.0
        %4346 = vmatpush1.msra.mxu0 0.0
        %4347 = vmatprep.subr.mxu0 0.0
        %4348 = vmatpush1.msra.mxu0 0.0
        %4349 = vmatprep.subr.mxu0 0.0
        %4350 = vmatpush1.msra.mxu0 0.0
        %4351 = vmatprep.subr.mxu0 0.0
        %4352 = vmatpush1.msra.mxu0 0.0
        %4353 = vmatprep.subr.mxu0 0.0
        %4354 = vmatpush1.msra.mxu0 0.0
        %4355 = vmatprep.subr.mxu0 0.0
        %4356 = vmatpush1.msra.mxu0 0.0
        %4357 = vmatprep.subr.mxu0 0.0
        %4358 = vmatpush1.msra.mxu0 0.0
        %4359 = vmatprep.subr.mxu0 0.0
        %4360 = vmatpush1.msra.mxu0 0.0
        %4361 = vmatprep.subr.mxu0 0.0
        %4362 = vmatpush1.msra.mxu0 0.0
        %4363 = vmatprep.subr.mxu0 0.0
        %4364 = vmatpush1.msra.mxu0 0.0
        %4365 = vmatprep.subr.mxu0 0.0
        %4366 = vmatpush1.msra.mxu0 0.0
        %4367 = vmatprep.subr.mxu0 0.0
        %4368 = vmatpush1.msra.mxu0 0.0
        %4369 = vmatprep.subr.mxu0 0.0
        %4370 = vmatpush1.msra.mxu0 0.0
        %4371 = vmatprep.subr.mxu0 0.0
        %4372 = vmatpush1.msra.mxu0 0.0
        %4373 = vmatprep.subr.mxu0 0.0
        %4374 = vmatpush1.msra.mxu0 0.0
        %4375 = vmatprep.subr.mxu0 0.0
        %4376 = vmatpush1.msra.mxu0 0.0
        %4377 = vmatprep.subr.mxu0 0.0
        %4378 = vmatpush1.msra.mxu0 0.0
        %4379 = vmatprep.subr.mxu0 0.0
        %4380 = vmatpush1.msra.mxu0 0.0
        %4381 = vmatprep.subr.mxu0 0.0
        %4382 = vmatpush1.msra.mxu0 0.0
        %4383 = vmatprep.subr.mxu0 0.0
        %4384 = vmatpush1.msra.mxu0 0.0
        %4385 = vmatprep.subr.mxu0 0.0
        %4386 = vmatpush1.msra.mxu0 0.0
        %4387 = vmatprep.subr.mxu0 0.0
        %4388 = vmatpush1.msra.mxu0 0.0
        %4389 = vmatprep.subr.mxu0 0.0
        %4390 = vmatpush1.msra.mxu0 0.0
        %4391 = vmatprep.subr.mxu0 0.0
        %4392 = vmatpush1.msra.mxu0 0.0
        %4393 = vmatprep.subr.mxu0 0.0
        %4394 = vmatpush1.msra.mxu0 0.0
        %4395 = vmatprep.subr.mxu0 0.0
        %4396 = vmatpush1.msra.mxu0 0.0
        %4397 = vmatprep.subr.mxu0 0.0
        %4398 = vmatpush1.msra.mxu0 0.0
        %4399 = vmatprep.subr.mxu0 0.0
        %4400 = vmatpush1.msra.mxu0 0.0
        %4401 = vmatprep.subr.mxu0 0.0
        %4402 = vmatpush1.msra.mxu0 0.0
        %4403 = vmatprep.subr.mxu0 0.0
        %4404 = vmatpush1.msra.mxu0 0.0
        %4405 = vmatprep.subr.mxu0 0.0
        %4406 = vmatpush1.msra.mxu0 0.0
        %4407 = vmatprep.mubr.f32.mxu0 0.0
        %v4408 = vand.u32 %v4187, 4294901760
        %v4409 = vsub.f32 %v4187, %v4408
        %4410 = vmatmul.mubr.f32.gmra.mrb[0].mxu0 %v4409
        %v4411 = vpop.f32.mrb[0].mxu0
        %v4412 = vadd.f32 %v4338, %v4411
        %v4413 = vpop.f32.mrb[0].mxu0
        %4414 = vdwg.mxu0
        %4415 = vmatprep.subr.mxu0 0.0
        %v4416 = vand.u32 %v347, 4294901760
        %4417 = vmatpush1.msra.mxu0 %v4416
        %4418 = vmatprep.subr.mxu0 0.0
        %4419 = vmatpush1.msra.mxu0 0.0
        %4420 = vmatprep.subr.mxu0 0.0
        %4421 = vmatpush1.msra.mxu0 0.0
        %4422 = vmatprep.subr.mxu0 0.0
        %4423 = vmatpush1.msra.mxu0 0.0
        %4424 = vmatprep.subr.mxu0 0.0
        %4425 = vmatpush1.msra.mxu0 0.0
        %4426 = vmatprep.subr.mxu0 0.0
        %4427 = vmatpush1.msra.mxu0 0.0
        %4428 = vmatprep.subr.mxu0 0.0
        %4429 = vmatpush1.msra.mxu0 0.0
        %4430 = vmatprep.subr.mxu0 0.0
        %4431 = vmatpush1.msra.mxu0 0.0
        %4432 = vmatprep.subr.mxu0 0.0
        %4433 = vmatpush1.msra.mxu0 0.0
        %4434 = vmatprep.subr.mxu0 0.0
        %4435 = vmatpush1.msra.mxu0 0.0
        %4436 = vmatprep.subr.mxu0 0.0
        %4437 = vmatpush1.msra.mxu0 0.0
        %4438 = vmatprep.subr.mxu0 0.0
        %4439 = vmatpush1.msra.mxu0 0.0
        %4440 = vmatprep.subr.mxu0 0.0
        %4441 = vmatpush1.msra.mxu0 0.0
        %4442 = vmatprep.subr.mxu0 0.0
        %4443 = vmatpush1.msra.mxu0 0.0
        %4444 = vmatprep.subr.mxu0 0.0
        %4445 = vmatpush1.msra.mxu0 0.0
        %4446 = vmatprep.subr.mxu0 0.0
        %4447 = vmatpush1.msra.mxu0 0.0
        %4448 = vmatprep.subr.mxu0 0.0
        %4449 = vmatpush1.msra.mxu0 0.0
        %4450 = vmatprep.subr.mxu0 0.0
        %4451 = vmatpush1.msra.mxu0 0.0
        %4452 = vmatprep.subr.mxu0 0.0
        %4453 = vmatpush1.msra.mxu0 0.0
        %4454 = vmatprep.subr.mxu0 0.0
        %4455 = vmatpush1.msra.mxu0 0.0
        %4456 = vmatprep.subr.mxu0 0.0
        %4457 = vmatpush1.msra.mxu0 0.0
        %4458 = vmatprep.subr.mxu0 0.0
        %4459 = vmatpush1.msra.mxu0 0.0
        %4460 = vmatprep.subr.mxu0 0.0
        %4461 = vmatpush1.msra.mxu0 0.0
        %4462 = vmatprep.subr.mxu0 0.0
        %4463 = vmatpush1.msra.mxu0 0.0
        %4464 = vmatprep.subr.mxu0 0.0
        %4465 = vmatpush1.msra.mxu0 0.0
        %4466 = vmatprep.subr.mxu0 0.0
        %4467 = vmatpush1.msra.mxu0 0.0
        %4468 = vmatprep.subr.mxu0 0.0
        %4469 = vmatpush1.msra.mxu0 0.0
        %4470 = vmatprep.subr.mxu0 0.0
        %4471 = vmatpush1.msra.mxu0 0.0
        %4472 = vmatprep.subr.mxu0 0.0
        %4473 = vmatpush1.msra.mxu0 0.0
        %4474 = vmatprep.subr.mxu0 0.0
        %4475 = vmatpush1.msra.mxu0 0.0
        %4476 = vmatprep.subr.mxu0 0.0
        %4477 = vmatpush1.msra.mxu0 0.0
        %4478 = vmatprep.subr.mxu0 0.0
        %4479 = vmatpush1.msra.mxu0 0.0
        %4480 = vmatprep.mubr.f32.mxu0 0.0
        %v4481 = vand.u32 %v4187, 4294901760
        %v4482 = vsub.f32 %v4187, %v4481
        %v4483 = vand.u32 %v4482, 4294901760
        %4484 = vmatmul.mubr.f32.gmra.mrb[0].mxu0 %v4483
        %v4485 = vpop.f32.mrb[0].mxu0
        %v4486 = vadd.f32 %v4412, %v4485
        %v4487 = vpop.f32.mrb[0].mxu0
        %4488 = vdwg.mxu0
        %4489 = vmatprep.subr.mxu0 0.0
        %v4490 = vand.u32 %v347, 4294901760
        %v4491 = vsub.f32 %v347, %v4490
        %v4492 = vand.u32 %v4491, 4294901760
        %4493 = vmatpush1.msra.mxu0 %v4492
        %4494 = vmatprep.subr.mxu0 0.0
        %4495 = vmatpush1.msra.mxu0 0.0
        %4496 = vmatprep.subr.mxu0 0.0
        %4497 = vmatpush1.msra.mxu0 0.0
        %4498 = vmatprep.subr.mxu0 0.0
        %4499 = vmatpush1.msra.mxu0 0.0
        %4500 = vmatprep.subr.mxu0 0.0
        %4501 = vmatpush1.msra.mxu0 0.0
        %4502 = vmatprep.subr.mxu0 0.0
        %4503 = vmatpush1.msra.mxu0 0.0
        %4504 = vmatprep.subr.mxu0 0.0
        %4505 = vmatpush1.msra.mxu0 0.0
        %4506 = vmatprep.subr.mxu0 0.0
        %4507 = vmatpush1.msra.mxu0 0.0
        %4508 = vmatprep.subr.mxu0 0.0
        %4509 = vmatpush1.msra.mxu0 0.0
        %4510 = vmatprep.subr.mxu0 0.0
        %4511 = vmatpush1.msra.mxu0 0.0
        %4512 = vmatprep.subr.mxu0 0.0
        %4513 = vmatpush1.msra.mxu0 0.0
        %4514 = vmatprep.subr.mxu0 0.0
        %4515 = vmatpush1.msra.mxu0 0.0
        %4516 = vmatprep.subr.mxu0 0.0
        %4517 = vmatpush1.msra.mxu0 0.0
        %4518 = vmatprep.subr.mxu0 0.0
        %4519 = vmatpush1.msra.mxu0 0.0
        %4520 = vmatprep.subr.mxu0 0.0
        %4521 = vmatpush1.msra.mxu0 0.0
        %4522 = vmatprep.subr.mxu0 0.0
        %4523 = vmatpush1.msra.mxu0 0.0
        %4524 = vmatprep.subr.mxu0 0.0
        %4525 = vmatpush1.msra.mxu0 0.0
        %4526 = vmatprep.subr.mxu0 0.0
        %4527 = vmatpush1.msra.mxu0 0.0
        %4528 = vmatprep.subr.mxu0 0.0
        %4529 = vmatpush1.msra.mxu0 0.0
        %4530 = vmatprep.subr.mxu0 0.0
        %4531 = vmatpush1.msra.mxu0 0.0
        %4532 = vmatprep.subr.mxu0 0.0
        %4533 = vmatpush1.msra.mxu0 0.0
        %4534 = vmatprep.subr.mxu0 0.0
        %4535 = vmatpush1.msra.mxu0 0.0
        %4536 = vmatprep.subr.mxu0 0.0
        %4537 = vmatpush1.msra.mxu0 0.0
        %4538 = vmatprep.subr.mxu0 0.0
        %4539 = vmatpush1.msra.mxu0 0.0
        %4540 = vmatprep.subr.mxu0 0.0
        %4541 = vmatpush1.msra.mxu0 0.0
        %4542 = vmatprep.subr.mxu0 0.0
        %4543 = vmatpush1.msra.mxu0 0.0
        %4544 = vmatprep.subr.mxu0 0.0
        %4545 = vmatpush1.msra.mxu0 0.0
        %4546 = vmatprep.subr.mxu0 0.0
        %4547 = vmatpush1.msra.mxu0 0.0
        %4548 = vmatprep.subr.mxu0 0.0
        %4549 = vmatpush1.msra.mxu0 0.0
        %4550 = vmatprep.subr.mxu0 0.0
        %4551 = vmatpush1.msra.mxu0 0.0
        %4552 = vmatprep.subr.mxu0 0.0
        %4553 = vmatpush1.msra.mxu0 0.0
        %4554 = vmatprep.subr.mxu0 0.0
        %4555 = vmatpush1.msra.mxu0 0.0
        %4556 = vmatprep.mubr.f32.mxu0 0.0
        %v4557 = vand.u32 %v4187, 4294901760
        %4558 = vmatmul.mubr.f32.gmra.mrb[0].mxu0 %v4557
        %v4559 = vpop.f32.mrb[0].mxu0
        %v4560 = vadd.f32 %v4486, %v4559
        %v4561 = vpop.f32.mrb[0].mxu0
        %4562 = vdwg.mxu0
        %4563 = vmatprep.subr.mxu0 0.0
        %v4564 = vand.u32 %v347, 4294901760
        %4565 = vmatpush1.msra.mxu0 %v4564
        %4566 = vmatprep.subr.mxu0 0.0
        %4567 = vmatpush1.msra.mxu0 0.0
        %4568 = vmatprep.subr.mxu0 0.0
        %4569 = vmatpush1.msra.mxu0 0.0
        %4570 = vmatprep.subr.mxu0 0.0
        %4571 = vmatpush1.msra.mxu0 0.0
        %4572 = vmatprep.subr.mxu0 0.0
        %4573 = vmatpush1.msra.mxu0 0.0
        %4574 = vmatprep.subr.mxu0 0.0
        %4575 = vmatpush1.msra.mxu0 0.0
        %4576 = vmatprep.subr.mxu0 0.0
        %4577 = vmatpush1.msra.mxu0 0.0
        %4578 = vmatprep.subr.mxu0 0.0
        %4579 = vmatpush1.msra.mxu0 0.0
        %4580 = vmatprep.subr.mxu0 0.0
        %4581 = vmatpush1.msra.mxu0 0.0
        %4582 = vmatprep.subr.mxu0 0.0
        %4583 = vmatpush1.msra.mxu0 0.0
        %4584 = vmatprep.subr.mxu0 0.0
        %4585 = vmatpush1.msra.mxu0 0.0
        %4586 = vmatprep.subr.mxu0 0.0
        %4587 = vmatpush1.msra.mxu0 0.0
        %4588 = vmatprep.subr.mxu0 0.0
        %4589 = vmatpush1.msra.mxu0 0.0
        %4590 = vmatprep.subr.mxu0 0.0
        %4591 = vmatpush1.msra.mxu0 0.0
        %4592 = vmatprep.subr.mxu0 0.0
        %4593 = vmatpush1.msra.mxu0 0.0
        %4594 = vmatprep.subr.mxu0 0.0
        %4595 = vmatpush1.msra.mxu0 0.0
        %4596 = vmatprep.subr.mxu0 0.0
        %4597 = vmatpush1.msra.mxu0 0.0
        %4598 = vmatprep.subr.mxu0 0.0
        %4599 = vmatpush1.msra.mxu0 0.0
        %4600 = vmatprep.subr.mxu0 0.0
        %4601 = vmatpush1.msra.mxu0 0.0
        %4602 = vmatprep.subr.mxu0 0.0
        %4603 = vmatpush1.msra.mxu0 0.0
        %4604 = vmatprep.subr.mxu0 0.0
        %4605 = vmatpush1.msra.mxu0 0.0
        %4606 = vmatprep.subr.mxu0 0.0
        %4607 = vmatpush1.msra.mxu0 0.0
        %4608 = vmatprep.subr.mxu0 0.0
        %4609 = vmatpush1.msra.mxu0 0.0
        %4610 = vmatprep.subr.mxu0 0.0
        %4611 = vmatpush1.msra.mxu0 0.0
        %4612 = vmatprep.subr.mxu0 0.0
        %4613 = vmatpush1.msra.mxu0 0.0
        %4614 = vmatprep.subr.mxu0 0.0
        %4615 = vmatpush1.msra.mxu0 0.0
        %4616 = vmatprep.subr.mxu0 0.0
        %4617 = vmatpush1.msra.mxu0 0.0
        %4618 = vmatprep.subr.mxu0 0.0
        %4619 = vmatpush1.msra.mxu0 0.0
        %4620 = vmatprep.subr.mxu0 0.0
        %4621 = vmatpush1.msra.mxu0 0.0
        %4622 = vmatprep.subr.mxu0 0.0
        %4623 = vmatpush1.msra.mxu0 0.0
        %4624 = vmatprep.subr.mxu0 0.0
        %4625 = vmatpush1.msra.mxu0 0.0
        %4626 = vmatprep.subr.mxu0 0.0
        %4627 = vmatpush1.msra.mxu0 0.0
        %4628 = vmatprep.mubr.f32.mxu0 0.0
        %v4629 = vand.u32 %v4187, 4294901760
        %4630 = vmatmul.mubr.f32.gmra.mrb[0].mxu0 %v4629
        %v4631 = vpop.f32.mrb[0].mxu0
        %v4632 = vadd.f32 %v4560, %v4631
        %v4633 = vpop.f32.mrb[0].mxu0
        %4634 = vdwg.mxu0
        %v4635 = vrcp.pop %v2829
        %v4636 = vmul.f32 %v3285, %v4635
        %v4637 = vrcp.pop %v2832
        %v4638 = vmul.f32 %v3734, %v4637
        %v4639 = vrcp.pop %v2835
        %v4640 = vmul.f32 %v4183, %v4639
        %v4641 = vrcp.pop %v2838
        %v4642 = vmul.f32 %v4632, %v4641
        %v4643 = vcombine.low %v4636, %v4640
        %v4644 = vcombine.high %v4636, %v4640
        %v4646 = vunpack.c.l.s4 1983009808
        %v4647 = vunpack.c.0.s8 %v4646
        %v4648 = vlaneseq
        %v4649 = vshrl.u32 %v4648, 7
        %v4650 = vsub.s32 %v4647, %v4649
        %v4651 = vrot.slane %v4643, %v4650
        %v4653 = vunpack.c.l.s4 1983009808
        %v4654 = vunpack.c.0.s8 %v4653
        %v4655 = vlaneseq
        %v4656 = vshrl.u32 %v4655, 7
        %v4657 = vsub.s32 %v4654, %v4656
        %v4658 = vrot.slane %v4644, %v4657
        %v4659 = vcombine.low %v4638, %v4642
        %v4660 = vcombine.high %v4638, %v4642
        %v4662 = vunpack.c.l.s4 1983009808
        %v4663 = vunpack.c.0.s8 %v4662
        %v4664 = vlaneseq
        %v4665 = vshrl.u32 %v4664, 7
        %v4666 = vsub.s32 %v4663, %v4665
        %v4667 = vrot.slane %v4659, %v4666
        %v4669 = vunpack.c.l.s4 1983009808
        %v4670 = vunpack.c.0.s8 %v4669
        %v4671 = vlaneseq
        %v4672 = vshrl.u32 %v4671, 7
        %v4673 = vsub.s32 %v4670, %v4672
        %v4674 = vrot.slane %v4660, %v4673
        %v4675 = vcombine.low %v4651, %v4667
        %v4676 = vcombine.high %v4651, %v4667
        %v4678 = vunpack.c.l.s4 1934713408
        %v4679 = vunpack.c.0.s8 %v4678
        %v4680 = vlaneseq
        %v4681 = vshrl.u32 %v4680, 7
        %v4682 = vsub.s32 %v4679, %v4681
        %v4683 = vrot.slane %v4675, %v4682
        %v4685 = vunpack.c.l.s4 1934713408
        %v4686 = vunpack.c.0.s8 %v4685
        %v4687 = vlaneseq
        %v4688 = vshrl.u32 %v4687, 7
        %v4689 = vsub.s32 %v4686, %v4688
        %v4690 = vrot.slane %v4676, %v4689
        %v4691 = vcombine.low %v4658, %v4674
        %v4692 = vcombine.high %v4658, %v4674
        %v4694 = vunpack.c.l.s4 1934713408
        %v4695 = vunpack.c.0.s8 %v4694
        %v4696 = vlaneseq
        %v4697 = vshrl.u32 %v4696, 7
        %v4698 = vsub.s32 %v4695, %v4697
        %v4699 = vrot.slane %v4691, %v4698
        %v4701 = vunpack.c.l.s4 1934713408
        %v4702 = vunpack.c.0.s8 %v4701
        %v4703 = vlaneseq
        %v4704 = vshrl.u32 %v4703, 7
        %v4705 = vsub.s32 %v4702, %v4704
        %v4706 = vrot.slane %v4692, %v4705
        %v4707 = vcombine.high %v4683, 0.0
        %v4708 = vcombine.high %v4690, 0.0
        %v4709 = vcombine.high %v4699, 0.0
        %v4710 = vcombine.high %v4706, 0.0
        %v4711 = vcombine.low %v4683, %v4690
        %v4713 = vunpack.c.l.s4 1983009808
        %v4714 = vunpack.c.0.s8 %v4713
        %v4715 = vlaneseq
        %v4716 = vshrl.u32 %v4715, 7
        %v4717 = vsub.s32 %v4714, %v4716
        %v4718 = vrot.slane %v4711, %v4717
        %v4719 = vcombine.low %v4707, %v4708
        %v4721 = vunpack.c.l.s4 1983009808
        %v4722 = vunpack.c.0.s8 %v4721
        %v4723 = vlaneseq
        %v4724 = vshrl.u32 %v4723, 7
        %v4725 = vsub.s32 %v4722, %v4724
        %v4726 = vrot.slane %v4719, %v4725
        %v4727 = vcombine.low %v4699, %v4706
        %v4729 = vunpack.c.l.s4 1983009808
        %v4730 = vunpack.c.0.s8 %v4729
        %v4731 = vlaneseq
        %v4732 = vshrl.u32 %v4731, 7
        %v4733 = vsub.s32 %v4730, %v4732
        %v4734 = vrot.slane %v4727, %v4733
        %v4735 = vcombine.low %v4709, %v4710
        %v4737 = vunpack.c.l.s4 1983009808
        %v4738 = vunpack.c.0.s8 %v4737
        %v4739 = vlaneseq
        %v4740 = vshrl.u32 %v4739, 7
        %v4741 = vsub.s32 %v4738, %v4740
        %v4742 = vrot.slane %v4735, %v4741
        %v4743 = vcombine.low %v4718, %v4726
        %v4744 = vcombine.high %v4718, %v4726
        %v4746 = vunpack.c.l.s4 1934713408
        %v4747 = vunpack.c.0.s8 %v4746
        %v4748 = vlaneseq
        %v4749 = vshrl.u32 %v4748, 7
        %v4750 = vsub.s32 %v4747, %v4749
        %v4751 = vrot.slane %v4743, %v4750
        %v4753 = vunpack.c.l.s4 1934713408
        %v4754 = vunpack.c.0.s8 %v4753
        %v4755 = vlaneseq
        %v4756 = vshrl.u32 %v4755, 7
        %v4757 = vsub.s32 %v4754, %v4756
        %v4758 = vrot.slane %v4744, %v4757
        %v4759 = vcombine.low %v4734, %v4742
        %v4760 = vcombine.high %v4734, %v4742
        %v4762 = vunpack.c.l.s4 1934713408
        %v4763 = vunpack.c.0.s8 %v4762
        %v4764 = vlaneseq
        %v4765 = vshrl.u32 %v4764, 7
        %v4766 = vsub.s32 %v4763, %v4765
        %v4767 = vrot.slane %v4759, %v4766
        %v4769 = vunpack.c.l.s4 1934713408
        %v4770 = vunpack.c.0.s8 %v4769
        %v4771 = vlaneseq
        %v4772 = vshrl.u32 %v4771, 7
        %v4773 = vsub.s32 %v4770, %v4772
        %v4774 = vrot.slane %v4760, %v4773
        %v4775 = vcombine.low %v4751, %v4767
        %v4776 = vcombine.high %v4751, %v4767
        %v4777 = vcombine.low %v4758, %v4774
        %v4778 = vcombine.high %v4758, %v4774
        %4780 = vrot.lane.b32.xlu0 %v4776, 8
        %v4781 = vpop.permute.xlu0 %4780
        %4784 = vrot.lane.b32.xlu0 %v4777, 16
        %v4785 = vpop.permute.xlu0 %4784
        %4788 = vrot.lane.b32.xlu0 %v4778, 24
        %v4789 = vpop.permute.xlu0 %4788
        %v4791 = vsel %vm994, %v4775, %v4781
        %vm4792 = vcmask 130048
        %v4793 = vsel %vm4792, %v4791, %v4785
        %vm4794 = vcmask 195584
        %v4795 = vsel %vm4794, %v4793, %v4789
        %v4796 = vadd.f32 %v4795, %v339
        %v4797 = vsel %vm359, %v4796, 0.0
        %4798 = vadd.xlane.f32.xlu0 %v4797
        %v4799 = vpop.xlane.xlu0 %4798
        %v4800 = vrcp.pop 32.0
        %v4801 = vmul.f32 %v4799, %v4800
        %v4802 = vsub.f32 %v4796, %v4801
        %v4803 = vmul.f32 %v4802, %v4802
        %v4804 = vsel %vm359, %v4803, 0.0
        %4805 = vadd.xlane.f32.xlu0 %v4804
        %v4806 = vpop.xlane.xlu0 %4805
        %v4807 = vmul.f32 %v4806, %v4800
        %v4808 = vadd.f32 %v4807, 1e-05
        %v4809 = vrsqrt.pop %v4808
        %v4810 = vmul.f32 %v4802, %v4809
        %v4811 = vld [vmem:[%s5] sm:$0x1]
        %v4813 = vlaneseq
        %v4814 = vshrl.u32 %v4813, 7
        %v4815 = vsub.s32 0, %v4814
        %v4816 = vrot.slane %v4811, %v4815
        %v4818 = vmul.f32 %v4810, %v4816
        %v4819 = vld [vmem:[%s6] sm:$0x1]
        %v4821 = vlaneseq
        %v4822 = vshrl.u32 %v4821, 7
        %v4823 = vsub.s32 0, %v4822
        %v4824 = vrot.slane %v4819, %v4823
        %v4826 = vadd.f32 %v4818, %v4824
        %4827 = vst.msk [vmem:[%s321] sm:$0xff] %vm359, %v4826
        %s4828 = sand.u32 %s207, 1
        %s4829 = scalar_lea.sflag [#allocation3], %s4828
        %s4830 = sand.u32 %s207, 1
        %s4831 = smul.addr %s4830, 8
        %s4832 = scalar_lea.vmem [#allocation2], %s4831
        // Predicated region
        $region49: #{_lambda_.1} parent=47 // pred_check
          %p4833 = pneg %p217
        $region50: #{_lambda_.1} parent=47 // pred_check_branch
          %4835 = sbr.rel (%p4833) target = $region52
        $region51: #{_lambda_.1} parent=47 // pred_region
          %s4837 = ssub.s32 128, 128
          %4838 = vsyncadd %s4829, %s4837
          %s4839 = sadd.s32 %s26, %s25
          %s4840 = smul.addr %s4839, 128
          %s4841 = scalar_lea.hbm %s7, %s4840
          %s4843 = sshll.u32 %s4832, 4
          %s4844 = int_to_ptr.vmem [resolvable:$true] %s4843
          %4846 = dma.vmem_to_hbm [thread:$0]  %s4844, 128, %s4841, %s4829
        $region52: #{_lambda_.1} parent=47 // pred_fallthru
          _
      $region48: #{_lambda_.1} parent=5 // pred_fallthru
        _
      %p4847 = scmp.le.s32.totalorder 2, %s16
      // Predicated region
      $region53: #{_lambda_.1} parent=5 // pred_check
        %p4848 = pneg %p4847
      $region54: #{_lambda_.1} parent=5 // pred_check_branch
        %4850 = sbr.rel (%p4848) target = $region56
      $region55: #{_lambda_.1} parent=5 // pred_region
        %s4851 = ssub.s32 %s16, 2
        // Predicated region
        $region57: #{_lambda_.1} parent=55 // pred_check
          %p4852 = pneg %p223
        $region58: #{_lambda_.1} parent=55 // pred_check_branch
          %4854 = sbr.rel (%p4852) target = $region60
        $region59: #{_lambda_.1} parent=55 // pred_region
          %s4855 = sand.u32 %s208, 1
          %s4856 = scalar_lea.sflag [#allocation3], %s4855
          %s4857 = sand.u32 %s208, 1
          %s4858 = smul.addr %s4857, 8
          %s4859 = scalar_lea.vmem [#allocation2], %s4858
          %4860 = dma.done %s4856, 128
        $region60: #{_lambda_.1} parent=55 // pred_fallthru
          _
      $region56: #{_lambda_.1} parent=5 // pred_fallthru
        _
    $region6: #{_lambda_.1} parent=1 // loop_footer
      %s20 = sadd.s32 1, %s16
    $region7: #{_lambda_.1} parent=1 // loop_footer_branch
      %15 = sbr.rel target = $region3
    $region8: #{_lambda_.1} parent=1 // loop_exit
      _
    %4861 = vsyncpa [#allocation3], 1
    %s4862 = scalar_lea.sflag [#allocation3], 1
    %4863 = vsyncpa %s4862, 1

</llo_original>
